<compile_context>
chip_gen: v7x
topology: tpu7x:2x2x1
jax: 0.10.0
libtpu: 0.0.40
codegen_flags: <defaults>
</compile_context>

<pallas_src>
import jax
import jax.numpy as jnp
from jax import lax
from jax.experimental import pallas as pl
from jax.experimental.pallas import tpu as pltpu


def _rnn_kernel(xp_ref, wblk_ref, bias_ref, whh_ref, wout_ref, bout_ref,
                yout_ref, hn_ref, cn_ref,
                gx_ref, hf_ref, hb_ref):
    H = hn_ref.shape[1]
    B2 = hn_ref.shape[0]            # 2 * B (both directions stacked on sublanes)
    B = B2 // 2
    TB = hf_ref.shape[0]            # T * B
    T = TB // B

    # ---- prologue: fused Linear + LSTM input projections, both directions ----
    # xp is block-diagonally packed, so row t*2B + j of the result is already
    # the gate pre-activation the recurrence needs at step t for row j:
    #   j <  B : forward cell  @ time t
    #   j >= B : backward cell @ time T-1-t
    gx_ref[...] = (jnp.dot(xp_ref[...], wblk_ref[...],
                           preferred_element_type=jnp.float32)
                   + bias_ref[...])

    whh = whh_ref[...]              # (2H, 4H) bf16, resident across the loop

    # Block-LHS mask (hoisted): forward rows keep cols [:H], backward rows [H:].
    row = lax.broadcasted_iota(jnp.int32, (B2, 2 * H), 0)
    col = lax.broadcasted_iota(jnp.int32, (B2, 2 * H), 1)
    blk_mask = ((row < B) == (col < H)).astype(jnp.float32)

    # ---- merged forward/backward recurrence, fully unrolled (T is static) ----
    def step(s, carry):
        h_blk, c_st = carry                                   # (2B,2H), (2B,H) f32
        rec = jnp.dot(h_blk.astype(jnp.bfloat16), whh,
                      preferred_element_type=jnp.float32)     # (2B, 4H) = recurrent gates
        gates = gx_ref[pl.ds(s * B2, B2), :] + rec            # (2B, 4H), one contiguous read
        i = jax.nn.sigmoid(gates[:, 0 * H:1 * H])
        f = jax.nn.sigmoid(gates[:, 1 * H:2 * H])
        g = jnp.tanh(gates[:, 2 * H:3 * H])
        o = jax.nn.sigmoid(gates[:, 3 * H:4 * H])
        c_new = f * c_st + i * g
        h_new = o * jnp.tanh(c_new)       # rows [:B] = fwd @ s, rows [B:] = bwd @ T-1-s
        hf_ref[pl.ds(s * B, B), :] = h_new[:B]
        hb_ref[pl.ds((T - 1 - s) * B, B), :] = h_new[B:]
        h_blk_new = jnp.concatenate([h_new, h_new], axis=-1) * blk_mask
        return h_blk_new, c_new

    h0 = jnp.zeros((B2, 2 * H), jnp.float32)
    c0 = jnp.zeros((B2, H), jnp.float32)
    h_blk_fin, c_fin = lax.fori_loop(0, T, step, (h0, c0), unroll=True)

    hn_ref[...] = h_blk_fin[:, :H] + h_blk_fin[:, H:]   # compact (2B,H); off-halves are 0
    cn_ref[...] = c_fin

    # ---- epilogue: output projection (split over direction halves) + softmax ----
    hf = hf_ref[...].astype(jnp.bfloat16)                # (T*B, H) forward trace
    hb = hb_ref[...].astype(jnp.bfloat16)                # (T*B, H) backward trace
    logits = (jnp.dot(hf, wout_ref[0:H, :], preferred_element_type=jnp.float32)
              + jnp.dot(hb, wout_ref[H:2 * H, :], preferred_element_type=jnp.float32)
              + bout_ref[...])
    m = jnp.max(logits, axis=-1, keepdims=True)
    e = jnp.exp(logits - m)
    # Exact normalization (off the recurrent critical path; rows sum to 1).
    yout_ref[...] = e / jnp.sum(e, axis=-1, keepdims=True)


def _full_spec(shape):
    nd = len(shape)
    return pl.BlockSpec(shape, lambda i, nd=nd: (0,) * nd)


@jax.jit
def rnn_forward(x, params):
    """x: (B, T, insize) float32. Returns (yout (B,T,O), (h_n (2,B,H), c_n (2,B,H)))."""
    B, T, I = x.shape
    H = params["whh_f"].shape[0]
    O = params["w_out"].shape[1]
    G = 4 * H

    # Pad the contraction dim per direction half to a multiple of 128
    # (so 2*Ipad is a multiple of 256: aligned MXU K on v5e/v6e/v7x).
    Ipad = -(-I // 128) * 128
    pad_i = Ipad - I

    # Pack x block-diagonally, time-major:
    #   row t*2B + j, j <  B : x[j, t]       in cols [:I]           (forward)
    #   row t*2B + j, j >= B : x[j-B, T-1-t] in cols [Ipad:Ipad+I]  (backward)
    xt = jnp.transpose(x, (1, 0, 2))                                   # (T, B, I)
    xf = jnp.pad(xt, ((0, 0), (0, 0), (0, pad_i + Ipad)))
    xb = jnp.pad(xt[::-1], ((0, 0), (0, 0), (Ipad, pad_i)))
    xpack = jnp.concatenate([xf, xb], axis=1).reshape(T * 2 * B, 2 * Ipad)

    # Fuse Linear(insize->H) into both directions' LSTM input projections and
    # stack them block-diagonally to match xpack (in f32 once, then bf16).
    wbf = jnp.dot(params["w_in"], params["wih_f"])                     # (I, 4H)
    wbb = jnp.dot(params["w_in"], params["wih_b"])                     # (I, 4H)
    wblk = jnp.concatenate([jnp.pad(wbf, ((0, pad_i), (0, 0))),
                            jnp.pad(wbb, ((0, pad_i), (0, 0)))], axis=0)  # (2*Ipad, 4H)

    bbf = jnp.dot(params["b_in"], params["wih_f"]) + params["b_f"]     # (1, 4H)
    bbb = jnp.dot(params["b_in"], params["wih_b"]) + params["b_b"]     # (1, 4H)
    bias_pack = jnp.tile(jnp.concatenate([jnp.broadcast_to(bbf, (B, G)),
                                          jnp.broadcast_to(bbb, (B, G))], axis=0),
                         (T, 1))                                       # (T*2B, 4H)

    whh_blk = jnp.concatenate([params["whh_f"], params["whh_b"]], axis=0)  # (2H, 4H)

    args = (xpack.astype(jnp.bfloat16),
            wblk.astype(jnp.bfloat16),
            bias_pack,
            whh_blk.astype(jnp.bfloat16),
            params["w_out"].astype(jnp.bfloat16),
            params["b_out"])

    out_shapes = (jax.ShapeDtypeStruct((T * B, O), jnp.float32),   # yout (time-major, flat)
                  jax.ShapeDtypeStruct((2 * B, H), jnp.float32),   # h_n  (fwd rows, bwd rows)
                  jax.ShapeDtypeStruct((2 * B, H), jnp.float32))   # c_n

    yout2d, hn2d, cn2d = pl.pallas_call(
        _rnn_kernel,
        out_shape=out_shapes,
        grid=(1,),
        in_specs=[_full_spec(a.shape) for a in args],
        out_specs=tuple(_full_spec(s.shape) for s in out_shapes),
        scratch_shapes=[
            pltpu.VMEM((T * 2 * B, G), jnp.float32),  # packed gate pre-activations
            pltpu.VMEM((T * B, H), jnp.float32),      # forward hidden trace
            pltpu.VMEM((T * B, H), jnp.float32),      # backward hidden trace
        ],
        compiler_params=pltpu.CompilerParams(dimension_semantics=("arbitrary",)),
    )(*args)

    yout = jnp.transpose(yout2d.reshape(T, B, O), (1, 0, 2))       # (B, T, O)
    h_n = hn2d.reshape(2, B, H)
    c_n = cn2d.reshape(2, B, H)
    return yout, (h_n, c_n)


def make_params(key, insize=300, hsize=128, outsize=8):
    ks = jax.random.split(key, 8)
    s = 0.05
    p = {
        "w_in": s * jax.random.normal(ks[0], (insize, hsize), jnp.float32),
        "b_in": s * jax.random.normal(ks[1], (1, hsize), jnp.float32),
        "wih_f": s * jax.random.normal(ks[2], (hsize, 4 * hsize), jnp.float32),
        "whh_f": s * jax.random.normal(ks[3], (hsize, 4 * hsize), jnp.float32),
        "b_f": s * jax.random.normal(ks[4], (1, 4 * hsize), jnp.float32),  # b_ih + b_hh folded
        "wih_b": s * jax.random.normal(ks[5], (hsize, 4 * hsize), jnp.float32),
        "whh_b": s * jax.random.normal(ks[6], (hsize, 4 * hsize), jnp.float32),
        "b_b": s * jax.random.normal(ks[7], (1, 4 * hsize), jnp.float32),
        "w_out": s * jax.random.normal(jax.random.fold_in(key, 100),
                                       (2 * hsize, outsize), jnp.float32),
        "b_out": s * jax.random.normal(jax.random.fold_in(key, 101),
                                       (1, outsize), jnp.float32),
    }
    return p


def rnn_reference(x, p):
    """Pure-JAX f32 reference matching PyTorch semantics, for correctness check."""
    B, T, I = x.shape
    H = p["whh_f"].shape[0]
    hin = jnp.einsum("bti,ih->bth", x, p["w_in"]) + p["b_in"]

    def run_dir(wih, whh, b, reverse):
        gx = jnp.einsum("bth,hg->btg", hin, wih) + b
        h = jnp.zeros((B, H), jnp.float32)
        c = jnp.zeros((B, H), jnp.float32)
        outs = [None] * T
        order = range(T - 1, -1, -1) if reverse else range(T)
        for t in order:
            gates = gx[:, t] + h @ whh
            i = jax.nn.sigmoid(gates[:, :H])
            f = jax.nn.sigmoid(gates[:, H:2 * H])
            g = jnp.tanh(gates[:, 2 * H:3 * H])
            o = jax.nn.sigmoid(gates[:, 3 * H:4 * H])
            c = f * c + i * g
            h = o * jnp.tanh(c)
            outs[t] = h
        return jnp.stack(outs, axis=1), h, c

    hout_f, hT_f, cT_f = run_dir(p["wih_f"], p["whh_f"], p["b_f"], reverse=False)
    hout_b, hT_b, cT_b = run_dir(p["wih_b"], p["whh_b"], p["b_b"], reverse=True)
    hout = jnp.concatenate([hout_f, hout_b], axis=-1)
    logits = jnp.einsum("btk,ko->bto", hout, p["w_out"]) + p["b_out"]
    yout = jax.nn.softmax(logits, axis=-1)
    h_n = jnp.stack([hT_f, hT_b], axis=0)
    c_n = jnp.stack([cT_f, cT_b], axis=0)
    return yout, h_n, c_n


if __name__ == "__main__":
    B, T, INSIZE, HSIZE, OUTSIZE = 2, 8, 300, 128, 8
    key = jax.random.PRNGKey(0)
    kp, kx = jax.random.split(key)
    params = make_params(kp, insize=INSIZE, hsize=HSIZE, outsize=OUTSIZE)
    x = jax.random.normal(kx, (B, T, INSIZE), jnp.float32)

    yout, (h_n, c_n) = rnn_forward(x, params)
    jax.block_until_ready((yout, h_n, c_n))

    # correctness check against a pure-JAX f32 reference
    # (tolerances account for bf16 MXU operands with f32 accumulation and the
    #  folded input-Linear weights).
    y_ref, h_ref, c_ref = rnn_reference(x, params)
    assert yout.shape == (B, T, OUTSIZE)
    assert h_n.shape == (2, B, HSIZE) and c_n.shape == (2, B, HSIZE)
    assert jnp.allclose(yout, y_ref, atol=5e-3, rtol=5e-3), float(jnp.max(jnp.abs(yout - y_ref)))
    assert jnp.allclose(h_n, h_ref, atol=1e-2, rtol=1e-2), float(jnp.max(jnp.abs(h_n - h_ref)))
    assert jnp.allclose(c_n, c_ref, atol=1e-2, rtol=1e-2), float(jnp.max(jnp.abs(c_n - c_ref)))
    assert jnp.allclose(jnp.sum(yout, axis=-1), jnp.ones((B, T)), atol=2e-3)

    print("KERNEL_OK")
</pallas_src>

<mosaic_0001>
module attributes {stable_mosaic.version = 11 : i64} {
  func.func @_rnn_kernel(%arg0: i32, %arg1: memref<32x768xbf16, #tpu.memory_space<vmem>>, %arg2: memref<768x512xbf16, #tpu.memory_space<vmem>>, %arg3: memref<32x512xf32, #tpu.memory_space<vmem>>, %arg4: memref<256x512xbf16, #tpu.memory_space<vmem>>, %arg5: memref<256x8xbf16, #tpu.memory_space<vmem>>, %arg6: memref<1x8xf32, #tpu.memory_space<vmem>>, %arg7: memref<16x8xf32, #tpu.memory_space<vmem>>, %arg8: memref<4x128xf32, #tpu.memory_space<vmem>>, %arg9: memref<4x128xf32, #tpu.memory_space<vmem>>, %arg10: memref<32x512xf32, #tpu.memory_space<vmem>>, %arg11: memref<16x128xf32, #tpu.memory_space<vmem>>, %arg12: memref<16x128xf32, #tpu.memory_space<vmem>>) attributes {dimension_semantics = [#tpu.dimension_semantics<arbitrary>], iteration_bounds = array<i64: 1>, scalar_prefetch = 0 : i64, scratch_operands = 3 : i64, tpu.core_type = #tpu.core_type<tc>, window_params = [{pipeline_mode = #tpu.pipeline_mode<synchronous>, transform_indices = @transform_0, window_bounds = array<i64: 32, 768>}, {pipeline_mode = #tpu.pipeline_mode<synchronous>, transform_indices = @transform_1, window_bounds = array<i64: 768, 512>}, {pipeline_mode = #tpu.pipeline_mode<synchronous>, transform_indices = @transform_2, window_bounds = array<i64: 32, 512>}, {pipeline_mode = #tpu.pipeline_mode<synchronous>, transform_indices = @transform_3, window_bounds = array<i64: 256, 512>}, {pipeline_mode = #tpu.pipeline_mode<synchronous>, transform_indices = @transform_4, window_bounds = array<i64: 256, 8>}, {pipeline_mode = #tpu.pipeline_mode<synchronous>, transform_indices = @transform_5, window_bounds = array<i64: 1, 8>}, {pipeline_mode = #tpu.pipeline_mode<synchronous>, transform_indices = @transform_6, window_bounds = array<i64: 16, 8>}, {pipeline_mode = #tpu.pipeline_mode<synchronous>, transform_indices = @transform_7, window_bounds = array<i64: 4, 128>}, {pipeline_mode = #tpu.pipeline_mode<synchronous>, transform_indices = @transform_8, window_bounds = array<i64: 4, 128>}]} {
    %c0 = arith.constant 0 : index
    %c0_0 = arith.constant 0 : index
    %0 = vector.load %arg1[%c0, %c0_0] : memref<32x768xbf16, #tpu.memory_space<vmem>>, vector<32x768xbf16>
    %c0_1 = arith.constant 0 : index
    %c0_2 = arith.constant 0 : index
    %1 = vector.load %arg2[%c0_1, %c0_2] : memref<768x512xbf16, #tpu.memory_space<vmem>>, vector<768x512xbf16>
    %cst = arith.constant dense<0.000000e+00> : vector<32x512xf32>
    %2 = tpu.matmul %0, %1, %cst {dimension_numbers = #tpu.dot_dimension_numbers<[1], [0], [0], [1], [0, 0, 1, 1], [], []>} : vector<32x768xbf16>, vector<768x512xbf16>, vector<32x512xf32> -> vector<32x512xf32>
    %c0_3 = arith.constant 0 : index
    %c0_4 = arith.constant 0 : index
    %3 = vector.load %arg3[%c0_3, %c0_4] : memref<32x512xf32, #tpu.memory_space<vmem>>, vector<32x512xf32>
    %4 = arith.addf %2, %3 : vector<32x512xf32>
    %c0_5 = arith.constant 0 : index
    %c0_6 = arith.constant 0 : index
    %5 = vector.load %arg10[%c0_5, %c0_6] : memref<32x512xf32, #tpu.memory_space<vmem>>, vector<32x512xf32>
    tpu.vector_store %arg10[%c0_5, %c0_6], %4 {strides = array<i32>} : memref<32x512xf32, #tpu.memory_space<vmem>>, vector<32x512xf32>,
    %c0_7 = arith.constant 0 : index
    %c0_8 = arith.constant 0 : index
    %6 = vector.load %arg4[%c0_7, %c0_8] : memref<256x512xbf16, #tpu.memory_space<vmem>>, vector<256x512xbf16>
    %7 = tpu.iota {dimensions = array<i32: 0>} : vector<4x256xi32>
    %8 = tpu.iota {dimensions = array<i32: 1>} : vector<4x256xi32>
    %c2_i32 = arith.constant 2 : i32
    %9 = vector.broadcast %c2_i32 : i32 to vector<4x256xi32>
    %10 = arith.cmpi slt, %7, %9 : vector<4x256xi32>
    %c128_i32 = arith.constant 128 : i32
    %11 = vector.broadcast %c128_i32 : i32 to vector<4x256xi32>
    %12 = arith.cmpi slt, %8, %11 : vector<4x256xi32>
    %13 = arith.xori %10, %12 : vector<4x256xi1>
    %cst_9 = arith.constant dense<true> : vector<4x256xi1>
    %14 = arith.xori %13, %cst_9 : vector<4x256xi1>
    %15 = arith.extui %14 : vector<4x256xi1> to vector<4x256xi32>
    %16 = arith.sitofp %15 : vector<4x256xi32> to vector<4x256xf32>
    %cst_10 = arith.constant 0.000000e+00 : f32
    %17 = vector.broadcast %cst_10 : f32 to vector<4x256xf32>
    %cst_11 = arith.constant 0.000000e+00 : f32
    %18 = vector.broadcast %cst_11 : f32 to vector<4x128xf32>
    %c0_i32 = arith.constant 0 : i32
    %19 = arith.truncf %17 : vector<4x256xf32> to vector<4x256xbf16>
    %cst_12 = arith.constant dense<0.000000e+00> : vector<4x512xf32>
    %20 = tpu.matmul %19, %6, %cst_12 {dimension_numbers = #tpu.dot_dimension_numbers<[1], [0], [0], [1], [0, 0, 1, 1], [], []>} : vector<4x256xbf16>, vector<256x512xbf16>, vector<4x512xf32> -> vector<4x512xf32>
    %c4_i32 = arith.constant 4 : i32
    %21 = arith.muli %c0_i32, %c4_i32 : i32
    %22 = arith.index_cast %21 : i32 to index
    %c0_13 = arith.constant 0 : index
    %23 = vector.load %arg10[%22, %c0_13] : memref<32x512xf32, #tpu.memory_space<vmem>>, vector<4x512xf32>
    %24 = arith.addf %23, %20 : vector<4x512xf32>
    %25 = vector.extract_strided_slice %24 {offsets = [0, 0], sizes = [4, 128], strides = [1, 1]} : vector<4x512xf32> to vector<4x128xf32>
    %26 = arith.negf %25 : vector<4x128xf32>
    %27 = math.exp %26 : vector<4x128xf32>
    %cst_14 = arith.constant 1.000000e+00 : f32
    %28 = vector.broadcast %cst_14 : f32 to vector<4x128xf32>
    %29 = arith.addf %28, %27 : vector<4x128xf32>
    %30 = arith.divf %28, %29 : vector<4x128xf32>
    %31 = vector.extract_strided_slice %24 {offsets = [0, 128], sizes = [4, 128], strides = [1, 1]} : vector<4x512xf32> to vector<4x128xf32>
    %32 = arith.negf %31 : vector<4x128xf32>
    %33 = math.exp %32 : vector<4x128xf32>
    %cst_15 = arith.constant 1.000000e+00 : f32
    %34 = vector.broadcast %cst_15 : f32 to vector<4x128xf32>
    %35 = arith.addf %34, %33 : vector<4x128xf32>
    %36 = arith.divf %34, %35 : vector<4x128xf32>
    %37 = vector.extract_strided_slice %24 {offsets = [0, 256], sizes = [4, 128], strides = [1, 1]} : vector<4x512xf32> to vector<4x128xf32>
    %38 = math.tanh %37 : vector<4x128xf32>
    %39 = vector.extract_strided_slice %24 {offsets = [0, 384], sizes = [4, 128], strides = [1, 1]} : vector<4x512xf32> to vector<4x128xf32>
    %40 = arith.negf %39 : vector<4x128xf32>
    %41 = math.exp %40 : vector<4x128xf32>
    %cst_16 = arith.constant 1.000000e+00 : f32
    %42 = vector.broadcast %cst_16 : f32 to vector<4x128xf32>
    %43 = arith.addf %42, %41 : vector<4x128xf32>
    %44 = arith.divf %42, %43 : vector<4x128xf32>
    %45 = arith.mulf %36, %18 : vector<4x128xf32>
    %46 = arith.mulf %30, %38 : vector<4x128xf32>
    %47 = arith.addf %45, %46 : vector<4x128xf32>
    %48 = math.tanh %47 : vector<4x128xf32>
    %49 = arith.mulf %44, %48 : vector<4x128xf32>
    %50 = vector.extract_strided_slice %49 {offsets = [0, 0], sizes = [2, 128], strides = [1, 1]} : vector<4x128xf32> to vector<2x128xf32>
    %c2_i32_17 = arith.constant 2 : i32
    %51 = arith.muli %c0_i32, %c2_i32_17 : i32
    %52 = arith.index_cast %51 : i32 to index
    %c0_18 = arith.constant 0 : index
    %53 = vector.load %arg11[%52, %c0_18] : memref<16x128xf32, #tpu.memory_space<vmem>>, vector<2x128xf32>
    tpu.vector_store %arg11[%52, %c0_18], %50 {strides = array<i32>} : memref<16x128xf32, #tpu.memory_space<vmem>>, vector<2x128xf32>,
    %54 = vector.extract_strided_slice %49 {offsets = [2, 0], sizes = [2, 128], strides = [1, 1]} : vector<4x128xf32> to vector<2x128xf32>
    %c7_i32 = arith.constant 7 : i32
    %55 = arith.subi %c7_i32, %c0_i32 : i32
    %c2_i32_19 = arith.constant 2 : i32
    %56 = arith.muli %55, %c2_i32_19 : i32
    %57 = arith.index_cast %56 : i32 to index
    %c0_20 = arith.constant 0 : index
    %58 = vector.load %arg12[%57, %c0_20] : memref<16x128xf32, #tpu.memory_space<vmem>>, vector<2x128xf32>
    tpu.vector_store %arg12[%57, %c0_20], %54 {strides = array<i32>} : memref<16x128xf32, #tpu.memory_space<vmem>>, vector<2x128xf32>,
    %59 = tpu.concatenate %49, %49 in 1 : vector<4x128xf32>, vector<4x128xf32> -> vector<4x256xf32>
    %60 = arith.mulf %59, %16 : vector<4x256xf32>
    %c1_i32 = arith.constant 1 : i32
    %61 = arith.truncf %60 : vector<4x256xf32> to vector<4x256xbf16>
    %cst_21 = arith.constant dense<0.000000e+00> : vector<4x512xf32>
    %62 = tpu.matmul %61, %6, %cst_21 {dimension_numbers = #tpu.dot_dimension_numbers<[1], [0], [0], [1], [0, 0, 1, 1], [], []>} : vector<4x256xbf16>, vector<256x512xbf16>, vector<4x512xf32> -> vector<4x512xf32>
    %c4_i32_22 = arith.constant 4 : i32
    %63 = arith.muli %c1_i32, %c4_i32_22 : i32
    %64 = arith.index_cast %63 : i32 to index
    %c0_23 = arith.constant 0 : index
    %65 = vector.load %arg10[%64, %c0_23] : memref<32x512xf32, #tpu.memory_space<vmem>>, vector<4x512xf32>
    %66 = arith.addf %65, %62 : vector<4x512xf32>
    %67 = vector.extract_strided_slice %66 {offsets = [0, 0], sizes = [4, 128], strides = [1, 1]} : vector<4x512xf32> to vector<4x128xf32>
    %68 = arith.negf %67 : vector<4x128xf32>
    %69 = math.exp %68 : vector<4x128xf32>
    %cst_24 = arith.constant 1.000000e+00 : f32
    %70 = vector.broadcast %cst_24 : f32 to vector<4x128xf32>
    %71 = arith.addf %70, %69 : vector<4x128xf32>
    %72 = arith.divf %70, %71 : vector<4x128xf32>
    %73 = vector.extract_strided_slice %66 {offsets = [0, 128], sizes = [4, 128], strides = [1, 1]} : vector<4x512xf32> to vector<4x128xf32>
    %74 = arith.negf %73 : vector<4x128xf32>
    %75 = math.exp %74 : vector<4x128xf32>
    %cst_25 = arith.constant 1.000000e+00 : f32
    %76 = vector.broadcast %cst_25 : f32 to vector<4x128xf32>
    %77 = arith.addf %76, %75 : vector<4x128xf32>
    %78 = arith.divf %76, %77 : vector<4x128xf32>
    %79 = vector.extract_strided_slice %66 {offsets = [0, 256], sizes = [4, 128], strides = [1, 1]} : vector<4x512xf32> to vector<4x128xf32>
    %80 = math.tanh %79 : vector<4x128xf32>
    %81 = vector.extract_strided_slice %66 {offsets = [0, 384], sizes = [4, 128], strides = [1, 1]} : vector<4x512xf32> to vector<4x128xf32>
    %82 = arith.negf %81 : vector<4x128xf32>
    %83 = math.exp %82 : vector<4x128xf32>
    %cst_26 = arith.constant 1.000000e+00 : f32
    %84 = vector.broadcast %cst_26 : f32 to vector<4x128xf32>
    %85 = arith.addf %84, %83 : vector<4x128xf32>
    %86 = arith.divf %84, %85 : vector<4x128xf32>
    %87 = arith.mulf %78, %47 : vector<4x128xf32>
    %88 = arith.mulf %72, %80 : vector<4x128xf32>
    %89 = arith.addf %87, %88 : vector<4x128xf32>
    %90 = math.tanh %89 : vector<4x128xf32>
    %91 = arith.mulf %86, %90 : vector<4x128xf32>
    %92 = vector.extract_strided_slice %91 {offsets = [0, 0], sizes = [2, 128], strides = [1, 1]} : vector<4x128xf32> to vector<2x128xf32>
    %c2_i32_27 = arith.constant 2 : i32
    %93 = arith.muli %c1_i32, %c2_i32_27 : i32
    %94 = arith.index_cast %93 : i32 to index
    %c0_28 = arith.constant 0 : index
    %95 = vector.load %arg11[%94, %c0_28] : memref<16x128xf32, #tpu.memory_space<vmem>>, vector<2x128xf32>
    tpu.vector_store %arg11[%94, %c0_28], %92 {strides = array<i32>} : memref<16x128xf32, #tpu.memory_space<vmem>>, vector<2x128xf32>,
    %96 = vector.extract_strided_slice %91 {offsets = [2, 0], sizes = [2, 128], strides = [1, 1]} : vector<4x128xf32> to vector<2x128xf32>
    %c7_i32_29 = arith.constant 7 : i32
    %97 = arith.subi %c7_i32_29, %c1_i32 : i32
    %c2_i32_30 = arith.constant 2 : i32
    %98 = arith.muli %97, %c2_i32_30 : i32
    %99 = arith.index_cast %98 : i32 to index
    %c0_31 = arith.constant 0 : index
    %100 = vector.load %arg12[%99, %c0_31] : memref<16x128xf32, #tpu.memory_space<vmem>>, vector<2x128xf32>
    tpu.vector_store %arg12[%99, %c0_31], %96 {strides = array<i32>} : memref<16x128xf32, #tpu.memory_space<vmem>>, vector<2x128xf32>,
    %101 = tpu.concatenate %91, %91 in 1 : vector<4x128xf32>, vector<4x128xf32> -> vector<4x256xf32>
    %102 = arith.mulf %101, %16 : vector<4x256xf32>
    %c2_i32_32 = arith.constant 2 : i32
    %103 = arith.truncf %102 : vector<4x256xf32> to vector<4x256xbf16>
    %cst_33 = arith.constant dense<0.000000e+00> : vector<4x512xf32>
    %104 = tpu.matmul %103, %6, %cst_33 {dimension_numbers = #tpu.dot_dimension_numbers<[1], [0], [0], [1], [0, 0, 1, 1], [], []>} : vector<4x256xbf16>, vector<256x512xbf16>, vector<4x512xf32> -> vector<4x512xf32>
    %c4_i32_34 = arith.constant 4 : i32
    %105 = arith.muli %c2_i32_32, %c4_i32_34 : i32
    %106 = arith.index_cast %105 : i32 to index
    %c0_35 = arith.constant 0 : index
    %107 = vector.load %arg10[%106, %c0_35] : memref<32x512xf32, #tpu.memory_space<vmem>>, vector<4x512xf32>
    %108 = arith.addf %107, %104 : vector<4x512xf32>
    %109 = vector.extract_strided_slice %108 {offsets = [0, 0], sizes = [4, 128], strides = [1, 1]} : vector<4x512xf32> to vector<4x128xf32>
    %110 = arith.negf %109 : vector<4x128xf32>
    %111 = math.exp %110 : vector<4x128xf32>
    %cst_36 = arith.constant 1.000000e+00 : f32
    %112 = vector.broadcast %cst_36 : f32 to vector<4x128xf32>
    %113 = arith.addf %112, %111 : vector<4x128xf32>
    %114 = arith.divf %112, %113 : vector<4x128xf32>
    %115 = vector.extract_strided_slice %108 {offsets = [0, 128], sizes = [4, 128], strides = [1, 1]} : vector<4x512xf32> to vector<4x128xf32>
    %116 = arith.negf %115 : vector<4x128xf32>
    %117 = math.exp %116 : vector<4x128xf32>
    %cst_37 = arith.constant 1.000000e+00 : f32
    %118 = vector.broadcast %cst_37 : f32 to vector<4x128xf32>
    %119 = arith.addf %118, %117 : vector<4x128xf32>
    %120 = arith.divf %118, %119 : vector<4x128xf32>
    %121 = vector.extract_strided_slice %108 {offsets = [0, 256], sizes = [4, 128], strides = [1, 1]} : vector<4x512xf32> to vector<4x128xf32>
    %122 = math.tanh %121 : vector<4x128xf32>
    %123 = vector.extract_strided_slice %108 {offsets = [0, 384], sizes = [4, 128], strides = [1, 1]} : vector<4x512xf32> to vector<4x128xf32>
    %124 = arith.negf %123 : vector<4x128xf32>
    %125 = math.exp %124 : vector<4x128xf32>
    %cst_38 = arith.constant 1.000000e+00 : f32
    %126 = vector.broadcast %cst_38 : f32 to vector<4x128xf32>
    %127 = arith.addf %126, %125 : vector<4x128xf32>
    %128 = arith.divf %126, %127 : vector<4x128xf32>
    %129 = arith.mulf %120, %89 : vector<4x128xf32>
    %130 = arith.mulf %114, %122 : vector<4x128xf32>
    %131 = arith.addf %129, %130 : vector<4x128xf32>
    %132 = math.tanh %131 : vector<4x128xf32>
    %133 = arith.mulf %128, %132 : vector<4x128xf32>
    %134 = vector.extract_strided_slice %133 {offsets = [0, 0], sizes = [2, 128], strides = [1, 1]} : vector<4x128xf32> to vector<2x128xf32>
    %c2_i32_39 = arith.constant 2 : i32
    %135 = arith.muli %c2_i32_32, %c2_i32_39 : i32
    %136 = arith.index_cast %135 : i32 to index
    %c0_40 = arith.constant 0 : index
    %137 = vector.load %arg11[%136, %c0_40] : memref<16x128xf32, #tpu.memory_space<vmem>>, vector<2x128xf32>
    tpu.vector_store %arg11[%136, %c0_40], %134 {strides = array<i32>} : memref<16x128xf32, #tpu.memory_space<vmem>>, vector<2x128xf32>,
    %138 = vector.extract_strided_slice %133 {offsets = [2, 0], sizes = [2, 128], strides = [1, 1]} : vector<4x128xf32> to vector<2x128xf32>
    %c7_i32_41 = arith.constant 7 : i32
    %139 = arith.subi %c7_i32_41, %c2_i32_32 : i32
    %c2_i32_42 = arith.constant 2 : i32
    %140 = arith.muli %139, %c2_i32_42 : i32
    %141 = arith.index_cast %140 : i32 to index
    %c0_43 = arith.constant 0 : index
    %142 = vector.load %arg12[%141, %c0_43] : memref<16x128xf32, #tpu.memory_space<vmem>>, vector<2x128xf32>
    tpu.vector_store %arg12[%141, %c0_43], %138 {strides = array<i32>} : memref<16x128xf32, #tpu.memory_space<vmem>>, vector<2x128xf32>,
    %143 = tpu.concatenate %133, %133 in 1 : vector<4x128xf32>, vector<4x128xf32> -> vector<4x256xf32>
    %144 = arith.mulf %143, %16 : vector<4x256xf32>
    %c3_i32 = arith.constant 3 : i32
    %145 = arith.truncf %144 : vector<4x256xf32> to vector<4x256xbf16>
    %cst_44 = arith.constant dense<0.000000e+00> : vector<4x512xf32>
    %146 = tpu.matmul %145, %6, %cst_44 {dimension_numbers = #tpu.dot_dimension_numbers<[1], [0], [0], [1], [0, 0, 1, 1], [], []>} : vector<4x256xbf16>, vector<256x512xbf16>, vector<4x512xf32> -> vector<4x512xf32>
    %c4_i32_45 = arith.constant 4 : i32
    %147 = arith.muli %c3_i32, %c4_i32_45 : i32
    %148 = arith.index_cast %147 : i32 to index
    %c0_46 = arith.constant 0 : index
    %149 = vector.load %arg10[%148, %c0_46] : memref<32x512xf32, #tpu.memory_space<vmem>>, vector<4x512xf32>
    %150 = arith.addf %149, %146 : vector<4x512xf32>
    %151 = vector.extract_strided_slice %150 {offsets = [0, 0], sizes = [4, 128], strides = [1, 1]} : vector<4x512xf32> to vector<4x128xf32>
    %152 = arith.negf %151 : vector<4x128xf32>
    %153 = math.exp %152 : vector<4x128xf32>
    %cst_47 = arith.constant 1.000000e+00 : f32
    %154 = vector.broadcast %cst_47 : f32 to vector<4x128xf32>
    %155 = arith.addf %154, %153 : vector<4x128xf32>
    %156 = arith.divf %154, %155 : vector<4x128xf32>
    %157 = vector.extract_strided_slice %150 {offsets = [0, 128], sizes = [4, 128], strides = [1, 1]} : vector<4x512xf32> to vector<4x128xf32>
    %158 = arith.negf %157 : vector<4x128xf32>
    %159 = math.exp %158 : vector<4x128xf32>
    %cst_48 = arith.constant 1.000000e+00 : f32
    %160 = vector.broadcast %cst_48 : f32 to vector<4x128xf32>
    %161 = arith.addf %160, %159 : vector<4x128xf32>
    %162 = arith.divf %160, %161 : vector<4x128xf32>
    %163 = vector.extract_strided_slice %150 {offsets = [0, 256], sizes = [4, 128], strides = [1, 1]} : vector<4x512xf32> to vector<4x128xf32>
    %164 = math.tanh %163 : vector<4x128xf32>
    %165 = vector.extract_strided_slice %150 {offsets = [0, 384], sizes = [4, 128], strides = [1, 1]} : vector<4x512xf32> to vector<4x128xf32>
    %166 = arith.negf %165 : vector<4x128xf32>
    %167 = math.exp %166 : vector<4x128xf32>
    %cst_49 = arith.constant 1.000000e+00 : f32
    %168 = vector.broadcast %cst_49 : f32 to vector<4x128xf32>
    %169 = arith.addf %168, %167 : vector<4x128xf32>
    %170 = arith.divf %168, %169 : vector<4x128xf32>
    %171 = arith.mulf %162, %131 : vector<4x128xf32>
    %172 = arith.mulf %156, %164 : vector<4x128xf32>
    %173 = arith.addf %171, %172 : vector<4x128xf32>
    %174 = math.tanh %173 : vector<4x128xf32>
    %175 = arith.mulf %170, %174 : vector<4x128xf32>
    %176 = vector.extract_strided_slice %175 {offsets = [0, 0], sizes = [2, 128], strides = [1, 1]} : vector<4x128xf32> to vector<2x128xf32>
    %c2_i32_50 = arith.constant 2 : i32
    %177 = arith.muli %c3_i32, %c2_i32_50 : i32
    %178 = arith.index_cast %177 : i32 to index
    %c0_51 = arith.constant 0 : index
    %179 = vector.load %arg11[%178, %c0_51] : memref<16x128xf32, #tpu.memory_space<vmem>>, vector<2x128xf32>
    tpu.vector_store %arg11[%178, %c0_51], %176 {strides = array<i32>} : memref<16x128xf32, #tpu.memory_space<vmem>>, vector<2x128xf32>,
    %180 = vector.extract_strided_slice %175 {offsets = [2, 0], sizes = [2, 128], strides = [1, 1]} : vector<4x128xf32> to vector<2x128xf32>
    %c7_i32_52 = arith.constant 7 : i32
    %181 = arith.subi %c7_i32_52, %c3_i32 : i32
    %c2_i32_53 = arith.constant 2 : i32
    %182 = arith.muli %181, %c2_i32_53 : i32
    %183 = arith.index_cast %182 : i32 to index
    %c0_54 = arith.constant 0 : index
    %184 = vector.load %arg12[%183, %c0_54] : memref<16x128xf32, #tpu.memory_space<vmem>>, vector<2x128xf32>
    tpu.vector_store %arg12[%183, %c0_54], %180 {strides = array<i32>} : memref<16x128xf32, #tpu.memory_space<vmem>>, vector<2x128xf32>,
    %185 = tpu.concatenate %175, %175 in 1 : vector<4x128xf32>, vector<4x128xf32> -> vector<4x256xf32>
    %186 = arith.mulf %185, %16 : vector<4x256xf32>
    %c4_i32_55 = arith.constant 4 : i32
    %187 = arith.truncf %186 : vector<4x256xf32> to vector<4x256xbf16>
    %cst_56 = arith.constant dense<0.000000e+00> : vector<4x512xf32>
    %188 = tpu.matmul %187, %6, %cst_56 {dimension_numbers = #tpu.dot_dimension_numbers<[1], [0], [0], [1], [0, 0, 1, 1], [], []>} : vector<4x256xbf16>, vector<256x512xbf16>, vector<4x512xf32> -> vector<4x512xf32>
    %c4_i32_57 = arith.constant 4 : i32
    %189 = arith.muli %c4_i32_55, %c4_i32_57 : i32
    %190 = arith.index_cast %189 : i32 to index
    %c0_58 = arith.constant 0 : index
    %191 = vector.load %arg10[%190, %c0_58] : memref<32x512xf32, #tpu.memory_space<vmem>>, vector<4x512xf32>
    %192 = arith.addf %191, %188 : vector<4x512xf32>
    %193 = vector.extract_strided_slice %192 {offsets = [0, 0], sizes = [4, 128], strides = [1, 1]} : vector<4x512xf32> to vector<4x128xf32>
    %194 = arith.negf %193 : vector<4x128xf32>
    %195 = math.exp %194 : vector<4x128xf32>
    %cst_59 = arith.constant 1.000000e+00 : f32
    %196 = vector.broadcast %cst_59 : f32 to vector<4x128xf32>
    %197 = arith.addf %196, %195 : vector<4x128xf32>
    %198 = arith.divf %196, %197 : vector<4x128xf32>
    %199 = vector.extract_strided_slice %192 {offsets = [0, 128], sizes = [4, 128], strides = [1, 1]} : vector<4x512xf32> to vector<4x128xf32>
    %200 = arith.negf %199 : vector<4x128xf32>
    %201 = math.exp %200 : vector<4x128xf32>
    %cst_60 = arith.constant 1.000000e+00 : f32
    %202 = vector.broadcast %cst_60 : f32 to vector<4x128xf32>
    %203 = arith.addf %202, %201 : vector<4x128xf32>
    %204 = arith.divf %202, %203 : vector<4x128xf32>
    %205 = vector.extract_strided_slice %192 {offsets = [0, 256], sizes = [4, 128], strides = [1, 1]} : vector<4x512xf32> to vector<4x128xf32>
    %206 = math.tanh %205 : vector<4x128xf32>
    %207 = vector.extract_strided_slice %192 {offsets = [0, 384], sizes = [4, 128], strides = [1, 1]} : vector<4x512xf32> to vector<4x128xf32>
    %208 = arith.negf %207 : vector<4x128xf32>
    %209 = math.exp %208 : vector<4x128xf32>
    %cst_61 = arith.constant 1.000000e+00 : f32
    %210 = vector.broadcast %cst_61 : f32 to vector<4x128xf32>
    %211 = arith.addf %210, %209 : vector<4x128xf32>
    %212 = arith.divf %210, %211 : vector<4x128xf32>
    %213 = arith.mulf %204, %173 : vector<4x128xf32>
    %214 = arith.mulf %198, %206 : vector<4x128xf32>
    %215 = arith.addf %213, %214 : vector<4x128xf32>
    %216 = math.tanh %215 : vector<4x128xf32>
    %217 = arith.mulf %212, %216 : vector<4x128xf32>
    %218 = vector.extract_strided_slice %217 {offsets = [0, 0], sizes = [2, 128], strides = [1, 1]} : vector<4x128xf32> to vector<2x128xf32>
    %c2_i32_62 = arith.constant 2 : i32
    %219 = arith.muli %c4_i32_55, %c2_i32_62 : i32
    %220 = arith.index_cast %219 : i32 to index
    %c0_63 = arith.constant 0 : index
    %221 = vector.load %arg11[%220, %c0_63] : memref<16x128xf32, #tpu.memory_space<vmem>>, vector<2x128xf32>
    tpu.vector_store %arg11[%220, %c0_63], %218 {strides = array<i32>} : memref<16x128xf32, #tpu.memory_space<vmem>>, vector<2x128xf32>,
    %222 = vector.extract_strided_slice %217 {offsets = [2, 0], sizes = [2, 128], strides = [1, 1]} : vector<4x128xf32> to vector<2x128xf32>
    %c7_i32_64 = arith.constant 7 : i32
    %223 = arith.subi %c7_i32_64, %c4_i32_55 : i32
    %c2_i32_65 = arith.constant 2 : i32
    %224 = arith.muli %223, %c2_i32_65 : i32
    %225 = arith.index_cast %224 : i32 to index
    %c0_66 = arith.constant 0 : index
    %226 = vector.load %arg12[%225, %c0_66] : memref<16x128xf32, #tpu.memory_space<vmem>>, vector<2x128xf32>
    tpu.vector_store %arg12[%225, %c0_66], %222 {strides = array<i32>} : memref<16x128xf32, #tpu.memory_space<vmem>>, vector<2x128xf32>,
    %227 = tpu.concatenate %217, %217 in 1 : vector<4x128xf32>, vector<4x128xf32> -> vector<4x256xf32>
    %228 = arith.mulf %227, %16 : vector<4x256xf32>
    %c5_i32 = arith.constant 5 : i32
    %229 = arith.truncf %228 : vector<4x256xf32> to vector<4x256xbf16>
    %cst_67 = arith.constant dense<0.000000e+00> : vector<4x512xf32>
    %230 = tpu.matmul %229, %6, %cst_67 {dimension_numbers = #tpu.dot_dimension_numbers<[1], [0], [0], [1], [0, 0, 1, 1], [], []>} : vector<4x256xbf16>, vector<256x512xbf16>, vector<4x512xf32> -> vector<4x512xf32>
    %c4_i32_68 = arith.constant 4 : i32
    %231 = arith.muli %c5_i32, %c4_i32_68 : i32
    %232 = arith.index_cast %231 : i32 to index
    %c0_69 = arith.constant 0 : index
    %233 = vector.load %arg10[%232, %c0_69] : memref<32x512xf32, #tpu.memory_space<vmem>>, vector<4x512xf32>
    %234 = arith.addf %233, %230 : vector<4x512xf32>
    %235 = vector.extract_strided_slice %234 {offsets = [0, 0], sizes = [4, 128], strides = [1, 1]} : vector<4x512xf32> to vector<4x128xf32>
    %236 = arith.negf %235 : vector<4x128xf32>
    %237 = math.exp %236 : vector<4x128xf32>
    %cst_70 = arith.constant 1.000000e+00 : f32
    %238 = vector.broadcast %cst_70 : f32 to vector<4x128xf32>
    %239 = arith.addf %238, %237 : vector<4x128xf32>
    %240 = arith.divf %238, %239 : vector<4x128xf32>
    %241 = vector.extract_strided_slice %234 {offsets = [0, 128], sizes = [4, 128], strides = [1, 1]} : vector<4x512xf32> to vector<4x128xf32>
    %242 = arith.negf %241 : vector<4x128xf32>
    %243 = math.exp %242 : vector<4x128xf32>
    %cst_71 = arith.constant 1.000000e+00 : f32
    %244 = vector.broadcast %cst_71 : f32 to vector<4x128xf32>
    %245 = arith.addf %244, %243 : vector<4x128xf32>
    %246 = arith.divf %244, %245 : vector<4x128xf32>
    %247 = vector.extract_strided_slice %234 {offsets = [0, 256], sizes = [4, 128], strides = [1, 1]} : vector<4x512xf32> to vector<4x128xf32>
    %248 = math.tanh %247 : vector<4x128xf32>
    %249 = vector.extract_strided_slice %234 {offsets = [0, 384], sizes = [4, 128], strides = [1, 1]} : vector<4x512xf32> to vector<4x128xf32>
    %250 = arith.negf %249 : vector<4x128xf32>
    %251 = math.exp %250 : vector<4x128xf32>
    %cst_72 = arith.constant 1.000000e+00 : f32
    %252 = vector.broadcast %cst_72 : f32 to vector<4x128xf32>
    %253 = arith.addf %252, %251 : vector<4x128xf32>
    %254 = arith.divf %252, %253 : vector<4x128xf32>
    %255 = arith.mulf %246, %215 : vector<4x128xf32>
    %256 = arith.mulf %240, %248 : vector<4x128xf32>
    %257 = arith.addf %255, %256 : vector<4x128xf32>
    %258 = math.tanh %257 : vector<4x128xf32>
    %259 = arith.mulf %254, %258 : vector<4x128xf32>
    %260 = vector.extract_strided_slice %259 {offsets = [0, 0], sizes = [2, 128], strides = [1, 1]} : vector<4x128xf32> to vector<2x128xf32>
    %c2_i32_73 = arith.constant 2 : i32
    %261 = arith.muli %c5_i32, %c2_i32_73 : i32
    %262 = arith.index_cast %261 : i32 to index
    %c0_74 = arith.constant 0 : index
    %263 = vector.load %arg11[%262, %c0_74] : memref<16x128xf32, #tpu.memory_space<vmem>>, vector<2x128xf32>
    tpu.vector_store %arg11[%262, %c0_74], %260 {strides = array<i32>} : memref<16x128xf32, #tpu.memory_space<vmem>>, vector<2x128xf32>,
    %264 = vector.extract_strided_slice %259 {offsets = [2, 0], sizes = [2, 128], strides = [1, 1]} : vector<4x128xf32> to vector<2x128xf32>
    %c7_i32_75 = arith.constant 7 : i32
    %265 = arith.subi %c7_i32_75, %c5_i32 : i32
    %c2_i32_76 = arith.constant 2 : i32
    %266 = arith.muli %265, %c2_i32_76 : i32
    %267 = arith.index_cast %266 : i32 to index
    %c0_77 = arith.constant 0 : index
    %268 = vector.load %arg12[%267, %c0_77] : memref<16x128xf32, #tpu.memory_space<vmem>>, vector<2x128xf32>
    tpu.vector_store %arg12[%267, %c0_77], %264 {strides = array<i32>} : memref<16x128xf32, #tpu.memory_space<vmem>>, vector<2x128xf32>,
    %269 = tpu.concatenate %259, %259 in 1 : vector<4x128xf32>, vector<4x128xf32> -> vector<4x256xf32>
    %270 = arith.mulf %269, %16 : vector<4x256xf32>
    %c6_i32 = arith.constant 6 : i32
    %271 = arith.truncf %270 : vector<4x256xf32> to vector<4x256xbf16>
    %cst_78 = arith.constant dense<0.000000e+00> : vector<4x512xf32>
    %272 = tpu.matmul %271, %6, %cst_78 {dimension_numbers = #tpu.dot_dimension_numbers<[1], [0], [0], [1], [0, 0, 1, 1], [], []>} : vector<4x256xbf16>, vector<256x512xbf16>, vector<4x512xf32> -> vector<4x512xf32>
    %c4_i32_79 = arith.constant 4 : i32
    %273 = arith.muli %c6_i32, %c4_i32_79 : i32
    %274 = arith.index_cast %273 : i32 to index
    %c0_80 = arith.constant 0 : index
    %275 = vector.load %arg10[%274, %c0_80] : memref<32x512xf32, #tpu.memory_space<vmem>>, vector<4x512xf32>
    %276 = arith.addf %275, %272 : vector<4x512xf32>
    %277 = vector.extract_strided_slice %276 {offsets = [0, 0], sizes = [4, 128], strides = [1, 1]} : vector<4x512xf32> to vector<4x128xf32>
    %278 = arith.negf %277 : vector<4x128xf32>
    %279 = math.exp %278 : vector<4x128xf32>
    %cst_81 = arith.constant 1.000000e+00 : f32
    %280 = vector.broadcast %cst_81 : f32 to vector<4x128xf32>
    %281 = arith.addf %280, %279 : vector<4x128xf32>
    %282 = arith.divf %280, %281 : vector<4x128xf32>
    %283 = vector.extract_strided_slice %276 {offsets = [0, 128], sizes = [4, 128], strides = [1, 1]} : vector<4x512xf32> to vector<4x128xf32>
    %284 = arith.negf %283 : vector<4x128xf32>
    %285 = math.exp %284 : vector<4x128xf32>
    %cst_82 = arith.constant 1.000000e+00 : f32
    %286 = vector.broadcast %cst_82 : f32 to vector<4x128xf32>
    %287 = arith.addf %286, %285 : vector<4x128xf32>
    %288 = arith.divf %286, %287 : vector<4x128xf32>
    %289 = vector.extract_strided_slice %276 {offsets = [0, 256], sizes = [4, 128], strides = [1, 1]} : vector<4x512xf32> to vector<4x128xf32>
    %290 = math.tanh %289 : vector<4x128xf32>
    %291 = vector.extract_strided_slice %276 {offsets = [0, 384], sizes = [4, 128], strides = [1, 1]} : vector<4x512xf32> to vector<4x128xf32>
    %292 = arith.negf %291 : vector<4x128xf32>
    %293 = math.exp %292 : vector<4x128xf32>
    %cst_83 = arith.constant 1.000000e+00 : f32
    %294 = vector.broadcast %cst_83 : f32 to vector<4x128xf32>
    %295 = arith.addf %294, %293 : vector<4x128xf32>
    %296 = arith.divf %294, %295 : vector<4x128xf32>
    %297 = arith.mulf %288, %257 : vector<4x128xf32>
    %298 = arith.mulf %282, %290 : vector<4x128xf32>
    %299 = arith.addf %297, %298 : vector<4x128xf32>
    %300 = math.tanh %299 : vector<4x128xf32>
    %301 = arith.mulf %296, %300 : vector<4x128xf32>
    %302 = vector.extract_strided_slice %301 {offsets = [0, 0], sizes = [2, 128], strides = [1, 1]} : vector<4x128xf32> to vector<2x128xf32>
    %c2_i32_84 = arith.constant 2 : i32
    %303 = arith.muli %c6_i32, %c2_i32_84 : i32
    %304 = arith.index_cast %303 : i32 to index
    %c0_85 = arith.constant 0 : index
    %305 = vector.load %arg11[%304, %c0_85] : memref<16x128xf32, #tpu.memory_space<vmem>>, vector<2x128xf32>
    tpu.vector_store %arg11[%304, %c0_85], %302 {strides = array<i32>} : memref<16x128xf32, #tpu.memory_space<vmem>>, vector<2x128xf32>,
    %306 = vector.extract_strided_slice %301 {offsets = [2, 0], sizes = [2, 128], strides = [1, 1]} : vector<4x128xf32> to vector<2x128xf32>
    %c7_i32_86 = arith.constant 7 : i32
    %307 = arith.subi %c7_i32_86, %c6_i32 : i32
    %c2_i32_87 = arith.constant 2 : i32
    %308 = arith.muli %307, %c2_i32_87 : i32
    %309 = arith.index_cast %308 : i32 to index
    %c0_88 = arith.constant 0 : index
    %310 = vector.load %arg12[%309, %c0_88] : memref<16x128xf32, #tpu.memory_space<vmem>>, vector<2x128xf32>
    tpu.vector_store %arg12[%309, %c0_88], %306 {strides = array<i32>} : memref<16x128xf32, #tpu.memory_space<vmem>>, vector<2x128xf32>,
    %311 = tpu.concatenate %301, %301 in 1 : vector<4x128xf32>, vector<4x128xf32> -> vector<4x256xf32>
    %312 = arith.mulf %311, %16 : vector<4x256xf32>
    %c7_i32_89 = arith.constant 7 : i32
    %313 = arith.truncf %312 : vector<4x256xf32> to vector<4x256xbf16>
    %cst_90 = arith.constant dense<0.000000e+00> : vector<4x512xf32>
    %314 = tpu.matmul %313, %6, %cst_90 {dimension_numbers = #tpu.dot_dimension_numbers<[1], [0], [0], [1], [0, 0, 1, 1], [], []>} : vector<4x256xbf16>, vector<256x512xbf16>, vector<4x512xf32> -> vector<4x512xf32>
    %c4_i32_91 = arith.constant 4 : i32
    %315 = arith.muli %c7_i32_89, %c4_i32_91 : i32
    %316 = arith.index_cast %315 : i32 to index
    %c0_92 = arith.constant 0 : index
    %317 = vector.load %arg10[%316, %c0_92] : memref<32x512xf32, #tpu.memory_space<vmem>>, vector<4x512xf32>
    %318 = arith.addf %317, %314 : vector<4x512xf32>
    %319 = vector.extract_strided_slice %318 {offsets = [0, 0], sizes = [4, 128], strides = [1, 1]} : vector<4x512xf32> to vector<4x128xf32>
    %320 = arith.negf %319 : vector<4x128xf32>
    %321 = math.exp %320 : vector<4x128xf32>
    %cst_93 = arith.constant 1.000000e+00 : f32
    %322 = vector.broadcast %cst_93 : f32 to vector<4x128xf32>
    %323 = arith.addf %322, %321 : vector<4x128xf32>
    %324 = arith.divf %322, %323 : vector<4x128xf32>
    %325 = vector.extract_strided_slice %318 {offsets = [0, 128], sizes = [4, 128], strides = [1, 1]} : vector<4x512xf32> to vector<4x128xf32>
    %326 = arith.negf %325 : vector<4x128xf32>
    %327 = math.exp %326 : vector<4x128xf32>
    %cst_94 = arith.constant 1.000000e+00 : f32
    %328 = vector.broadcast %cst_94 : f32 to vector<4x128xf32>
    %329 = arith.addf %328, %327 : vector<4x128xf32>
    %330 = arith.divf %328, %329 : vector<4x128xf32>
    %331 = vector.extract_strided_slice %318 {offsets = [0, 256], sizes = [4, 128], strides = [1, 1]} : vector<4x512xf32> to vector<4x128xf32>
    %332 = math.tanh %331 : vector<4x128xf32>
    %333 = vector.extract_strided_slice %318 {offsets = [0, 384], sizes = [4, 128], strides = [1, 1]} : vector<4x512xf32> to vector<4x128xf32>
    %334 = arith.negf %333 : vector<4x128xf32>
    %335 = math.exp %334 : vector<4x128xf32>
    %cst_95 = arith.constant 1.000000e+00 : f32
    %336 = vector.broadcast %cst_95 : f32 to vector<4x128xf32>
    %337 = arith.addf %336, %335 : vector<4x128xf32>
    %338 = arith.divf %336, %337 : vector<4x128xf32>
    %339 = arith.mulf %330, %299 : vector<4x128xf32>
    %340 = arith.mulf %324, %332 : vector<4x128xf32>
    %341 = arith.addf %339, %340 : vector<4x128xf32>
    %342 = math.tanh %341 : vector<4x128xf32>
    %343 = arith.mulf %338, %342 : vector<4x128xf32>
    %344 = vector.extract_strided_slice %343 {offsets = [0, 0], sizes = [2, 128], strides = [1, 1]} : vector<4x128xf32> to vector<2x128xf32>
    %c2_i32_96 = arith.constant 2 : i32
    %345 = arith.muli %c7_i32_89, %c2_i32_96 : i32
    %346 = arith.index_cast %345 : i32 to index
    %c0_97 = arith.constant 0 : index
    %347 = vector.load %arg11[%346, %c0_97] : memref<16x128xf32, #tpu.memory_space<vmem>>, vector<2x128xf32>
    tpu.vector_store %arg11[%346, %c0_97], %344 {strides = array<i32>} : memref<16x128xf32, #tpu.memory_space<vmem>>, vector<2x128xf32>,
    %348 = vector.extract_strided_slice %343 {offsets = [2, 0], sizes = [2, 128], strides = [1, 1]} : vector<4x128xf32> to vector<2x128xf32>
    %c7_i32_98 = arith.constant 7 : i32
    %349 = arith.subi %c7_i32_98, %c7_i32_89 : i32
    %c2_i32_99 = arith.constant 2 : i32
    %350 = arith.muli %349, %c2_i32_99 : i32
    %351 = arith.index_cast %350 : i32 to index
    %c0_100 = arith.constant 0 : index
    %352 = vector.load %arg12[%351, %c0_100] : memref<16x128xf32, #tpu.memory_space<vmem>>, vector<2x128xf32>
    tpu.vector_store %arg12[%351, %c0_100], %348 {strides = array<i32>} : memref<16x128xf32, #tpu.memory_space<vmem>>, vector<2x128xf32>,
    %353 = tpu.concatenate %343, %343 in 1 : vector<4x128xf32>, vector<4x128xf32> -> vector<4x256xf32>
    %354 = arith.mulf %353, %16 : vector<4x256xf32>
    %c8_i32 = arith.constant 8 : i32
    %355 = vector.extract_strided_slice %354 {offsets = [0, 0], sizes = [4, 128], strides = [1, 1]} : vector<4x256xf32> to vector<4x128xf32>
    %356 = vector.extract_strided_slice %354 {offsets = [0, 128], sizes = [4, 128], strides = [1, 1]} : vector<4x256xf32> to vector<4x128xf32>
    %357 = arith.addf %355, %356 : vector<4x128xf32>
    %c0_101 = arith.constant 0 : index
    %c0_102 = arith.constant 0 : index
    %358 = vector.load %arg8[%c0_101, %c0_102] : memref<4x128xf32, #tpu.memory_space<vmem>>, vector<4x128xf32>
    tpu.vector_store %arg8[%c0_101, %c0_102], %357 {strides = array<i32>} : memref<4x128xf32, #tpu.memory_space<vmem>>, vector<4x128xf32>,
    %c0_103 = arith.constant 0 : index
    %c0_104 = arith.constant 0 : index
    %359 = vector.load %arg9[%c0_103, %c0_104] : memref<4x128xf32, #tpu.memory_space<vmem>>, vector<4x128xf32>
    tpu.vector_store %arg9[%c0_103, %c0_104], %341 {strides = array<i32>} : memref<4x128xf32, #tpu.memory_space<vmem>>, vector<4x128xf32>,
    %c0_105 = arith.constant 0 : index
    %c0_106 = arith.constant 0 : index
    %360 = vector.load %arg11[%c0_105, %c0_106] : memref<16x128xf32, #tpu.memory_space<vmem>>, vector<16x128xf32>
    %361 = arith.truncf %360 : vector<16x128xf32> to vector<16x128xbf16>
    %c0_107 = arith.constant 0 : index
    %c0_108 = arith.constant 0 : index
    %362 = vector.load %arg12[%c0_107, %c0_108] : memref<16x128xf32, #tpu.memory_space<vmem>>, vector<16x128xf32>
    %363 = arith.truncf %362 : vector<16x128xf32> to vector<16x128xbf16>
    %c0_109 = arith.constant 0 : index
    %c0_110 = arith.constant 0 : index
    %364 = vector.load %arg5[%c0_109, %c0_110] : memref<256x8xbf16, #tpu.memory_space<vmem>>, vector<128x8xbf16>
    %cst_111 = arith.constant dense<0.000000e+00> : vector<16x8xf32>
    %365 = tpu.matmul %361, %364, %cst_111 {dimension_numbers = #tpu.dot_dimension_numbers<[1], [0], [0], [1], [0, 0, 1, 1], [], []>} : vector<16x128xbf16>, vector<128x8xbf16>, vector<16x8xf32> -> vector<16x8xf32>
    %c128 = arith.constant 128 : index
    %c0_112 = arith.constant 0 : index
    %366 = vector.load %arg5[%c128, %c0_112] : memref<256x8xbf16, #tpu.memory_space<vmem>>, vector<128x8xbf16>
    %cst_113 = arith.constant dense<0.000000e+00> : vector<16x8xf32>
    %367 = tpu.matmul %363, %366, %cst_113 {dimension_numbers = #tpu.dot_dimension_numbers<[1], [0], [0], [1], [0, 0, 1, 1], [], []>} : vector<16x128xbf16>, vector<128x8xbf16>, vector<16x8xf32> -> vector<16x8xf32>
    %368 = arith.addf %365, %367 : vector<16x8xf32>
    %c0_114 = arith.constant 0 : index
    %c0_115 = arith.constant 0 : index
    %369 = vector.load %arg6[%c0_114, %c0_115] : memref<1x8xf32, #tpu.memory_space<vmem>>, vector<1x8xf32>
    %370 = vector.broadcast %369 : vector<1x8xf32> to vector<16x8xf32>
    %371 = arith.addf %368, %370 : vector<16x8xf32>
    %cst_116 = arith.constant dense<0xFF800000> : vector<16xf32>
    %372 = vector.multi_reduction <maximumf>, %371, %cst_116 [1] : vector<16x8xf32> to vector<16xf32>
    %373 = vector.shape_cast %372 : vector<16xf32> to vector<16x1xf32>
    %374 = vector.broadcast %373 : vector<16x1xf32> to vector<16x8xf32>
    %375 = arith.subf %371, %374 : vector<16x8xf32>
    %376 = math.exp %375 : vector<16x8xf32>
    %cst_117 = arith.constant dense<0.000000e+00> : vector<16xf32>
    %377 = vector.multi_reduction <add>, %376, %cst_117 [1] : vector<16x8xf32> to vector<16xf32>
    %378 = vector.shape_cast %377 : vector<16xf32> to vector<16x1xf32>
    %379 = vector.broadcast %378 : vector<16x1xf32> to vector<16x8xf32>
    %380 = arith.divf %376, %379 : vector<16x8xf32>
    %c0_118 = arith.constant 0 : index
    %c0_119 = arith.constant 0 : index
    %381 = vector.load %arg7[%c0_118, %c0_119] : memref<16x8xf32, #tpu.memory_space<vmem>>, vector<16x8xf32>
    tpu.vector_store %arg7[%c0_118, %c0_119], %380 {strides = array<i32>} : memref<16x8xf32, #tpu.memory_space<vmem>>, vector<16x8xf32>,
    return
  }
  func.func @transform_0(%arg0: i32) -> (i32, i32) {
    %c0_i32 = arith.constant 0 : i32
    %c0_i32_0 = arith.constant 0 : i32
    %c0_i32_1 = arith.constant 0 : i32
    return %c0_i32, %c0_i32_0 : i32, i32
  }
  func.func @transform_1(%arg0: i32) -> (i32, i32) {
    %c0_i32 = arith.constant 0 : i32
    %c0_i32_0 = arith.constant 0 : i32
    %c0_i32_1 = arith.constant 0 : i32
    return %c0_i32, %c0_i32_0 : i32, i32
  }
  func.func @transform_2(%arg0: i32) -> (i32, i32) {
    %c0_i32 = arith.constant 0 : i32
    %c0_i32_0 = arith.constant 0 : i32
    %c0_i32_1 = arith.constant 0 : i32
    return %c0_i32, %c0_i32_0 : i32, i32
  }
  func.func @transform_3(%arg0: i32) -> (i32, i32) {
    %c0_i32 = arith.constant 0 : i32
    %c0_i32_0 = arith.constant 0 : i32
    %c0_i32_1 = arith.constant 0 : i32
    return %c0_i32, %c0_i32_0 : i32, i32
  }
  func.func @transform_4(%arg0: i32) -> (i32, i32) {
    %c0_i32 = arith.constant 0 : i32
    %c0_i32_0 = arith.constant 0 : i32
    %c0_i32_1 = arith.constant 0 : i32
    return %c0_i32, %c0_i32_0 : i32, i32
  }
  func.func @transform_5(%arg0: i32) -> (i32, i32) {
    %c0_i32 = arith.constant 0 : i32
    %c0_i32_0 = arith.constant 0 : i32
    %c0_i32_1 = arith.constant 0 : i32
    return %c0_i32, %c0_i32_0 : i32, i32
  }
  func.func @transform_6(%arg0: i32) -> (i32, i32) {
    %c0_i32 = arith.constant 0 : i32
    %c0_i32_0 = arith.constant 0 : i32
    %c0_i32_1 = arith.constant 0 : i32
    return %c0_i32, %c0_i32_0 : i32, i32
  }
  func.func @transform_7(%arg0: i32) -> (i32, i32) {
    %c0_i32 = arith.constant 0 : i32
    %c0_i32_0 = arith.constant 0 : i32
    %c0_i32_1 = arith.constant 0 : i32
    return %c0_i32, %c0_i32_0 : i32, i32
  }
  func.func @transform_8(%arg0: i32) -> (i32, i32) {
    %c0_i32 = arith.constant 0 : i32
    %c0_i32_0 = arith.constant 0 : i32
    %c0_i32_1 = arith.constant 0 : i32
    return %c0_i32, %c0_i32_0 : i32, i32
  }
}

</mosaic_0001>

<llo_original>
// kernel: tile.9
$region0: #{tile.9}
  %s0 = inlined_call_operand.vmem [shape: f32[8,4,512], index: 0, kind: input, shape index: {}]
  %s1 = inlined_call_operand.vmem [shape: f32[32,512], index: 1, kind: output, shape index: {}]
  $region1: #{tile.9} parent=0
    #allocation0 [shape = 'u8[131072]{0}', space=vmem, size = 0x20000, scoped, tag = 'scoped mem for input reshape']
    %s3 = sshllo.u32 0, 4
    %s4 = smul.addr 4, 31
    %s5 = scalar_lea.vmem %s0, %s4
    %v6 = vld [vmem:[%s5] sm:%s3]
    %s7 = scalar_lea.vmem [#allocation0], 248
    %8 = vst [vmem:[%s7] sm:%s3] %v6
    %s9 = smul.addr 4, 30
    %s10 = scalar_lea.vmem %s0, %s9
    %v11 = vld [vmem:[%s10] sm:%s3]
    %s12 = scalar_lea.vmem [#allocation0], 240
    %13 = vst [vmem:[%s12] sm:%s3] %v11
    %s14 = smul.addr 4, 29
    %s15 = scalar_lea.vmem %s0, %s14
    %v16 = vld [vmem:[%s15] sm:%s3]
    %s17 = scalar_lea.vmem [#allocation0], 232
    %18 = vst [vmem:[%s17] sm:%s3] %v16
    %s19 = smul.addr 4, 28
    %s20 = scalar_lea.vmem %s0, %s19
    %v21 = vld [vmem:[%s20] sm:%s3]
    %s22 = scalar_lea.vmem [#allocation0], 224
    %23 = vst [vmem:[%s22] sm:%s3] %v21
    %s24 = smul.addr 4, 27
    %s25 = scalar_lea.vmem %s0, %s24
    %v26 = vld [vmem:[%s25] sm:%s3]
    %s27 = scalar_lea.vmem [#allocation0], 216
    %28 = vst [vmem:[%s27] sm:%s3] %v26
    %s29 = smul.addr 4, 26
    %s30 = scalar_lea.vmem %s0, %s29
    %v31 = vld [vmem:[%s30] sm:%s3]
    %s32 = scalar_lea.vmem [#allocation0], 208
    %33 = vst [vmem:[%s32] sm:%s3] %v31
    %s34 = smul.addr 4, 25
    %s35 = scalar_lea.vmem %s0, %s34
    %v36 = vld [vmem:[%s35] sm:%s3]
    %s37 = scalar_lea.vmem [#allocation0], 200
    %38 = vst [vmem:[%s37] sm:%s3] %v36
    %s39 = smul.addr 4, 24
    %s40 = scalar_lea.vmem %s0, %s39
    %v41 = vld [vmem:[%s40] sm:%s3]
    %s42 = scalar_lea.vmem [#allocation0], 192
    %43 = vst [vmem:[%s42] sm:%s3] %v41
    %s44 = smul.addr 4, 23
    %s45 = scalar_lea.vmem %s0, %s44
    %v46 = vld [vmem:[%s45] sm:%s3]
    %s47 = scalar_lea.vmem [#allocation0], 184
    %48 = vst [vmem:[%s47] sm:%s3] %v46
    %s49 = smul.addr 4, 22
    %s50 = scalar_lea.vmem %s0, %s49
    %v51 = vld [vmem:[%s50] sm:%s3]
    %s52 = scalar_lea.vmem [#allocation0], 176
    %53 = vst [vmem:[%s52] sm:%s3] %v51
    %s54 = smul.addr 4, 21
    %s55 = scalar_lea.vmem %s0, %s54
    %v56 = vld [vmem:[%s55] sm:%s3]
    %s57 = scalar_lea.vmem [#allocation0], 168
    %58 = vst [vmem:[%s57] sm:%s3] %v56
    %s59 = smul.addr 4, 20
    %s60 = scalar_lea.vmem %s0, %s59
    %v61 = vld [vmem:[%s60] sm:%s3]
    %s62 = scalar_lea.vmem [#allocation0], 160
    %63 = vst [vmem:[%s62] sm:%s3] %v61
    %s64 = smul.addr 4, 19
    %s65 = scalar_lea.vmem %s0, %s64
    %v66 = vld [vmem:[%s65] sm:%s3]
    %s67 = scalar_lea.vmem [#allocation0], 152
    %68 = vst [vmem:[%s67] sm:%s3] %v66
    %s69 = smul.addr 4, 18
    %s70 = scalar_lea.vmem %s0, %s69
    %v71 = vld [vmem:[%s70] sm:%s3]
    %s72 = scalar_lea.vmem [#allocation0], 144
    %73 = vst [vmem:[%s72] sm:%s3] %v71
    %s74 = smul.addr 4, 17
    %s75 = scalar_lea.vmem %s0, %s74
    %v76 = vld [vmem:[%s75] sm:%s3]
    %s77 = scalar_lea.vmem [#allocation0], 136
    %78 = vst [vmem:[%s77] sm:%s3] %v76
    %s79 = smul.addr 4, 16
    %s80 = scalar_lea.vmem %s0, %s79
    %v81 = vld [vmem:[%s80] sm:%s3]
    %s82 = scalar_lea.vmem [#allocation0], 128
    %83 = vst [vmem:[%s82] sm:%s3] %v81
    %s84 = smul.addr 4, 15
    %s85 = scalar_lea.vmem %s0, %s84
    %v86 = vld [vmem:[%s85] sm:%s3]
    %s87 = scalar_lea.vmem [#allocation0], 120
    %88 = vst [vmem:[%s87] sm:%s3] %v86
    %s89 = smul.addr 4, 14
    %s90 = scalar_lea.vmem %s0, %s89
    %v91 = vld [vmem:[%s90] sm:%s3]
    %s92 = scalar_lea.vmem [#allocation0], 112
    %93 = vst [vmem:[%s92] sm:%s3] %v91
    %s94 = smul.addr 4, 13
    %s95 = scalar_lea.vmem %s0, %s94
    %v96 = vld [vmem:[%s95] sm:%s3]
    %s97 = scalar_lea.vmem [#allocation0], 104
    %98 = vst [vmem:[%s97] sm:%s3] %v96
    %s99 = smul.addr 4, 12
    %s100 = scalar_lea.vmem %s0, %s99
    %v101 = vld [vmem:[%s100] sm:%s3]
    %s102 = scalar_lea.vmem [#allocation0], 96
    %103 = vst [vmem:[%s102] sm:%s3] %v101
    %s104 = smul.addr 4, 11
    %s105 = scalar_lea.vmem %s0, %s104
    %v106 = vld [vmem:[%s105] sm:%s3]
    %s107 = scalar_lea.vmem [#allocation0], 88
    %108 = vst [vmem:[%s107] sm:%s3] %v106
    %s109 = smul.addr 4, 10
    %s110 = scalar_lea.vmem %s0, %s109
    %v111 = vld [vmem:[%s110] sm:%s3]
    %s112 = scalar_lea.vmem [#allocation0], 80
    %113 = vst [vmem:[%s112] sm:%s3] %v111
    %s114 = smul.addr 4, 9
    %s115 = scalar_lea.vmem %s0, %s114
    %v116 = vld [vmem:[%s115] sm:%s3]
    %s117 = scalar_lea.vmem [#allocation0], 72
    %118 = vst [vmem:[%s117] sm:%s3] %v116
    %s119 = smul.addr 4, 8
    %s120 = scalar_lea.vmem %s0, %s119
    %v121 = vld [vmem:[%s120] sm:%s3]
    %s122 = scalar_lea.vmem [#allocation0], 64
    %123 = vst [vmem:[%s122] sm:%s3] %v121
    %s124 = smul.addr 4, 7
    %s125 = scalar_lea.vmem %s0, %s124
    %v126 = vld [vmem:[%s125] sm:%s3]
    %s127 = scalar_lea.vmem [#allocation0], 56
    %128 = vst [vmem:[%s127] sm:%s3] %v126
    %s129 = smul.addr 4, 6
    %s130 = scalar_lea.vmem %s0, %s129
    %v131 = vld [vmem:[%s130] sm:%s3]
    %s132 = scalar_lea.vmem [#allocation0], 48
    %133 = vst [vmem:[%s132] sm:%s3] %v131
    %s134 = smul.addr 4, 5
    %s135 = scalar_lea.vmem %s0, %s134
    %v136 = vld [vmem:[%s135] sm:%s3]
    %s137 = scalar_lea.vmem [#allocation0], 40
    %138 = vst [vmem:[%s137] sm:%s3] %v136
    %s139 = smul.addr 4, 4
    %s140 = scalar_lea.vmem %s0, %s139
    %v141 = vld [vmem:[%s140] sm:%s3]
    %s142 = scalar_lea.vmem [#allocation0], 32
    %143 = vst [vmem:[%s142] sm:%s3] %v141
    %s144 = smul.addr 4, 3
    %s145 = scalar_lea.vmem %s0, %s144
    %v146 = vld [vmem:[%s145] sm:%s3]
    %s147 = scalar_lea.vmem [#allocation0], 24
    %148 = vst [vmem:[%s147] sm:%s3] %v146
    %s149 = smul.addr 4, 2
    %s150 = scalar_lea.vmem %s0, %s149
    %v151 = vld [vmem:[%s150] sm:%s3]
    %s152 = scalar_lea.vmem [#allocation0], 16
    %153 = vst [vmem:[%s152] sm:%s3] %v151
    %s154 = scalar_lea.vmem %s0, 4
    %v155 = vld [vmem:[%s154] sm:%s3]
    %s156 = scalar_lea.vmem [#allocation0], 8
    %157 = vst [vmem:[%s156] sm:%s3] %v155
    %v158 = vld [vmem:[%s0] sm:%s3]
    %159 = vst [vmem:[#allocation0] sm:%s3] %v158
    %v160 = vld [vmem:[#allocation0] sm:$0xf]
    %161 = vst [vmem:[%s1] sm:$0xf] %v160
    %s162 = scalar_lea.vmem [#allocation0], 8
    %v163 = vld [vmem:[%s162] sm:$0xf]
    %s164 = scalar_lea.vmem %s1, 8
    %165 = vst [vmem:[%s164] sm:$0xf] %v163
    %s166 = scalar_lea.vmem [#allocation0], 16
    %v167 = vld [vmem:[%s166] sm:$0xf]
    %s168 = scalar_lea.vmem %s1, 16
    %169 = vst [vmem:[%s168] sm:$0xf] %v167
    %s170 = scalar_lea.vmem [#allocation0], 24
    %v171 = vld [vmem:[%s170] sm:$0xf]
    %s172 = scalar_lea.vmem %s1, 24
    %173 = vst [vmem:[%s172] sm:$0xf] %v171
    %s174 = scalar_lea.vmem [#allocation0], 32
    %v175 = vld [vmem:[%s174] sm:$0xf]
    %s176 = scalar_lea.vmem %s1, 4
    %177 = vst [vmem:[%s176] sm:$0xf] %v175
    %s178 = scalar_lea.vmem [#allocation0], 40
    %v179 = vld [vmem:[%s178] sm:$0xf]
    %s180 = scalar_lea.vmem %s1, 12
    %181 = vst [vmem:[%s180] sm:$0xf] %v179
    %s182 = scalar_lea.vmem [#allocation0], 48
    %v183 = vld [vmem:[%s182] sm:$0xf]
    %s184 = scalar_lea.vmem %s1, 20
    %185 = vst [vmem:[%s184] sm:$0xf] %v183
    %s186 = scalar_lea.vmem [#allocation0], 56
    %v187 = vld [vmem:[%s186] sm:$0xf]
    %s188 = scalar_lea.vmem %s1, 28
    %189 = vst [vmem:[%s188] sm:$0xf] %v187
    %s190 = scalar_lea.vmem [#allocation0], 64
    %v191 = vld [vmem:[%s190] sm:$0xf]
    %s192 = scalar_lea.vmem %s1, 32
    %193 = vst [vmem:[%s192] sm:$0xf] %v191
    %s194 = scalar_lea.vmem [#allocation0], 72
    %v195 = vld [vmem:[%s194] sm:$0xf]
    %s196 = scalar_lea.vmem %s1, 40
    %197 = vst [vmem:[%s196] sm:$0xf] %v195
    %s198 = scalar_lea.vmem [#allocation0], 80
    %v199 = vld [vmem:[%s198] sm:$0xf]
    %s200 = scalar_lea.vmem %s1, 48
    %201 = vst [vmem:[%s200] sm:$0xf] %v199
    %s202 = scalar_lea.vmem [#allocation0], 88
    %v203 = vld [vmem:[%s202] sm:$0xf]
    %s204 = scalar_lea.vmem %s1, 56
    %205 = vst [vmem:[%s204] sm:$0xf] %v203
    %s206 = scalar_lea.vmem [#allocation0], 96
    %v207 = vld [vmem:[%s206] sm:$0xf]
    %s208 = scalar_lea.vmem %s1, 36
    %209 = vst [vmem:[%s208] sm:$0xf] %v207
    %s210 = scalar_lea.vmem [#allocation0], 104
    %v211 = vld [vmem:[%s210] sm:$0xf]
    %s212 = scalar_lea.vmem %s1, 44
    %213 = vst [vmem:[%s212] sm:$0xf] %v211
    %s214 = scalar_lea.vmem [#allocation0], 112
    %v215 = vld [vmem:[%s214] sm:$0xf]
    %s216 = scalar_lea.vmem %s1, 52
    %217 = vst [vmem:[%s216] sm:$0xf] %v215
    %s218 = scalar_lea.vmem [#allocation0], 120
    %v219 = vld [vmem:[%s218] sm:$0xf]
    %s220 = scalar_lea.vmem %s1, 60
    %221 = vst [vmem:[%s220] sm:$0xf] %v219
    %s222 = scalar_lea.vmem [#allocation0], 128
    %v223 = vld [vmem:[%s222] sm:$0xf]
    %s224 = scalar_lea.vmem %s1, 64
    %225 = vst [vmem:[%s224] sm:$0xf] %v223
    %s226 = scalar_lea.vmem [#allocation0], 136
    %v227 = vld [vmem:[%s226] sm:$0xf]
    %s228 = scalar_lea.vmem %s1, 72
    %229 = vst [vmem:[%s228] sm:$0xf] %v227
    %s230 = scalar_lea.vmem [#allocation0], 144
    %v231 = vld [vmem:[%s230] sm:$0xf]
    %s232 = scalar_lea.vmem %s1, 80
    %233 = vst [vmem:[%s232] sm:$0xf] %v231
    %s234 = scalar_lea.vmem [#allocation0], 152
    %v235 = vld [vmem:[%s234] sm:$0xf]
    %s236 = scalar_lea.vmem %s1, 88
    %237 = vst [vmem:[%s236] sm:$0xf] %v235
    %s238 = scalar_lea.vmem [#allocation0], 160
    %v239 = vld [vmem:[%s238] sm:$0xf]
    %s240 = scalar_lea.vmem %s1, 68
    %241 = vst [vmem:[%s240] sm:$0xf] %v239
    %s242 = scalar_lea.vmem [#allocation0], 168
    %v243 = vld [vmem:[%s242] sm:$0xf]
    %s244 = scalar_lea.vmem %s1, 76
    %245 = vst [vmem:[%s244] sm:$0xf] %v243
    %s246 = scalar_lea.vmem [#allocation0], 176
    %v247 = vld [vmem:[%s246] sm:$0xf]
    %s248 = scalar_lea.vmem %s1, 84
    %249 = vst [vmem:[%s248] sm:$0xf] %v247
    %s250 = scalar_lea.vmem [#allocation0], 184
    %v251 = vld [vmem:[%s250] sm:$0xf]
    %s252 = scalar_lea.vmem %s1, 92
    %253 = vst [vmem:[%s252] sm:$0xf] %v251
    %s254 = scalar_lea.vmem [#allocation0], 192
    %v255 = vld [vmem:[%s254] sm:$0xf]
    %s256 = scalar_lea.vmem %s1, 96
    %257 = vst [vmem:[%s256] sm:$0xf] %v255
    %s258 = scalar_lea.vmem [#allocation0], 200
    %v259 = vld [vmem:[%s258] sm:$0xf]
    %s260 = scalar_lea.vmem %s1, 104
    %261 = vst [vmem:[%s260] sm:$0xf] %v259
    %s262 = scalar_lea.vmem [#allocation0], 208
    %v263 = vld [vmem:[%s262] sm:$0xf]
    %s264 = scalar_lea.vmem %s1, 112
    %265 = vst [vmem:[%s264] sm:$0xf] %v263
    %s266 = scalar_lea.vmem [#allocation0], 216
    %v267 = vld [vmem:[%s266] sm:$0xf]
    %s268 = scalar_lea.vmem %s1, 120
    %269 = vst [vmem:[%s268] sm:$0xf] %v267
    %s270 = scalar_lea.vmem [#allocation0], 224
    %v271 = vld [vmem:[%s270] sm:$0xf]
    %s272 = scalar_lea.vmem %s1, 100
    %273 = vst [vmem:[%s272] sm:$0xf] %v271
    %s274 = scalar_lea.vmem [#allocation0], 232
    %v275 = vld [vmem:[%s274] sm:$0xf]
    %s276 = scalar_lea.vmem %s1, 108
    %277 = vst [vmem:[%s276] sm:$0xf] %v275
    %s278 = scalar_lea.vmem [#allocation0], 240
    %v279 = vld [vmem:[%s278] sm:$0xf]
    %s280 = scalar_lea.vmem %s1, 116
    %281 = vst [vmem:[%s280] sm:$0xf] %v279
    %s282 = scalar_lea.vmem [#allocation0], 248
    %v283 = vld [vmem:[%s282] sm:$0xf]
    %s284 = scalar_lea.vmem %s1, 124
    %285 = vst [vmem:[%s284] sm:$0xf] %v283

// kernel: rnn_forward.1
$region0: #{rnn_forward.1}
  #allocation0 [shape = 'u32[]', space=smem, size = 0x4, offset = 0x4, fixed_abs, tag = 'smem constant byte address 0x4 - core index']
  #allocation1 [shape = 'u32[144,128]{1,0:T(1,128)}', space=vmem, size = 0x12000, scoped, tag = 'internal scratch']
  #allocation2 [shape = 'f32[32,512]{1,0:T(8,128)}', space=vmem, size = 0x10000, scoped, tag = 'scratch operand']
  #allocation3 [shape = 'f32[16,128]{1,0:T(8,128)}', space=vmem, size = 0x2000, scoped, tag = 'scratch operand']
  #allocation4 [shape = 'f32[16,128]{1,0:T(8,128)}', space=vmem, size = 0x2000, scoped, tag = 'scratch operand']
  %s0 = inlined_call_operand.vmem [shape: bf16[32,768], index: 0, kind: input, shape index: {}]
  %s1 = inlined_call_operand.vmem [shape: bf16[768,512], index: 1, kind: input, shape index: {}]
  %s2 = inlined_call_operand.vmem [shape: f32[32,512], index: 2, kind: input, shape index: {}]
  %s3 = inlined_call_operand.vmem [shape: bf16[256,512], index: 3, kind: input, shape index: {}]
  %s4 = inlined_call_operand.vmem [shape: bf16[256,8], index: 4, kind: input, shape index: {}]
  %s5 = inlined_call_operand.vmem [shape: f32[1,8], index: 5, kind: input, shape index: {}]
  %s6 = inlined_call_operand.vmem [shape: f32[16,8], index: 6, kind: output, shape index: {0}]
  %s7 = inlined_call_operand.hbm [shape: f32[4,128], index: 7, kind: output, shape index: {1}]
  %s8 = inlined_call_operand.hbm [shape: f32[4,128], index: 8, kind: output, shape index: {2}]
  %9 = xla_tuple %s6, %s7, %s8
  %s10 = sld [smem:[#allocation0]]
  $region50: #{rnn_forward.1} parent=0
    _
  %s12 = ssub.s32 1, %s10
  %s13 = scalar_select 0, %s12, %s10
  $region1: #{rnn_forward.1} parent=0
    #allocation5 [shape = 'u8[2048]{0}', space=vmem, size = 0x800, scoped, tag = 'output window, operand 1, single buffered']
    #allocation6 [shape = 's32[1]{0}', space=sflag, size = 0x4, scoped, tag = 'scoped memory for rnn_forward.1']
    #allocation7 [shape = 'u8[2048]{0}', space=vmem, size = 0x800, scoped, tag = 'output window, operand 2, single buffered']
    #allocation8 [shape = 's32[1]{0}', space=sflag, size = 0x4, scoped, tag = 'scoped memory for rnn_forward.1']
    %14 = vsyncpa [#allocation6], 0
    %15 = vsyncpa [#allocation8], 0
    // Predicated region
    $region2: #{rnn_forward.1} parent=1 // pred_check
      _
    $region3: #{rnn_forward.1} parent=1 // pred_check_branch
      %17 = sbr.rel (0) target = $region5
    $region4: #{rnn_forward.1} parent=1 // pred_region
      _
    $region5: #{rnn_forward.1} parent=1 // pred_fallthru
      _
    // Predicated region
    $region6: #{rnn_forward.1} parent=1 // pred_check
      _
    $region7: #{rnn_forward.1} parent=1 // pred_check_branch
      %19 = sbr.rel (0) target = $region9
    $region8: #{rnn_forward.1} parent=1 // pred_region
      _
    $region9: #{rnn_forward.1} parent=1 // pred_fallthru
      _
    // Predicated region
    $region10: #{rnn_forward.1} parent=1 // pred_check
      _
    $region11: #{rnn_forward.1} parent=1 // pred_check_branch
      %21 = sbr.rel (0) target = $region13
    $region12: #{rnn_forward.1} parent=1 // pred_region
      _
    $region13: #{rnn_forward.1} parent=1 // pred_fallthru
      _
    // Predicated region
    $region14: #{rnn_forward.1} parent=1 // pred_check
      _
    $region15: #{rnn_forward.1} parent=1 // pred_check_branch
      %23 = sbr.rel (0) target = $region17
    $region16: #{rnn_forward.1} parent=1 // pred_region
      _
    $region17: #{rnn_forward.1} parent=1 // pred_fallthru
      _
    // Predicated region
    $region18: #{rnn_forward.1} parent=1 // pred_check
      _
    $region19: #{rnn_forward.1} parent=1 // pred_check_branch
      %25 = sbr.rel (0) target = $region21
    $region20: #{rnn_forward.1} parent=1 // pred_region
      _
    $region21: #{rnn_forward.1} parent=1 // pred_fallthru
      _
    // Predicated region
    $region22: #{rnn_forward.1} parent=1 // pred_check
      _
    $region23: #{rnn_forward.1} parent=1 // pred_check_branch
      %27 = sbr.rel (0) target = $region25
    $region24: #{rnn_forward.1} parent=1 // pred_region
      _
    $region25: #{rnn_forward.1} parent=1 // pred_fallthru
      _
    %v29 = vld [vmem:[%s0] sm:$0xff]
    %v30 = vld [vmem:[%s0 + $0x8] sm:$0xff]
    %v31 = vld [vmem:[%s0 + $0x10] sm:$0xff]
    %v32 = vld [vmem:[%s0 + $0x18] sm:$0xff]
    %v33 = vld [vmem:[%s0 + $0x20] sm:$0xff]
    %v34 = vld [vmem:[%s0 + $0x28] sm:$0xff]
    %v35 = vld [vmem:[%s0 + $0x30] sm:$0xff]
    %v36 = vld [vmem:[%s0 + $0x38] sm:$0xff]
    %v37 = vld [vmem:[%s0 + $0x40] sm:$0xff]
    %v38 = vld [vmem:[%s0 + $0x48] sm:$0xff]
    %v39 = vld [vmem:[%s0 + $0x50] sm:$0xff]
    %v40 = vld [vmem:[%s0 + $0x58] sm:$0xff]
    %v41 = vld [vmem:[%s1] sm:$0xff]
    %v42 = vld [vmem:[%s1 + $0x8] sm:$0xff]
    %v43 = vld [vmem:[%s1 + $0x10] sm:$0xff]
    %v44 = vld [vmem:[%s1 + $0x18] sm:$0xff]
    %v45 = vld [vmem:[%s1 + $0x20] sm:$0xff]
    %v46 = vld [vmem:[%s1 + $0x28] sm:$0xff]
    %v47 = vld [vmem:[%s1 + $0x30] sm:$0xff]
    %v48 = vld [vmem:[%s1 + $0x38] sm:$0xff]
    %v49 = vld [vmem:[%s1 + $0x40] sm:$0xff]
    %v50 = vld [vmem:[%s1 + $0x48] sm:$0xff]
    %v51 = vld [vmem:[%s1 + $0x50] sm:$0xff]
    %v52 = vld [vmem:[%s1 + $0x58] sm:$0xff]
    %v53 = vld [vmem:[%s1 + $0x60] sm:$0xff]
    %v54 = vld [vmem:[%s1 + $0x68] sm:$0xff]
    %v55 = vld [vmem:[%s1 + $0x70] sm:$0xff]
    %v56 = vld [vmem:[%s1 + $0x78] sm:$0xff]
    %v57 = vld [vmem:[%s1 + $0x80] sm:$0xff]
    %v58 = vld [vmem:[%s1 + $0x88] sm:$0xff]
    %v59 = vld [vmem:[%s1 + $0x90] sm:$0xff]
    %v60 = vld [vmem:[%s1 + $0x98] sm:$0xff]
    %v61 = vld [vmem:[%s1 + $0xa0] sm:$0xff]
    %v62 = vld [vmem:[%s1 + $0xa8] sm:$0xff]
    %v63 = vld [vmem:[%s1 + $0xb0] sm:$0xff]
    %v64 = vld [vmem:[%s1 + $0xb8] sm:$0xff]
    %v65 = vld [vmem:[%s1 + $0xc0] sm:$0xff]
    %v66 = vld [vmem:[%s1 + $0xc8] sm:$0xff]
    %v67 = vld [vmem:[%s1 + $0xd0] sm:$0xff]
    %v68 = vld [vmem:[%s1 + $0xd8] sm:$0xff]
    %v69 = vld [vmem:[%s1 + $0xe0] sm:$0xff]
    %v70 = vld [vmem:[%s1 + $0xe8] sm:$0xff]
    %v71 = vld [vmem:[%s1 + $0xf0] sm:$0xff]
    %v72 = vld [vmem:[%s1 + $0xf8] sm:$0xff]
    %v73 = vld [vmem:[%s1 + $0x100] sm:$0xff]
    %v74 = vld [vmem:[%s1 + $0x108] sm:$0xff]
    %v75 = vld [vmem:[%s1 + $0x110] sm:$0xff]
    %v76 = vld [vmem:[%s1 + $0x118] sm:$0xff]
    %v77 = vld [vmem:[%s1 + $0x120] sm:$0xff]
    %v78 = vld [vmem:[%s1 + $0x128] sm:$0xff]
    %v79 = vld [vmem:[%s1 + $0x130] sm:$0xff]
    %v80 = vld [vmem:[%s1 + $0x138] sm:$0xff]
    %v81 = vld [vmem:[%s1 + $0x140] sm:$0xff]
    %v82 = vld [vmem:[%s1 + $0x148] sm:$0xff]
    %v83 = vld [vmem:[%s1 + $0x150] sm:$0xff]
    %v84 = vld [vmem:[%s1 + $0x158] sm:$0xff]
    %v85 = vld [vmem:[%s1 + $0x160] sm:$0xff]
    %v86 = vld [vmem:[%s1 + $0x168] sm:$0xff]
    %v87 = vld [vmem:[%s1 + $0x170] sm:$0xff]
    %v88 = vld [vmem:[%s1 + $0x178] sm:$0xff]
    %v89 = vld [vmem:[%s1 + $0x180] sm:$0xff]
    %v90 = vld [vmem:[%s1 + $0x188] sm:$0xff]
    %v91 = vld [vmem:[%s1 + $0x190] sm:$0xff]
    %v92 = vld [vmem:[%s1 + $0x198] sm:$0xff]
    %v93 = vld [vmem:[%s1 + $0x1a0] sm:$0xff]
    %v94 = vld [vmem:[%s1 + $0x1a8] sm:$0xff]
    %v95 = vld [vmem:[%s1 + $0x1b0] sm:$0xff]
    %v96 = vld [vmem:[%s1 + $0x1b8] sm:$0xff]
    %v97 = vld [vmem:[%s1 + $0x1c0] sm:$0xff]
    %v98 = vld [vmem:[%s1 + $0x1c8] sm:$0xff]
    %v99 = vld [vmem:[%s1 + $0x1d0] sm:$0xff]
    %v100 = vld [vmem:[%s1 + $0x1d8] sm:$0xff]
    %v101 = vld [vmem:[%s1 + $0x1e0] sm:$0xff]
    %v102 = vld [vmem:[%s1 + $0x1e8] sm:$0xff]
    %v103 = vld [vmem:[%s1 + $0x1f0] sm:$0xff]
    %v104 = vld [vmem:[%s1 + $0x1f8] sm:$0xff]
    %v105 = vld [vmem:[%s1 + $0x200] sm:$0xff]
    %v106 = vld [vmem:[%s1 + $0x208] sm:$0xff]
    %v107 = vld [vmem:[%s1 + $0x210] sm:$0xff]
    %v108 = vld [vmem:[%s1 + $0x218] sm:$0xff]
    %v109 = vld [vmem:[%s1 + $0x220] sm:$0xff]
    %v110 = vld [vmem:[%s1 + $0x228] sm:$0xff]
    %v111 = vld [vmem:[%s1 + $0x230] sm:$0xff]
    %v112 = vld [vmem:[%s1 + $0x238] sm:$0xff]
    %v113 = vld [vmem:[%s1 + $0x240] sm:$0xff]
    %v114 = vld [vmem:[%s1 + $0x248] sm:$0xff]
    %v115 = vld [vmem:[%s1 + $0x250] sm:$0xff]
    %v116 = vld [vmem:[%s1 + $0x258] sm:$0xff]
    %v117 = vld [vmem:[%s1 + $0x260] sm:$0xff]
    %v118 = vld [vmem:[%s1 + $0x268] sm:$0xff]
    %v119 = vld [vmem:[%s1 + $0x270] sm:$0xff]
    %v120 = vld [vmem:[%s1 + $0x278] sm:$0xff]
    %v121 = vld [vmem:[%s1 + $0x280] sm:$0xff]
    %v122 = vld [vmem:[%s1 + $0x288] sm:$0xff]
    %v123 = vld [vmem:[%s1 + $0x290] sm:$0xff]
    %v124 = vld [vmem:[%s1 + $0x298] sm:$0xff]
    %v125 = vld [vmem:[%s1 + $0x2a0] sm:$0xff]
    %v126 = vld [vmem:[%s1 + $0x2a8] sm:$0xff]
    %v127 = vld [vmem:[%s1 + $0x2b0] sm:$0xff]
    %v128 = vld [vmem:[%s1 + $0x2b8] sm:$0xff]
    %v129 = vld [vmem:[%s1 + $0x2c0] sm:$0xff]
    %v130 = vld [vmem:[%s1 + $0x2c8] sm:$0xff]
    %v131 = vld [vmem:[%s1 + $0x2d0] sm:$0xff]
    %v132 = vld [vmem:[%s1 + $0x2d8] sm:$0xff]
    %v133 = vld [vmem:[%s1 + $0x2e0] sm:$0xff]
    %v134 = vld [vmem:[%s1 + $0x2e8] sm:$0xff]
    %v135 = vld [vmem:[%s1 + $0x2f0] sm:$0xff]
    %v136 = vld [vmem:[%s1 + $0x2f8] sm:$0xff]
    %v137 = vld [vmem:[%s1 + $0x300] sm:$0xff]
    %v138 = vld [vmem:[%s1 + $0x308] sm:$0xff]
    %v139 = vld [vmem:[%s1 + $0x310] sm:$0xff]
    %v140 = vld [vmem:[%s1 + $0x318] sm:$0xff]
    %v141 = vld [vmem:[%s1 + $0x320] sm:$0xff]
    %v142 = vld [vmem:[%s1 + $0x328] sm:$0xff]
    %v143 = vld [vmem:[%s1 + $0x330] sm:$0xff]
    %v144 = vld [vmem:[%s1 + $0x338] sm:$0xff]
    %v145 = vld [vmem:[%s1 + $0x340] sm:$0xff]
    %v146 = vld [vmem:[%s1 + $0x348] sm:$0xff]
    %v147 = vld [vmem:[%s1 + $0x350] sm:$0xff]
    %v148 = vld [vmem:[%s1 + $0x358] sm:$0xff]
    %v149 = vld [vmem:[%s1 + $0x360] sm:$0xff]
    %v150 = vld [vmem:[%s1 + $0x368] sm:$0xff]
    %v151 = vld [vmem:[%s1 + $0x370] sm:$0xff]
    %v152 = vld [vmem:[%s1 + $0x378] sm:$0xff]
    %v153 = vld [vmem:[%s1 + $0x380] sm:$0xff]
    %v154 = vld [vmem:[%s1 + $0x388] sm:$0xff]
    %v155 = vld [vmem:[%s1 + $0x390] sm:$0xff]
    %v156 = vld [vmem:[%s1 + $0x398] sm:$0xff]
    %v157 = vld [vmem:[%s1 + $0x3a0] sm:$0xff]
    %v158 = vld [vmem:[%s1 + $0x3a8] sm:$0xff]
    %v159 = vld [vmem:[%s1 + $0x3b0] sm:$0xff]
    %v160 = vld [vmem:[%s1 + $0x3b8] sm:$0xff]
    %v161 = vld [vmem:[%s1 + $0x3c0] sm:$0xff]
    %v162 = vld [vmem:[%s1 + $0x3c8] sm:$0xff]
    %v163 = vld [vmem:[%s1 + $0x3d0] sm:$0xff]
    %v164 = vld [vmem:[%s1 + $0x3d8] sm:$0xff]
    %v165 = vld [vmem:[%s1 + $0x3e0] sm:$0xff]
    %v166 = vld [vmem:[%s1 + $0x3e8] sm:$0xff]
    %v167 = vld [vmem:[%s1 + $0x3f0] sm:$0xff]
    %v168 = vld [vmem:[%s1 + $0x3f8] sm:$0xff]
    %v169 = vld [vmem:[%s1 + $0x400] sm:$0xff]
    %v170 = vld [vmem:[%s1 + $0x408] sm:$0xff]
    %v171 = vld [vmem:[%s1 + $0x410] sm:$0xff]
    %v172 = vld [vmem:[%s1 + $0x418] sm:$0xff]
    %v173 = vld [vmem:[%s1 + $0x420] sm:$0xff]
    %v174 = vld [vmem:[%s1 + $0x428] sm:$0xff]
    %v175 = vld [vmem:[%s1 + $0x430] sm:$0xff]
    %v176 = vld [vmem:[%s1 + $0x438] sm:$0xff]
    %v177 = vld [vmem:[%s1 + $0x440] sm:$0xff]
    %v178 = vld [vmem:[%s1 + $0x448] sm:$0xff]
    %v179 = vld [vmem:[%s1 + $0x450] sm:$0xff]
    %v180 = vld [vmem:[%s1 + $0x458] sm:$0xff]
    %v181 = vld [vmem:[%s1 + $0x460] sm:$0xff]
    %v182 = vld [vmem:[%s1 + $0x468] sm:$0xff]
    %v183 = vld [vmem:[%s1 + $0x470] sm:$0xff]
    %v184 = vld [vmem:[%s1 + $0x478] sm:$0xff]
    %v185 = vld [vmem:[%s1 + $0x480] sm:$0xff]
    %v186 = vld [vmem:[%s1 + $0x488] sm:$0xff]
    %v187 = vld [vmem:[%s1 + $0x490] sm:$0xff]
    %v188 = vld [vmem:[%s1 + $0x498] sm:$0xff]
    %v189 = vld [vmem:[%s1 + $0x4a0] sm:$0xff]
    %v190 = vld [vmem:[%s1 + $0x4a8] sm:$0xff]
    %v191 = vld [vmem:[%s1 + $0x4b0] sm:$0xff]
    %v192 = vld [vmem:[%s1 + $0x4b8] sm:$0xff]
    %v193 = vld [vmem:[%s1 + $0x4c0] sm:$0xff]
    %v194 = vld [vmem:[%s1 + $0x4c8] sm:$0xff]
    %v195 = vld [vmem:[%s1 + $0x4d0] sm:$0xff]
    %v196 = vld [vmem:[%s1 + $0x4d8] sm:$0xff]
    %v197 = vld [vmem:[%s1 + $0x4e0] sm:$0xff]
    %v198 = vld [vmem:[%s1 + $0x4e8] sm:$0xff]
    %v199 = vld [vmem:[%s1 + $0x4f0] sm:$0xff]
    %v200 = vld [vmem:[%s1 + $0x4f8] sm:$0xff]
    %v201 = vld [vmem:[%s1 + $0x500] sm:$0xff]
    %v202 = vld [vmem:[%s1 + $0x508] sm:$0xff]
    %v203 = vld [vmem:[%s1 + $0x510] sm:$0xff]
    %v204 = vld [vmem:[%s1 + $0x518] sm:$0xff]
    %v205 = vld [vmem:[%s1 + $0x520] sm:$0xff]
    %v206 = vld [vmem:[%s1 + $0x528] sm:$0xff]
    %v207 = vld [vmem:[%s1 + $0x530] sm:$0xff]
    %v208 = vld [vmem:[%s1 + $0x538] sm:$0xff]
    %v209 = vld [vmem:[%s1 + $0x540] sm:$0xff]
    %v210 = vld [vmem:[%s1 + $0x548] sm:$0xff]
    %v211 = vld [vmem:[%s1 + $0x550] sm:$0xff]
    %v212 = vld [vmem:[%s1 + $0x558] sm:$0xff]
    %v213 = vld [vmem:[%s1 + $0x560] sm:$0xff]
    %v214 = vld [vmem:[%s1 + $0x568] sm:$0xff]
    %v215 = vld [vmem:[%s1 + $0x570] sm:$0xff]
    %v216 = vld [vmem:[%s1 + $0x578] sm:$0xff]
    %v217 = vld [vmem:[%s1 + $0x580] sm:$0xff]
    %v218 = vld [vmem:[%s1 + $0x588] sm:$0xff]
    %v219 = vld [vmem:[%s1 + $0x590] sm:$0xff]
    %v220 = vld [vmem:[%s1 + $0x598] sm:$0xff]
    %v221 = vld [vmem:[%s1 + $0x5a0] sm:$0xff]
    %v222 = vld [vmem:[%s1 + $0x5a8] sm:$0xff]
    %v223 = vld [vmem:[%s1 + $0x5b0] sm:$0xff]
    %v224 = vld [vmem:[%s1 + $0x5b8] sm:$0xff]
    %v225 = vld [vmem:[%s1 + $0x5c0] sm:$0xff]
    %v226 = vld [vmem:[%s1 + $0x5c8] sm:$0xff]
    %v227 = vld [vmem:[%s1 + $0x5d0] sm:$0xff]
    %v228 = vld [vmem:[%s1 + $0x5d8] sm:$0xff]
    %v229 = vld [vmem:[%s1 + $0x5e0] sm:$0xff]
    %v230 = vld [vmem:[%s1 + $0x5e8] sm:$0xff]
    %v231 = vld [vmem:[%s1 + $0x5f0] sm:$0xff]
    %v232 = vld [vmem:[%s1 + $0x5f8] sm:$0xff]
    %v233 = vld [vmem:[%s2] sm:$0xff]
    %v234 = vld [vmem:[%s2 + $0x8] sm:$0xff]
    %v235 = vld [vmem:[%s2 + $0x10] sm:$0xff]
    %v236 = vld [vmem:[%s2 + $0x18] sm:$0xff]
    %v237 = vld [vmem:[%s2 + $0x20] sm:$0xff]
    %v238 = vld [vmem:[%s2 + $0x28] sm:$0xff]
    %v239 = vld [vmem:[%s2 + $0x30] sm:$0xff]
    %v240 = vld [vmem:[%s2 + $0x38] sm:$0xff]
    %v241 = vld [vmem:[%s2 + $0x40] sm:$0xff]
    %v242 = vld [vmem:[%s2 + $0x48] sm:$0xff]
    %v243 = vld [vmem:[%s2 + $0x50] sm:$0xff]
    %v244 = vld [vmem:[%s2 + $0x58] sm:$0xff]
    %v245 = vld [vmem:[%s2 + $0x60] sm:$0xff]
    %v246 = vld [vmem:[%s2 + $0x68] sm:$0xff]
    %v247 = vld [vmem:[%s2 + $0x70] sm:$0xff]
    %v248 = vld [vmem:[%s2 + $0x78] sm:$0xff]
    %v261 = vunpack.c.l.b16 %v29
    %v262 = vunpack.c.h.b16 %v29
    %v263 = vunpack.c.l.b16 %v30
    %v264 = vunpack.c.h.b16 %v30
    %v265 = vunpack.c.l.b16 %v31
    %v266 = vunpack.c.h.b16 %v31
    %v267 = vunpack.c.l.b16 %v32
    %v268 = vunpack.c.h.b16 %v32
    %v269 = vunpack.c.l.b16 %v33
    %v270 = vunpack.c.h.b16 %v33
    %v271 = vunpack.c.l.b16 %v34
    %v272 = vunpack.c.h.b16 %v34
    %v273 = vunpack.c.l.b16 %v35
    %v274 = vunpack.c.h.b16 %v35
    %v275 = vunpack.c.l.b16 %v36
    %v276 = vunpack.c.h.b16 %v36
    %v277 = vunpack.c.l.b16 %v37
    %v278 = vunpack.c.h.b16 %v37
    %v279 = vunpack.c.l.b16 %v38
    %v280 = vunpack.c.h.b16 %v38
    %v281 = vunpack.c.l.b16 %v39
    %v282 = vunpack.c.h.b16 %v39
    %v283 = vunpack.c.l.b16 %v40
    %v284 = vunpack.c.h.b16 %v40
    %v285 = vpack.c.b16 %v267, %v261
    %v286 = vpack.c.b16 %v268, %v262
    %v287 = vpack.c.b16 %v269, %v263
    %v288 = vpack.c.b16 %v270, %v264
    %v289 = vpack.c.b16 %v271, %v265
    %v290 = vpack.c.b16 %v272, %v266
    %v291 = vpack.c.b16 %v279, %v273
    %v292 = vpack.c.b16 %v280, %v274
    %v293 = vpack.c.b16 %v281, %v275
    %v294 = vpack.c.b16 %v282, %v276
    %v295 = vpack.c.b16 %v283, %v277
    %v296 = vpack.c.b16 %v284, %v278
    %v501 = vunpack.c.l.b16 %v41
    %v502 = vunpack.c.h.b16 %v41
    %v503 = vunpack.c.l.b16 %v42
    %v504 = vunpack.c.h.b16 %v42
    %v505 = vunpack.c.l.b16 %v43
    %v506 = vunpack.c.h.b16 %v43
    %v507 = vunpack.c.l.b16 %v44
    %v508 = vunpack.c.h.b16 %v44
    %v509 = vunpack.c.l.b16 %v45
    %v510 = vunpack.c.h.b16 %v45
    %v511 = vunpack.c.l.b16 %v46
    %v512 = vunpack.c.h.b16 %v46
    %v513 = vunpack.c.l.b16 %v47
    %v514 = vunpack.c.h.b16 %v47
    %v515 = vunpack.c.l.b16 %v48
    %v516 = vunpack.c.h.b16 %v48
    %v517 = vunpack.c.l.b16 %v49
    %v518 = vunpack.c.h.b16 %v49
    %v519 = vunpack.c.l.b16 %v50
    %v520 = vunpack.c.h.b16 %v50
    %v521 = vunpack.c.l.b16 %v51
    %v522 = vunpack.c.h.b16 %v51
    %v523 = vunpack.c.l.b16 %v52
    %v524 = vunpack.c.h.b16 %v52
    %v525 = vunpack.c.l.b16 %v53
    %v526 = vunpack.c.h.b16 %v53
    %v527 = vunpack.c.l.b16 %v54
    %v528 = vunpack.c.h.b16 %v54
    %v529 = vunpack.c.l.b16 %v55
    %v530 = vunpack.c.h.b16 %v55
    %v531 = vunpack.c.l.b16 %v56
    %v532 = vunpack.c.h.b16 %v56
    %v533 = vunpack.c.l.b16 %v57
    %v534 = vunpack.c.h.b16 %v57
    %v535 = vunpack.c.l.b16 %v58
    %v536 = vunpack.c.h.b16 %v58
    %v537 = vunpack.c.l.b16 %v59
    %v538 = vunpack.c.h.b16 %v59
    %v539 = vunpack.c.l.b16 %v60
    %v540 = vunpack.c.h.b16 %v60
    %v541 = vunpack.c.l.b16 %v61
    %v542 = vunpack.c.h.b16 %v61
    %v543 = vunpack.c.l.b16 %v62
    %v544 = vunpack.c.h.b16 %v62
    %v545 = vunpack.c.l.b16 %v63
    %v546 = vunpack.c.h.b16 %v63
    %v547 = vunpack.c.l.b16 %v64
    %v548 = vunpack.c.h.b16 %v64
    %v549 = vunpack.c.l.b16 %v65
    %v550 = vunpack.c.h.b16 %v65
    %v551 = vunpack.c.l.b16 %v66
    %v552 = vunpack.c.h.b16 %v66
    %v553 = vunpack.c.l.b16 %v67
    %v554 = vunpack.c.h.b16 %v67
    %v555 = vunpack.c.l.b16 %v68
    %v556 = vunpack.c.h.b16 %v68
    %v557 = vunpack.c.l.b16 %v69
    %v558 = vunpack.c.h.b16 %v69
    %v559 = vunpack.c.l.b16 %v70
    %v560 = vunpack.c.h.b16 %v70
    %v561 = vunpack.c.l.b16 %v71
    %v562 = vunpack.c.h.b16 %v71
    %v563 = vunpack.c.l.b16 %v72
    %v564 = vunpack.c.h.b16 %v72
    %v565 = vunpack.c.l.b16 %v73
    %v566 = vunpack.c.h.b16 %v73
    %v567 = vunpack.c.l.b16 %v74
    %v568 = vunpack.c.h.b16 %v74
    %v569 = vunpack.c.l.b16 %v75
    %v570 = vunpack.c.h.b16 %v75
    %v571 = vunpack.c.l.b16 %v76
    %v572 = vunpack.c.h.b16 %v76
    %v573 = vunpack.c.l.b16 %v77
    %v574 = vunpack.c.h.b16 %v77
    %v575 = vunpack.c.l.b16 %v78
    %v576 = vunpack.c.h.b16 %v78
    %v577 = vunpack.c.l.b16 %v79
    %v578 = vunpack.c.h.b16 %v79
    %v579 = vunpack.c.l.b16 %v80
    %v580 = vunpack.c.h.b16 %v80
    %v581 = vunpack.c.l.b16 %v81
    %v582 = vunpack.c.h.b16 %v81
    %v583 = vunpack.c.l.b16 %v82
    %v584 = vunpack.c.h.b16 %v82
    %v585 = vunpack.c.l.b16 %v83
    %v586 = vunpack.c.h.b16 %v83
    %v587 = vunpack.c.l.b16 %v84
    %v588 = vunpack.c.h.b16 %v84
    %v589 = vunpack.c.l.b16 %v85
    %v590 = vunpack.c.h.b16 %v85
    %v591 = vunpack.c.l.b16 %v86
    %v592 = vunpack.c.h.b16 %v86
    %v593 = vunpack.c.l.b16 %v87
    %v594 = vunpack.c.h.b16 %v87
    %v595 = vunpack.c.l.b16 %v88
    %v596 = vunpack.c.h.b16 %v88
    %v597 = vunpack.c.l.b16 %v89
    %v598 = vunpack.c.h.b16 %v89
    %v599 = vunpack.c.l.b16 %v90
    %v600 = vunpack.c.h.b16 %v90
    %v601 = vunpack.c.l.b16 %v91
    %v602 = vunpack.c.h.b16 %v91
    %v603 = vunpack.c.l.b16 %v92
    %v604 = vunpack.c.h.b16 %v92
    %v605 = vunpack.c.l.b16 %v93
    %v606 = vunpack.c.h.b16 %v93
    %v607 = vunpack.c.l.b16 %v94
    %v608 = vunpack.c.h.b16 %v94
    %v609 = vunpack.c.l.b16 %v95
    %v610 = vunpack.c.h.b16 %v95
    %v611 = vunpack.c.l.b16 %v96
    %v612 = vunpack.c.h.b16 %v96
    %v613 = vunpack.c.l.b16 %v97
    %v614 = vunpack.c.h.b16 %v97
    %v615 = vunpack.c.l.b16 %v98
    %v616 = vunpack.c.h.b16 %v98
    %v617 = vunpack.c.l.b16 %v99
    %v618 = vunpack.c.h.b16 %v99
    %v619 = vunpack.c.l.b16 %v100
    %v620 = vunpack.c.h.b16 %v100
    %v621 = vunpack.c.l.b16 %v101
    %v622 = vunpack.c.h.b16 %v101
    %v623 = vunpack.c.l.b16 %v102
    %v624 = vunpack.c.h.b16 %v102
    %v625 = vunpack.c.l.b16 %v103
    %v626 = vunpack.c.h.b16 %v103
    %v627 = vunpack.c.l.b16 %v104
    %v628 = vunpack.c.h.b16 %v104
    %v629 = vunpack.c.l.b16 %v105
    %v630 = vunpack.c.h.b16 %v105
    %v631 = vunpack.c.l.b16 %v106
    %v632 = vunpack.c.h.b16 %v106
    %v633 = vunpack.c.l.b16 %v107
    %v634 = vunpack.c.h.b16 %v107
    %v635 = vunpack.c.l.b16 %v108
    %v636 = vunpack.c.h.b16 %v108
    %v637 = vunpack.c.l.b16 %v109
    %v638 = vunpack.c.h.b16 %v109
    %v639 = vunpack.c.l.b16 %v110
    %v640 = vunpack.c.h.b16 %v110
    %v641 = vunpack.c.l.b16 %v111
    %v642 = vunpack.c.h.b16 %v111
    %v643 = vunpack.c.l.b16 %v112
    %v644 = vunpack.c.h.b16 %v112
    %v645 = vunpack.c.l.b16 %v113
    %v646 = vunpack.c.h.b16 %v113
    %v647 = vunpack.c.l.b16 %v114
    %v648 = vunpack.c.h.b16 %v114
    %v649 = vunpack.c.l.b16 %v115
    %v650 = vunpack.c.h.b16 %v115
    %v651 = vunpack.c.l.b16 %v116
    %v652 = vunpack.c.h.b16 %v116
    %v653 = vunpack.c.l.b16 %v117
    %v654 = vunpack.c.h.b16 %v117
    %v655 = vunpack.c.l.b16 %v118
    %v656 = vunpack.c.h.b16 %v118
    %v657 = vunpack.c.l.b16 %v119
    %v658 = vunpack.c.h.b16 %v119
    %v659 = vunpack.c.l.b16 %v120
    %v660 = vunpack.c.h.b16 %v120
    %v661 = vunpack.c.l.b16 %v121
    %v662 = vunpack.c.h.b16 %v121
    %v663 = vunpack.c.l.b16 %v122
    %v664 = vunpack.c.h.b16 %v122
    %v665 = vunpack.c.l.b16 %v123
    %v666 = vunpack.c.h.b16 %v123
    %v667 = vunpack.c.l.b16 %v124
    %v668 = vunpack.c.h.b16 %v124
    %v669 = vunpack.c.l.b16 %v125
    %v670 = vunpack.c.h.b16 %v125
    %v671 = vunpack.c.l.b16 %v126
    %v672 = vunpack.c.h.b16 %v126
    %v673 = vunpack.c.l.b16 %v127
    %v674 = vunpack.c.h.b16 %v127
    %v675 = vunpack.c.l.b16 %v128
    %v676 = vunpack.c.h.b16 %v128
    %v677 = vunpack.c.l.b16 %v129
    %v678 = vunpack.c.h.b16 %v129
    %v679 = vunpack.c.l.b16 %v130
    %v680 = vunpack.c.h.b16 %v130
    %v681 = vunpack.c.l.b16 %v131
    %v682 = vunpack.c.h.b16 %v131
    %v683 = vunpack.c.l.b16 %v132
    %v684 = vunpack.c.h.b16 %v132
    %v685 = vunpack.c.l.b16 %v133
    %v686 = vunpack.c.h.b16 %v133
    %v687 = vunpack.c.l.b16 %v134
    %v688 = vunpack.c.h.b16 %v134
    %v689 = vunpack.c.l.b16 %v135
    %v690 = vunpack.c.h.b16 %v135
    %v691 = vunpack.c.l.b16 %v136
    %v692 = vunpack.c.h.b16 %v136
    %v693 = vunpack.c.l.b16 %v137
    %v694 = vunpack.c.h.b16 %v137
    %v695 = vunpack.c.l.b16 %v138
    %v696 = vunpack.c.h.b16 %v138
    %v697 = vunpack.c.l.b16 %v139
    %v698 = vunpack.c.h.b16 %v139
    %v699 = vunpack.c.l.b16 %v140
    %v700 = vunpack.c.h.b16 %v140
    %v701 = vunpack.c.l.b16 %v141
    %v702 = vunpack.c.h.b16 %v141
    %v703 = vunpack.c.l.b16 %v142
    %v704 = vunpack.c.h.b16 %v142
    %v705 = vunpack.c.l.b16 %v143
    %v706 = vunpack.c.h.b16 %v143
    %v707 = vunpack.c.l.b16 %v144
    %v708 = vunpack.c.h.b16 %v144
    %v709 = vunpack.c.l.b16 %v145
    %v710 = vunpack.c.h.b16 %v145
    %v711 = vunpack.c.l.b16 %v146
    %v712 = vunpack.c.h.b16 %v146
    %v713 = vunpack.c.l.b16 %v147
    %v714 = vunpack.c.h.b16 %v147
    %v715 = vunpack.c.l.b16 %v148
    %v716 = vunpack.c.h.b16 %v148
    %v717 = vunpack.c.l.b16 %v149
    %v718 = vunpack.c.h.b16 %v149
    %v719 = vunpack.c.l.b16 %v150
    %v720 = vunpack.c.h.b16 %v150
    %v721 = vunpack.c.l.b16 %v151
    %v722 = vunpack.c.h.b16 %v151
    %v723 = vunpack.c.l.b16 %v152
    %v724 = vunpack.c.h.b16 %v152
    %v725 = vunpack.c.l.b16 %v153
    %v726 = vunpack.c.h.b16 %v153
    %v727 = vunpack.c.l.b16 %v154
    %v728 = vunpack.c.h.b16 %v154
    %v729 = vunpack.c.l.b16 %v155
    %v730 = vunpack.c.h.b16 %v155
    %v731 = vunpack.c.l.b16 %v156
    %v732 = vunpack.c.h.b16 %v156
    %v733 = vunpack.c.l.b16 %v157
    %v734 = vunpack.c.h.b16 %v157
    %v735 = vunpack.c.l.b16 %v158
    %v736 = vunpack.c.h.b16 %v158
    %v737 = vunpack.c.l.b16 %v159
    %v738 = vunpack.c.h.b16 %v159
    %v739 = vunpack.c.l.b16 %v160
    %v740 = vunpack.c.h.b16 %v160
    %v741 = vunpack.c.l.b16 %v161
    %v742 = vunpack.c.h.b16 %v161
    %v743 = vunpack.c.l.b16 %v162
    %v744 = vunpack.c.h.b16 %v162
    %v745 = vunpack.c.l.b16 %v163
    %v746 = vunpack.c.h.b16 %v163
    %v747 = vunpack.c.l.b16 %v164
    %v748 = vunpack.c.h.b16 %v164
    %v749 = vunpack.c.l.b16 %v165
    %v750 = vunpack.c.h.b16 %v165
    %v751 = vunpack.c.l.b16 %v166
    %v752 = vunpack.c.h.b16 %v166
    %v753 = vunpack.c.l.b16 %v167
    %v754 = vunpack.c.h.b16 %v167
    %v755 = vunpack.c.l.b16 %v168
    %v756 = vunpack.c.h.b16 %v168
    %v757 = vunpack.c.l.b16 %v169
    %v758 = vunpack.c.h.b16 %v169
    %v759 = vunpack.c.l.b16 %v170
    %v760 = vunpack.c.h.b16 %v170
    %v761 = vunpack.c.l.b16 %v171
    %v762 = vunpack.c.h.b16 %v171
    %v763 = vunpack.c.l.b16 %v172
    %v764 = vunpack.c.h.b16 %v172
    %v765 = vunpack.c.l.b16 %v173
    %v766 = vunpack.c.h.b16 %v173
    %v767 = vunpack.c.l.b16 %v174
    %v768 = vunpack.c.h.b16 %v174
    %v769 = vunpack.c.l.b16 %v175
    %v770 = vunpack.c.h.b16 %v175
    %v771 = vunpack.c.l.b16 %v176
    %v772 = vunpack.c.h.b16 %v176
    %v773 = vunpack.c.l.b16 %v177
    %v774 = vunpack.c.h.b16 %v177
    %v775 = vunpack.c.l.b16 %v178
    %v776 = vunpack.c.h.b16 %v178
    %v777 = vunpack.c.l.b16 %v179
    %v778 = vunpack.c.h.b16 %v179
    %v779 = vunpack.c.l.b16 %v180
    %v780 = vunpack.c.h.b16 %v180
    %v781 = vunpack.c.l.b16 %v181
    %v782 = vunpack.c.h.b16 %v181
    %v783 = vunpack.c.l.b16 %v182
    %v784 = vunpack.c.h.b16 %v182
    %v785 = vunpack.c.l.b16 %v183
    %v786 = vunpack.c.h.b16 %v183
    %v787 = vunpack.c.l.b16 %v184
    %v788 = vunpack.c.h.b16 %v184
    %v789 = vunpack.c.l.b16 %v185
    %v790 = vunpack.c.h.b16 %v185
    %v791 = vunpack.c.l.b16 %v186
    %v792 = vunpack.c.h.b16 %v186
    %v793 = vunpack.c.l.b16 %v187
    %v794 = vunpack.c.h.b16 %v187
    %v795 = vunpack.c.l.b16 %v188
    %v796 = vunpack.c.h.b16 %v188
    %v797 = vunpack.c.l.b16 %v189
    %v798 = vunpack.c.h.b16 %v189
    %v799 = vunpack.c.l.b16 %v190
    %v800 = vunpack.c.h.b16 %v190
    %v801 = vunpack.c.l.b16 %v191
    %v802 = vunpack.c.h.b16 %v191
    %v803 = vunpack.c.l.b16 %v192
    %v804 = vunpack.c.h.b16 %v192
    %v805 = vunpack.c.l.b16 %v193
    %v806 = vunpack.c.h.b16 %v193
    %v807 = vunpack.c.l.b16 %v194
    %v808 = vunpack.c.h.b16 %v194
    %v809 = vunpack.c.l.b16 %v195
    %v810 = vunpack.c.h.b16 %v195
    %v811 = vunpack.c.l.b16 %v196
    %v812 = vunpack.c.h.b16 %v196
    %v813 = vunpack.c.l.b16 %v197
    %v814 = vunpack.c.h.b16 %v197
    %v815 = vunpack.c.l.b16 %v198
    %v816 = vunpack.c.h.b16 %v198
    %v817 = vunpack.c.l.b16 %v199
    %v818 = vunpack.c.h.b16 %v199
    %v819 = vunpack.c.l.b16 %v200
    %v820 = vunpack.c.h.b16 %v200
    %v821 = vunpack.c.l.b16 %v201
    %v822 = vunpack.c.h.b16 %v201
    %v823 = vunpack.c.l.b16 %v202
    %v824 = vunpack.c.h.b16 %v202
    %v825 = vunpack.c.l.b16 %v203
    %v826 = vunpack.c.h.b16 %v203
    %v827 = vunpack.c.l.b16 %v204
    %v828 = vunpack.c.h.b16 %v204
    %v829 = vunpack.c.l.b16 %v205
    %v830 = vunpack.c.h.b16 %v205
    %v831 = vunpack.c.l.b16 %v206
    %v832 = vunpack.c.h.b16 %v206
    %v833 = vunpack.c.l.b16 %v207
    %v834 = vunpack.c.h.b16 %v207
    %v835 = vunpack.c.l.b16 %v208
    %v836 = vunpack.c.h.b16 %v208
    %v837 = vunpack.c.l.b16 %v209
    %v838 = vunpack.c.h.b16 %v209
    %v839 = vunpack.c.l.b16 %v210
    %v840 = vunpack.c.h.b16 %v210
    %v841 = vunpack.c.l.b16 %v211
    %v842 = vunpack.c.h.b16 %v211
    %v843 = vunpack.c.l.b16 %v212
    %v844 = vunpack.c.h.b16 %v212
    %v845 = vunpack.c.l.b16 %v213
    %v846 = vunpack.c.h.b16 %v213
    %v847 = vunpack.c.l.b16 %v214
    %v848 = vunpack.c.h.b16 %v214
    %v849 = vunpack.c.l.b16 %v215
    %v850 = vunpack.c.h.b16 %v215
    %v851 = vunpack.c.l.b16 %v216
    %v852 = vunpack.c.h.b16 %v216
    %v853 = vunpack.c.l.b16 %v217
    %v854 = vunpack.c.h.b16 %v217
    %v855 = vunpack.c.l.b16 %v218
    %v856 = vunpack.c.h.b16 %v218
    %v857 = vunpack.c.l.b16 %v219
    %v858 = vunpack.c.h.b16 %v219
    %v859 = vunpack.c.l.b16 %v220
    %v860 = vunpack.c.h.b16 %v220
    %v861 = vunpack.c.l.b16 %v221
    %v862 = vunpack.c.h.b16 %v221
    %v863 = vunpack.c.l.b16 %v222
    %v864 = vunpack.c.h.b16 %v222
    %v865 = vunpack.c.l.b16 %v223
    %v866 = vunpack.c.h.b16 %v223
    %v867 = vunpack.c.l.b16 %v224
    %v868 = vunpack.c.h.b16 %v224
    %v869 = vunpack.c.l.b16 %v225
    %v870 = vunpack.c.h.b16 %v225
    %v871 = vunpack.c.l.b16 %v226
    %v872 = vunpack.c.h.b16 %v226
    %v873 = vunpack.c.l.b16 %v227
    %v874 = vunpack.c.h.b16 %v227
    %v875 = vunpack.c.l.b16 %v228
    %v876 = vunpack.c.h.b16 %v228
    %v877 = vunpack.c.l.b16 %v229
    %v878 = vunpack.c.h.b16 %v229
    %v879 = vunpack.c.l.b16 %v230
    %v880 = vunpack.c.h.b16 %v230
    %v881 = vunpack.c.l.b16 %v231
    %v882 = vunpack.c.h.b16 %v231
    %v883 = vunpack.c.l.b16 %v232
    %v884 = vunpack.c.h.b16 %v232
    %v885 = vpack.c.b16 %v505, %v501
    %v886 = vpack.c.b16 %v506, %v502
    %v887 = vpack.c.b16 %v507, %v503
    %v888 = vpack.c.b16 %v508, %v504
    %v889 = vpack.c.b16 %v513, %v509
    %v890 = vpack.c.b16 %v514, %v510
    %v891 = vpack.c.b16 %v515, %v511
    %v892 = vpack.c.b16 %v516, %v512
    %v893 = vpack.c.b16 %v521, %v517
    %v894 = vpack.c.b16 %v522, %v518
    %v895 = vpack.c.b16 %v523, %v519
    %v896 = vpack.c.b16 %v524, %v520
    %v897 = vpack.c.b16 %v529, %v525
    %v898 = vpack.c.b16 %v530, %v526
    %v899 = vpack.c.b16 %v531, %v527
    %v900 = vpack.c.b16 %v532, %v528
    %v901 = vpack.c.b16 %v537, %v533
    %v902 = vpack.c.b16 %v538, %v534
    %v903 = vpack.c.b16 %v539, %v535
    %v904 = vpack.c.b16 %v540, %v536
    %v905 = vpack.c.b16 %v545, %v541
    %v906 = vpack.c.b16 %v546, %v542
    %v907 = vpack.c.b16 %v547, %v543
    %v908 = vpack.c.b16 %v548, %v544
    %v909 = vpack.c.b16 %v553, %v549
    %v910 = vpack.c.b16 %v554, %v550
    %v911 = vpack.c.b16 %v555, %v551
    %v912 = vpack.c.b16 %v556, %v552
    %v913 = vpack.c.b16 %v561, %v557
    %v914 = vpack.c.b16 %v562, %v558
    %v915 = vpack.c.b16 %v563, %v559
    %v916 = vpack.c.b16 %v564, %v560
    %v917 = vpack.c.b16 %v569, %v565
    %v918 = vpack.c.b16 %v570, %v566
    %v919 = vpack.c.b16 %v571, %v567
    %v920 = vpack.c.b16 %v572, %v568
    %v921 = vpack.c.b16 %v577, %v573
    %v922 = vpack.c.b16 %v578, %v574
    %v923 = vpack.c.b16 %v579, %v575
    %v924 = vpack.c.b16 %v580, %v576
    %v925 = vpack.c.b16 %v585, %v581
    %v926 = vpack.c.b16 %v586, %v582
    %v927 = vpack.c.b16 %v587, %v583
    %v928 = vpack.c.b16 %v588, %v584
    %v929 = vpack.c.b16 %v593, %v589
    %v930 = vpack.c.b16 %v594, %v590
    %v931 = vpack.c.b16 %v595, %v591
    %v932 = vpack.c.b16 %v596, %v592
    %v933 = vpack.c.b16 %v601, %v597
    %v934 = vpack.c.b16 %v602, %v598
    %v935 = vpack.c.b16 %v603, %v599
    %v936 = vpack.c.b16 %v604, %v600
    %v937 = vpack.c.b16 %v609, %v605
    %v938 = vpack.c.b16 %v610, %v606
    %v939 = vpack.c.b16 %v611, %v607
    %v940 = vpack.c.b16 %v612, %v608
    %v941 = vpack.c.b16 %v617, %v613
    %v942 = vpack.c.b16 %v618, %v614
    %v943 = vpack.c.b16 %v619, %v615
    %v944 = vpack.c.b16 %v620, %v616
    %v945 = vpack.c.b16 %v625, %v621
    %v946 = vpack.c.b16 %v626, %v622
    %v947 = vpack.c.b16 %v627, %v623
    %v948 = vpack.c.b16 %v628, %v624
    %v949 = vpack.c.b16 %v633, %v629
    %v950 = vpack.c.b16 %v634, %v630
    %v951 = vpack.c.b16 %v635, %v631
    %v952 = vpack.c.b16 %v636, %v632
    %v953 = vpack.c.b16 %v641, %v637
    %v954 = vpack.c.b16 %v642, %v638
    %v955 = vpack.c.b16 %v643, %v639
    %v956 = vpack.c.b16 %v644, %v640
    %v957 = vpack.c.b16 %v649, %v645
    %v958 = vpack.c.b16 %v650, %v646
    %v959 = vpack.c.b16 %v651, %v647
    %v960 = vpack.c.b16 %v652, %v648
    %v961 = vpack.c.b16 %v657, %v653
    %v962 = vpack.c.b16 %v658, %v654
    %v963 = vpack.c.b16 %v659, %v655
    %v964 = vpack.c.b16 %v660, %v656
    %v965 = vpack.c.b16 %v665, %v661
    %v966 = vpack.c.b16 %v666, %v662
    %v967 = vpack.c.b16 %v667, %v663
    %v968 = vpack.c.b16 %v668, %v664
    %v969 = vpack.c.b16 %v673, %v669
    %v970 = vpack.c.b16 %v674, %v670
    %v971 = vpack.c.b16 %v675, %v671
    %v972 = vpack.c.b16 %v676, %v672
    %v973 = vpack.c.b16 %v681, %v677
    %v974 = vpack.c.b16 %v682, %v678
    %v975 = vpack.c.b16 %v683, %v679
    %v976 = vpack.c.b16 %v684, %v680
    %v977 = vpack.c.b16 %v689, %v685
    %v978 = vpack.c.b16 %v690, %v686
    %v979 = vpack.c.b16 %v691, %v687
    %v980 = vpack.c.b16 %v692, %v688
    %v981 = vpack.c.b16 %v697, %v693
    %v982 = vpack.c.b16 %v698, %v694
    %v983 = vpack.c.b16 %v699, %v695
    %v984 = vpack.c.b16 %v700, %v696
    %v985 = vpack.c.b16 %v705, %v701
    %v986 = vpack.c.b16 %v706, %v702
    %v987 = vpack.c.b16 %v707, %v703
    %v988 = vpack.c.b16 %v708, %v704
    %v989 = vpack.c.b16 %v713, %v709
    %v990 = vpack.c.b16 %v714, %v710
    %v991 = vpack.c.b16 %v715, %v711
    %v992 = vpack.c.b16 %v716, %v712
    %v993 = vpack.c.b16 %v721, %v717
    %v994 = vpack.c.b16 %v722, %v718
    %v995 = vpack.c.b16 %v723, %v719
    %v996 = vpack.c.b16 %v724, %v720
    %v997 = vpack.c.b16 %v729, %v725
    %v998 = vpack.c.b16 %v730, %v726
    %v999 = vpack.c.b16 %v731, %v727
    %v1000 = vpack.c.b16 %v732, %v728
    %v1001 = vpack.c.b16 %v737, %v733
    %v1002 = vpack.c.b16 %v738, %v734
    %v1003 = vpack.c.b16 %v739, %v735
    %v1004 = vpack.c.b16 %v740, %v736
    %v1005 = vpack.c.b16 %v745, %v741
    %v1006 = vpack.c.b16 %v746, %v742
    %v1007 = vpack.c.b16 %v747, %v743
    %v1008 = vpack.c.b16 %v748, %v744
    %v1009 = vpack.c.b16 %v753, %v749
    %v1010 = vpack.c.b16 %v754, %v750
    %v1011 = vpack.c.b16 %v755, %v751
    %v1012 = vpack.c.b16 %v756, %v752
    %v1013 = vpack.c.b16 %v761, %v757
    %v1014 = vpack.c.b16 %v762, %v758
    %v1015 = vpack.c.b16 %v763, %v759
    %v1016 = vpack.c.b16 %v764, %v760
    %v1017 = vpack.c.b16 %v769, %v765
    %v1018 = vpack.c.b16 %v770, %v766
    %v1019 = vpack.c.b16 %v771, %v767
    %v1020 = vpack.c.b16 %v772, %v768
    %v1021 = vpack.c.b16 %v777, %v773
    %v1022 = vpack.c.b16 %v778, %v774
    %v1023 = vpack.c.b16 %v779, %v775
    %v1024 = vpack.c.b16 %v780, %v776
    %v1025 = vpack.c.b16 %v785, %v781
    %v1026 = vpack.c.b16 %v786, %v782
    %v1027 = vpack.c.b16 %v787, %v783
    %v1028 = vpack.c.b16 %v788, %v784
    %v1029 = vpack.c.b16 %v793, %v789
    %v1030 = vpack.c.b16 %v794, %v790
    %v1031 = vpack.c.b16 %v795, %v791
    %v1032 = vpack.c.b16 %v796, %v792
    %v1033 = vpack.c.b16 %v801, %v797
    %v1034 = vpack.c.b16 %v802, %v798
    %v1035 = vpack.c.b16 %v803, %v799
    %v1036 = vpack.c.b16 %v804, %v800
    %v1037 = vpack.c.b16 %v809, %v805
    %v1038 = vpack.c.b16 %v810, %v806
    %v1039 = vpack.c.b16 %v811, %v807
    %v1040 = vpack.c.b16 %v812, %v808
    %v1041 = vpack.c.b16 %v817, %v813
    %v1042 = vpack.c.b16 %v818, %v814
    %v1043 = vpack.c.b16 %v819, %v815
    %v1044 = vpack.c.b16 %v820, %v816
    %v1045 = vpack.c.b16 %v825, %v821
    %v1046 = vpack.c.b16 %v826, %v822
    %v1047 = vpack.c.b16 %v827, %v823
    %v1048 = vpack.c.b16 %v828, %v824
    %v1049 = vpack.c.b16 %v833, %v829
    %v1050 = vpack.c.b16 %v834, %v830
    %v1051 = vpack.c.b16 %v835, %v831
    %v1052 = vpack.c.b16 %v836, %v832
    %v1053 = vpack.c.b16 %v841, %v837
    %v1054 = vpack.c.b16 %v842, %v838
    %v1055 = vpack.c.b16 %v843, %v839
    %v1056 = vpack.c.b16 %v844, %v840
    %v1057 = vpack.c.b16 %v849, %v845
    %v1058 = vpack.c.b16 %v850, %v846
    %v1059 = vpack.c.b16 %v851, %v847
    %v1060 = vpack.c.b16 %v852, %v848
    %v1061 = vpack.c.b16 %v857, %v853
    %v1062 = vpack.c.b16 %v858, %v854
    %v1063 = vpack.c.b16 %v859, %v855
    %v1064 = vpack.c.b16 %v860, %v856
    %v1065 = vpack.c.b16 %v865, %v861
    %v1066 = vpack.c.b16 %v866, %v862
    %v1067 = vpack.c.b16 %v867, %v863
    %v1068 = vpack.c.b16 %v868, %v864
    %v1069 = vpack.c.b16 %v873, %v869
    %v1070 = vpack.c.b16 %v874, %v870
    %v1071 = vpack.c.b16 %v875, %v871
    %v1072 = vpack.c.b16 %v876, %v872
    %v1073 = vpack.c.b16 %v881, %v877
    %v1074 = vpack.c.b16 %v882, %v878
    %v1075 = vpack.c.b16 %v883, %v879
    %v1076 = vpack.c.b16 %v884, %v880
    %1269 = vmatprep.subr.bf16.mxu0 %v886
    %1270 = vmatpush1.bf16.msra.mxu0 %v885
    %1271 = vmatprep.subr.bf16.mxu0 %v890
    %1272 = vmatpush1.bf16.msra.mxu0 %v889
    %1273 = vmatprep.subr.bf16.mxu0 %v894
    %1274 = vmatpush1.bf16.msra.mxu0 %v893
    %1275 = vmatprep.subr.bf16.mxu0 %v898
    %1276 = vmatpush1.bf16.msra.mxu0 %v897
    %1277 = vmatprep.subr.bf16.mxu0 %v902
    %1278 = vmatpush1.bf16.msra.mxu0 %v901
    %1279 = vmatprep.subr.bf16.mxu0 %v906
    %1280 = vmatpush1.bf16.msra.mxu0 %v905
    %1281 = vmatprep.subr.bf16.mxu0 %v910
    %1282 = vmatpush1.bf16.msra.mxu0 %v909
    %1283 = vmatprep.subr.bf16.mxu0 %v914
    %1284 = vmatpush1.bf16.msra.mxu0 %v913
    %1285 = vmatprep.subr.bf16.mxu0 %v918
    %1286 = vmatpush1.bf16.msra.mxu0 %v917
    %1287 = vmatprep.subr.bf16.mxu0 %v922
    %1288 = vmatpush1.bf16.msra.mxu0 %v921
    %1289 = vmatprep.subr.bf16.mxu0 %v926
    %1290 = vmatpush1.bf16.msra.mxu0 %v925
    %1291 = vmatprep.subr.bf16.mxu0 %v930
    %1292 = vmatpush1.bf16.msra.mxu0 %v929
    %1293 = vmatprep.subr.bf16.mxu0 %v934
    %1294 = vmatpush1.bf16.msra.mxu0 %v933
    %1295 = vmatprep.subr.bf16.mxu0 %v938
    %1296 = vmatpush1.bf16.msra.mxu0 %v937
    %1297 = vmatprep.subr.bf16.mxu0 %v942
    %1298 = vmatpush1.bf16.msra.mxu0 %v941
    %1299 = vmatprep.subr.bf16.mxu0 %v946
    %1300 = vmatpush1.bf16.msra.mxu0 %v945
    %1301 = vmatprep.mubr.bf16.mxu0 %v286
    %1302 = vmatmul.mubr.bf16.gmra.mrb[0].mxu0 %v285
    %v1303 = vpop.f32.mrb[0].mxu0
    %v1304 = vadd.f32 %v233, %v1303
    %v1305 = vpop.f32.mrb[0].mxu0
    %v1306 = vadd.f32 %v234, %v1305
    %v1307 = vpop.f32.mrb[0].mxu0
    %v1308 = vadd.f32 %v237, %v1307
    %v1309 = vpop.f32.mrb[0].mxu0
    %v1310 = vadd.f32 %v238, %v1309
    %1311 = vmatprep.mubr.bf16.mxu0 %v292
    %1312 = vmatmul.mubr.bf16.gmra.mrb[0].mxu0 %v291
    %v1313 = vpop.f32.mrb[0].mxu0
    %v1314 = vadd.f32 %v241, %v1313
    %v1315 = vpop.f32.mrb[0].mxu0
    %v1316 = vadd.f32 %v242, %v1315
    %v1317 = vpop.f32.mrb[0].mxu0
    %v1318 = vadd.f32 %v245, %v1317
    %v1319 = vpop.f32.mrb[0].mxu0
    %v1320 = vadd.f32 %v246, %v1319
    %1321 = vdwg.mxu0
    %1322 = vmatprep.subr.bf16.mxu0 %v950
    %1323 = vmatpush1.bf16.msra.mxu0 %v949
    %1324 = vmatprep.subr.bf16.mxu0 %v954
    %1325 = vmatpush1.bf16.msra.mxu0 %v953
    %1326 = vmatprep.subr.bf16.mxu0 %v958
    %1327 = vmatpush1.bf16.msra.mxu0 %v957
    %1328 = vmatprep.subr.bf16.mxu0 %v962
    %1329 = vmatpush1.bf16.msra.mxu0 %v961
    %1330 = vmatprep.subr.bf16.mxu0 %v966
    %1331 = vmatpush1.bf16.msra.mxu0 %v965
    %1332 = vmatprep.subr.bf16.mxu0 %v970
    %1333 = vmatpush1.bf16.msra.mxu0 %v969
    %1334 = vmatprep.subr.bf16.mxu0 %v974
    %1335 = vmatpush1.bf16.msra.mxu0 %v973
    %1336 = vmatprep.subr.bf16.mxu0 %v978
    %1337 = vmatpush1.bf16.msra.mxu0 %v977
    %1338 = vmatprep.subr.bf16.mxu0 %v982
    %1339 = vmatpush1.bf16.msra.mxu0 %v981
    %1340 = vmatprep.subr.bf16.mxu0 %v986
    %1341 = vmatpush1.bf16.msra.mxu0 %v985
    %1342 = vmatprep.subr.bf16.mxu0 %v990
    %1343 = vmatpush1.bf16.msra.mxu0 %v989
    %1344 = vmatprep.subr.bf16.mxu0 %v994
    %1345 = vmatpush1.bf16.msra.mxu0 %v993
    %1346 = vmatprep.subr.bf16.mxu0 %v998
    %1347 = vmatpush1.bf16.msra.mxu0 %v997
    %1348 = vmatprep.subr.bf16.mxu0 %v1002
    %1349 = vmatpush1.bf16.msra.mxu0 %v1001
    %1350 = vmatprep.subr.bf16.mxu0 %v1006
    %1351 = vmatpush1.bf16.msra.mxu0 %v1005
    %1352 = vmatprep.subr.bf16.mxu0 %v1010
    %1353 = vmatpush1.bf16.msra.mxu0 %v1009
    %1354 = vmatprep.mubr.bf16.mxu0 %v288
    %1355 = vmatmul.mubr.bf16.gmra.mrb[0].mxu0 %v287
    %v1356 = vpop.f32.mrb[0].mxu0
    %v1357 = vadd.f32 %v1304, %v1356
    %v1358 = vpop.f32.mrb[0].mxu0
    %v1359 = vadd.f32 %v1306, %v1358
    %v1360 = vpop.f32.mrb[0].mxu0
    %v1361 = vadd.f32 %v1308, %v1360
    %v1362 = vpop.f32.mrb[0].mxu0
    %v1363 = vadd.f32 %v1310, %v1362
    %1364 = vmatprep.mubr.bf16.mxu0 %v294
    %1365 = vmatmul.mubr.bf16.gmra.mrb[0].mxu0 %v293
    %v1366 = vpop.f32.mrb[0].mxu0
    %v1367 = vadd.f32 %v1314, %v1366
    %v1368 = vpop.f32.mrb[0].mxu0
    %v1369 = vadd.f32 %v1316, %v1368
    %v1370 = vpop.f32.mrb[0].mxu0
    %v1371 = vadd.f32 %v1318, %v1370
    %v1372 = vpop.f32.mrb[0].mxu0
    %v1373 = vadd.f32 %v1320, %v1372
    %1374 = vdwg.mxu0
    %1375 = vmatprep.subr.bf16.mxu0 %v1014
    %1376 = vmatpush1.bf16.msra.mxu0 %v1013
    %1377 = vmatprep.subr.bf16.mxu0 %v1018
    %1378 = vmatpush1.bf16.msra.mxu0 %v1017
    %1379 = vmatprep.subr.bf16.mxu0 %v1022
    %1380 = vmatpush1.bf16.msra.mxu0 %v1021
    %1381 = vmatprep.subr.bf16.mxu0 %v1026
    %1382 = vmatpush1.bf16.msra.mxu0 %v1025
    %1383 = vmatprep.subr.bf16.mxu0 %v1030
    %1384 = vmatpush1.bf16.msra.mxu0 %v1029
    %1385 = vmatprep.subr.bf16.mxu0 %v1034
    %1386 = vmatpush1.bf16.msra.mxu0 %v1033
    %1387 = vmatprep.subr.bf16.mxu0 %v1038
    %1388 = vmatpush1.bf16.msra.mxu0 %v1037
    %1389 = vmatprep.subr.bf16.mxu0 %v1042
    %1390 = vmatpush1.bf16.msra.mxu0 %v1041
    %1391 = vmatprep.subr.bf16.mxu0 %v1046
    %1392 = vmatpush1.bf16.msra.mxu0 %v1045
    %1393 = vmatprep.subr.bf16.mxu0 %v1050
    %1394 = vmatpush1.bf16.msra.mxu0 %v1049
    %1395 = vmatprep.subr.bf16.mxu0 %v1054
    %1396 = vmatpush1.bf16.msra.mxu0 %v1053
    %1397 = vmatprep.subr.bf16.mxu0 %v1058
    %1398 = vmatpush1.bf16.msra.mxu0 %v1057
    %1399 = vmatprep.subr.bf16.mxu0 %v1062
    %1400 = vmatpush1.bf16.msra.mxu0 %v1061
    %1401 = vmatprep.subr.bf16.mxu0 %v1066
    %1402 = vmatpush1.bf16.msra.mxu0 %v1065
    %1403 = vmatprep.subr.bf16.mxu0 %v1070
    %1404 = vmatpush1.bf16.msra.mxu0 %v1069
    %1405 = vmatprep.subr.bf16.mxu0 %v1074
    %1406 = vmatpush1.bf16.msra.mxu0 %v1073
    %1407 = vmatprep.mubr.bf16.mxu0 %v290
    %1408 = vmatmul.mubr.bf16.gmra.mrb[0].mxu0 %v289
    %v1409 = vpop.f32.mrb[0].mxu0
    %v1410 = vadd.f32 %v1357, %v1409
    %v1411 = vpop.f32.mrb[0].mxu0
    %v1412 = vadd.f32 %v1359, %v1411
    %v1413 = vpop.f32.mrb[0].mxu0
    %v1414 = vadd.f32 %v1361, %v1413
    %v1415 = vpop.f32.mrb[0].mxu0
    %v1416 = vadd.f32 %v1363, %v1415
    %1417 = vmatprep.mubr.bf16.mxu0 %v296
    %1418 = vmatmul.mubr.bf16.gmra.mrb[0].mxu0 %v295
    %v1419 = vpop.f32.mrb[0].mxu0
    %v1420 = vadd.f32 %v1367, %v1419
    %v1421 = vpop.f32.mrb[0].mxu0
    %v1422 = vadd.f32 %v1369, %v1421
    %v1423 = vpop.f32.mrb[0].mxu0
    %v1424 = vadd.f32 %v1371, %v1423
    %v1425 = vpop.f32.mrb[0].mxu0
    %v1426 = vadd.f32 %v1373, %v1425
    %1427 = vdwg.mxu0
    %1428 = vmatprep.subr.bf16.mxu0 %v888
    %1429 = vmatpush1.bf16.msra.mxu0 %v887
    %1430 = vmatprep.subr.bf16.mxu0 %v892
    %1431 = vmatpush1.bf16.msra.mxu0 %v891
    %1432 = vmatprep.subr.bf16.mxu0 %v896
    %1433 = vmatpush1.bf16.msra.mxu0 %v895
    %1434 = vmatprep.subr.bf16.mxu0 %v900
    %1435 = vmatpush1.bf16.msra.mxu0 %v899
    %1436 = vmatprep.subr.bf16.mxu0 %v904
    %1437 = vmatpush1.bf16.msra.mxu0 %v903
    %1438 = vmatprep.subr.bf16.mxu0 %v908
    %1439 = vmatpush1.bf16.msra.mxu0 %v907
    %1440 = vmatprep.subr.bf16.mxu0 %v912
    %1441 = vmatpush1.bf16.msra.mxu0 %v911
    %1442 = vmatprep.subr.bf16.mxu0 %v916
    %1443 = vmatpush1.bf16.msra.mxu0 %v915
    %1444 = vmatprep.subr.bf16.mxu0 %v920
    %1445 = vmatpush1.bf16.msra.mxu0 %v919
    %1446 = vmatprep.subr.bf16.mxu0 %v924
    %1447 = vmatpush1.bf16.msra.mxu0 %v923
    %1448 = vmatprep.subr.bf16.mxu0 %v928
    %1449 = vmatpush1.bf16.msra.mxu0 %v927
    %1450 = vmatprep.subr.bf16.mxu0 %v932
    %1451 = vmatpush1.bf16.msra.mxu0 %v931
    %1452 = vmatprep.subr.bf16.mxu0 %v936
    %1453 = vmatpush1.bf16.msra.mxu0 %v935
    %1454 = vmatprep.subr.bf16.mxu0 %v940
    %1455 = vmatpush1.bf16.msra.mxu0 %v939
    %1456 = vmatprep.subr.bf16.mxu0 %v944
    %1457 = vmatpush1.bf16.msra.mxu0 %v943
    %1458 = vmatprep.subr.bf16.mxu0 %v948
    %1459 = vmatpush1.bf16.msra.mxu0 %v947
    %1460 = vmatprep.mubr.bf16.mxu0 %v286
    %1461 = vmatmul.mubr.bf16.gmra.mrb[0].mxu0 %v285
    %v1462 = vpop.f32.mrb[0].mxu0
    %v1463 = vadd.f32 %v235, %v1462
    %v1464 = vpop.f32.mrb[0].mxu0
    %v1465 = vadd.f32 %v236, %v1464
    %v1466 = vpop.f32.mrb[0].mxu0
    %v1467 = vadd.f32 %v239, %v1466
    %v1468 = vpop.f32.mrb[0].mxu0
    %v1469 = vadd.f32 %v240, %v1468
    %1470 = vmatprep.mubr.bf16.mxu0 %v292
    %1471 = vmatmul.mubr.bf16.gmra.mrb[0].mxu0 %v291
    %v1472 = vpop.f32.mrb[0].mxu0
    %v1473 = vadd.f32 %v243, %v1472
    %v1474 = vpop.f32.mrb[0].mxu0
    %v1475 = vadd.f32 %v244, %v1474
    %v1476 = vpop.f32.mrb[0].mxu0
    %v1477 = vadd.f32 %v247, %v1476
    %v1478 = vpop.f32.mrb[0].mxu0
    %v1479 = vadd.f32 %v248, %v1478
    %1480 = vdwg.mxu0
    %1481 = vmatprep.subr.bf16.mxu0 %v952
    %1482 = vmatpush1.bf16.msra.mxu0 %v951
    %1483 = vmatprep.subr.bf16.mxu0 %v956
    %1484 = vmatpush1.bf16.msra.mxu0 %v955
    %1485 = vmatprep.subr.bf16.mxu0 %v960
    %1486 = vmatpush1.bf16.msra.mxu0 %v959
    %1487 = vmatprep.subr.bf16.mxu0 %v964
    %1488 = vmatpush1.bf16.msra.mxu0 %v963
    %1489 = vmatprep.subr.bf16.mxu0 %v968
    %1490 = vmatpush1.bf16.msra.mxu0 %v967
    %1491 = vmatprep.subr.bf16.mxu0 %v972
    %1492 = vmatpush1.bf16.msra.mxu0 %v971
    %1493 = vmatprep.subr.bf16.mxu0 %v976
    %1494 = vmatpush1.bf16.msra.mxu0 %v975
    %1495 = vmatprep.subr.bf16.mxu0 %v980
    %1496 = vmatpush1.bf16.msra.mxu0 %v979
    %1497 = vmatprep.subr.bf16.mxu0 %v984
    %1498 = vmatpush1.bf16.msra.mxu0 %v983
    %1499 = vmatprep.subr.bf16.mxu0 %v988
    %1500 = vmatpush1.bf16.msra.mxu0 %v987
    %1501 = vmatprep.subr.bf16.mxu0 %v992
    %1502 = vmatpush1.bf16.msra.mxu0 %v991
    %1503 = vmatprep.subr.bf16.mxu0 %v996
    %1504 = vmatpush1.bf16.msra.mxu0 %v995
    %1505 = vmatprep.subr.bf16.mxu0 %v1000
    %1506 = vmatpush1.bf16.msra.mxu0 %v999
    %1507 = vmatprep.subr.bf16.mxu0 %v1004
    %1508 = vmatpush1.bf16.msra.mxu0 %v1003
    %1509 = vmatprep.subr.bf16.mxu0 %v1008
    %1510 = vmatpush1.bf16.msra.mxu0 %v1007
    %1511 = vmatprep.subr.bf16.mxu0 %v1012
    %1512 = vmatpush1.bf16.msra.mxu0 %v1011
    %1513 = vmatprep.mubr.bf16.mxu0 %v288
    %1514 = vmatmul.mubr.bf16.gmra.mrb[0].mxu0 %v287
    %v1515 = vpop.f32.mrb[0].mxu0
    %v1516 = vadd.f32 %v1463, %v1515
    %v1517 = vpop.f32.mrb[0].mxu0
    %v1518 = vadd.f32 %v1465, %v1517
    %v1519 = vpop.f32.mrb[0].mxu0
    %v1520 = vadd.f32 %v1467, %v1519
    %v1521 = vpop.f32.mrb[0].mxu0
    %v1522 = vadd.f32 %v1469, %v1521
    %1523 = vmatprep.mubr.bf16.mxu0 %v294
    %1524 = vmatmul.mubr.bf16.gmra.mrb[0].mxu0 %v293
    %v1525 = vpop.f32.mrb[0].mxu0
    %v1526 = vadd.f32 %v1473, %v1525
    %v1527 = vpop.f32.mrb[0].mxu0
    %v1528 = vadd.f32 %v1475, %v1527
    %v1529 = vpop.f32.mrb[0].mxu0
    %v1530 = vadd.f32 %v1477, %v1529
    %v1531 = vpop.f32.mrb[0].mxu0
    %v1532 = vadd.f32 %v1479, %v1531
    %1533 = vdwg.mxu0
    %1534 = vmatprep.subr.bf16.mxu0 %v1016
    %1535 = vmatpush1.bf16.msra.mxu0 %v1015
    %1536 = vmatprep.subr.bf16.mxu0 %v1020
    %1537 = vmatpush1.bf16.msra.mxu0 %v1019
    %1538 = vmatprep.subr.bf16.mxu0 %v1024
    %1539 = vmatpush1.bf16.msra.mxu0 %v1023
    %1540 = vmatprep.subr.bf16.mxu0 %v1028
    %1541 = vmatpush1.bf16.msra.mxu0 %v1027
    %1542 = vmatprep.subr.bf16.mxu0 %v1032
    %1543 = vmatpush1.bf16.msra.mxu0 %v1031
    %1544 = vmatprep.subr.bf16.mxu0 %v1036
    %1545 = vmatpush1.bf16.msra.mxu0 %v1035
    %1546 = vmatprep.subr.bf16.mxu0 %v1040
    %1547 = vmatpush1.bf16.msra.mxu0 %v1039
    %1548 = vmatprep.subr.bf16.mxu0 %v1044
    %1549 = vmatpush1.bf16.msra.mxu0 %v1043
    %1550 = vmatprep.subr.bf16.mxu0 %v1048
    %1551 = vmatpush1.bf16.msra.mxu0 %v1047
    %1552 = vmatprep.subr.bf16.mxu0 %v1052
    %1553 = vmatpush1.bf16.msra.mxu0 %v1051
    %1554 = vmatprep.subr.bf16.mxu0 %v1056
    %1555 = vmatpush1.bf16.msra.mxu0 %v1055
    %1556 = vmatprep.subr.bf16.mxu0 %v1060
    %1557 = vmatpush1.bf16.msra.mxu0 %v1059
    %1558 = vmatprep.subr.bf16.mxu0 %v1064
    %1559 = vmatpush1.bf16.msra.mxu0 %v1063
    %1560 = vmatprep.subr.bf16.mxu0 %v1068
    %1561 = vmatpush1.bf16.msra.mxu0 %v1067
    %1562 = vmatprep.subr.bf16.mxu0 %v1072
    %1563 = vmatpush1.bf16.msra.mxu0 %v1071
    %1564 = vmatprep.subr.bf16.mxu0 %v1076
    %1565 = vmatpush1.bf16.msra.mxu0 %v1075
    %1566 = vmatprep.mubr.bf16.mxu0 %v290
    %1567 = vmatmul.mubr.bf16.gmra.mrb[0].mxu0 %v289
    %v1568 = vpop.f32.mrb[0].mxu0
    %v1569 = vadd.f32 %v1516, %v1568
    %v1570 = vpop.f32.mrb[0].mxu0
    %v1571 = vadd.f32 %v1518, %v1570
    %v1572 = vpop.f32.mrb[0].mxu0
    %v1573 = vadd.f32 %v1520, %v1572
    %v1574 = vpop.f32.mrb[0].mxu0
    %v1575 = vadd.f32 %v1522, %v1574
    %1576 = vmatprep.mubr.bf16.mxu0 %v296
    %1577 = vmatmul.mubr.bf16.gmra.mrb[0].mxu0 %v295
    %v1578 = vpop.f32.mrb[0].mxu0
    %v1579 = vadd.f32 %v1526, %v1578
    %v1580 = vpop.f32.mrb[0].mxu0
    %v1581 = vadd.f32 %v1528, %v1580
    %v1582 = vpop.f32.mrb[0].mxu0
    %v1583 = vadd.f32 %v1530, %v1582
    %v1584 = vpop.f32.mrb[0].mxu0
    %v1585 = vadd.f32 %v1532, %v1584
    %1586 = vdwg.mxu0
    %1587 = vst [vmem:[#allocation2] sm:$0xff] %v1410
    %1588 = vst [vmem:[#allocation2 + $0x8] sm:$0xff] %v1412
    %1589 = vst [vmem:[#allocation2 + $0x10] sm:$0xff] %v1569
    %1590 = vst [vmem:[#allocation2 + $0x18] sm:$0xff] %v1571
    %1591 = vst [vmem:[#allocation2 + $0x20] sm:$0xff] %v1414
    %1592 = vst [vmem:[#allocation2 + $0x28] sm:$0xff] %v1416
    %1593 = vst [vmem:[#allocation2 + $0x30] sm:$0xff] %v1573
    %1594 = vst [vmem:[#allocation2 + $0x38] sm:$0xff] %v1575
    %1595 = vst [vmem:[#allocation2 + $0x40] sm:$0xff] %v1420
    %1596 = vst [vmem:[#allocation2 + $0x48] sm:$0xff] %v1422
    %1597 = vst [vmem:[#allocation2 + $0x50] sm:$0xff] %v1579
    %1598 = vst [vmem:[#allocation2 + $0x58] sm:$0xff] %v1581
    %1599 = vst [vmem:[#allocation2 + $0x60] sm:$0xff] %v1424
    %1600 = vst [vmem:[#allocation2 + $0x68] sm:$0xff] %v1426
    %1601 = vst [vmem:[#allocation2 + $0x70] sm:$0xff] %v1583
    %1602 = vst [vmem:[#allocation2 + $0x78] sm:$0xff] %v1585
    %v1603 = vld [vmem:[%s3] sm:$0xff]
    %v1604 = vld [vmem:[%s3 + $0x8] sm:$0xff]
    %v1605 = vld [vmem:[%s3 + $0x10] sm:$0xff]
    %v1606 = vld [vmem:[%s3 + $0x18] sm:$0xff]
    %v1607 = vld [vmem:[%s3 + $0x20] sm:$0xff]
    %v1608 = vld [vmem:[%s3 + $0x28] sm:$0xff]
    %v1609 = vld [vmem:[%s3 + $0x30] sm:$0xff]
    %v1610 = vld [vmem:[%s3 + $0x38] sm:$0xff]
    %v1611 = vld [vmem:[%s3 + $0x40] sm:$0xff]
    %v1612 = vld [vmem:[%s3 + $0x48] sm:$0xff]
    %v1613 = vld [vmem:[%s3 + $0x50] sm:$0xff]
    %v1614 = vld [vmem:[%s3 + $0x58] sm:$0xff]
    %v1615 = vld [vmem:[%s3 + $0x60] sm:$0xff]
    %v1616 = vld [vmem:[%s3 + $0x68] sm:$0xff]
    %v1617 = vld [vmem:[%s3 + $0x70] sm:$0xff]
    %v1618 = vld [vmem:[%s3 + $0x78] sm:$0xff]
    %v1619 = vld [vmem:[%s3 + $0x80] sm:$0xff]
    %v1620 = vld [vmem:[%s3 + $0x88] sm:$0xff]
    %v1621 = vld [vmem:[%s3 + $0x90] sm:$0xff]
    %v1622 = vld [vmem:[%s3 + $0x98] sm:$0xff]
    %v1623 = vld [vmem:[%s3 + $0xa0] sm:$0xff]
    %v1624 = vld [vmem:[%s3 + $0xa8] sm:$0xff]
    %v1625 = vld [vmem:[%s3 + $0xb0] sm:$0xff]
    %v1626 = vld [vmem:[%s3 + $0xb8] sm:$0xff]
    %v1627 = vld [vmem:[%s3 + $0xc0] sm:$0xff]
    %v1628 = vld [vmem:[%s3 + $0xc8] sm:$0xff]
    %v1629 = vld [vmem:[%s3 + $0xd0] sm:$0xff]
    %v1630 = vld [vmem:[%s3 + $0xd8] sm:$0xff]
    %v1631 = vld [vmem:[%s3 + $0xe0] sm:$0xff]
    %v1632 = vld [vmem:[%s3 + $0xe8] sm:$0xff]
    %v1633 = vld [vmem:[%s3 + $0xf0] sm:$0xff]
    %v1634 = vld [vmem:[%s3 + $0xf8] sm:$0xff]
    %v1635 = vld [vmem:[%s3 + $0x100] sm:$0xff]
    %v1636 = vld [vmem:[%s3 + $0x108] sm:$0xff]
    %v1637 = vld [vmem:[%s3 + $0x110] sm:$0xff]
    %v1638 = vld [vmem:[%s3 + $0x118] sm:$0xff]
    %v1639 = vld [vmem:[%s3 + $0x120] sm:$0xff]
    %v1640 = vld [vmem:[%s3 + $0x128] sm:$0xff]
    %v1641 = vld [vmem:[%s3 + $0x130] sm:$0xff]
    %v1642 = vld [vmem:[%s3 + $0x138] sm:$0xff]
    %v1643 = vld [vmem:[%s3 + $0x140] sm:$0xff]
    %v1644 = vld [vmem:[%s3 + $0x148] sm:$0xff]
    %v1645 = vld [vmem:[%s3 + $0x150] sm:$0xff]
    %v1646 = vld [vmem:[%s3 + $0x158] sm:$0xff]
    %v1647 = vld [vmem:[%s3 + $0x160] sm:$0xff]
    %v1648 = vld [vmem:[%s3 + $0x168] sm:$0xff]
    %v1649 = vld [vmem:[%s3 + $0x170] sm:$0xff]
    %v1650 = vld [vmem:[%s3 + $0x178] sm:$0xff]
    %v1651 = vld [vmem:[%s3 + $0x180] sm:$0xff]
    %v1652 = vld [vmem:[%s3 + $0x188] sm:$0xff]
    %v1653 = vld [vmem:[%s3 + $0x190] sm:$0xff]
    %v1654 = vld [vmem:[%s3 + $0x198] sm:$0xff]
    %v1655 = vld [vmem:[%s3 + $0x1a0] sm:$0xff]
    %v1656 = vld [vmem:[%s3 + $0x1a8] sm:$0xff]
    %v1657 = vld [vmem:[%s3 + $0x1b0] sm:$0xff]
    %v1658 = vld [vmem:[%s3 + $0x1b8] sm:$0xff]
    %v1659 = vld [vmem:[%s3 + $0x1c0] sm:$0xff]
    %v1660 = vld [vmem:[%s3 + $0x1c8] sm:$0xff]
    %v1661 = vld [vmem:[%s3 + $0x1d0] sm:$0xff]
    %v1662 = vld [vmem:[%s3 + $0x1d8] sm:$0xff]
    %v1663 = vld [vmem:[%s3 + $0x1e0] sm:$0xff]
    %v1664 = vld [vmem:[%s3 + $0x1e8] sm:$0xff]
    %v1665 = vld [vmem:[%s3 + $0x1f0] sm:$0xff]
    %v1666 = vld [vmem:[%s3 + $0x1f8] sm:$0xff]
    %v1667 = vlaneseq
    %v1668 = vshrl.u32 %v1667, 7
    %v1669 = vlaneseq
    %v1670 = vand.u32 %v1669, 127
    %v1671 = vadd.s32 %v1670, 128
    %vm1672 = vcmp.lt.s32.totalorder %v1668, 2
    %vm1673 = vcmp.lt.s32.totalorder %v1670, 128
    %vm1674 = vcmp.lt.s32.totalorder %v1671, 128
    %vm1675 = vmxor %vm1672, %vm1673
    %vm1676 = vmxor %vm1672, %vm1674
    %vm1677 = vmxor %vm1675, 1
    %vm1678 = vmxor %vm1676, 1
    %v1679 = vsel %vm1677, 1, 0
    %v1680 = vsel %vm1678, 1, 0
    %v1681 = vcvt.s32.f32 %v1679
    %v1682 = vcvt.s32.f32 %v1680
    %v1747 = vunpack.c.l.b16 %v1603
    %v1748 = vunpack.c.h.b16 %v1603
    %v1749 = vunpack.c.l.b16 %v1604
    %v1750 = vunpack.c.h.b16 %v1604
    %v1751 = vunpack.c.l.b16 %v1605
    %v1752 = vunpack.c.h.b16 %v1605
    %v1753 = vunpack.c.l.b16 %v1606
    %v1754 = vunpack.c.h.b16 %v1606
    %v1755 = vunpack.c.l.b16 %v1607
    %v1756 = vunpack.c.h.b16 %v1607
    %v1757 = vunpack.c.l.b16 %v1608
    %v1758 = vunpack.c.h.b16 %v1608
    %v1759 = vunpack.c.l.b16 %v1609
    %v1760 = vunpack.c.h.b16 %v1609
    %v1761 = vunpack.c.l.b16 %v1610
    %v1762 = vunpack.c.h.b16 %v1610
    %v1763 = vunpack.c.l.b16 %v1611
    %v1764 = vunpack.c.h.b16 %v1611
    %v1765 = vunpack.c.l.b16 %v1612
    %v1766 = vunpack.c.h.b16 %v1612
    %v1767 = vunpack.c.l.b16 %v1613
    %v1768 = vunpack.c.h.b16 %v1613
    %v1769 = vunpack.c.l.b16 %v1614
    %v1770 = vunpack.c.h.b16 %v1614
    %v1771 = vunpack.c.l.b16 %v1615
    %v1772 = vunpack.c.h.b16 %v1615
    %v1773 = vunpack.c.l.b16 %v1616
    %v1774 = vunpack.c.h.b16 %v1616
    %v1775 = vunpack.c.l.b16 %v1617
    %v1776 = vunpack.c.h.b16 %v1617
    %v1777 = vunpack.c.l.b16 %v1618
    %v1778 = vunpack.c.h.b16 %v1618
    %v1779 = vunpack.c.l.b16 %v1619
    %v1780 = vunpack.c.h.b16 %v1619
    %v1781 = vunpack.c.l.b16 %v1620
    %v1782 = vunpack.c.h.b16 %v1620
    %v1783 = vunpack.c.l.b16 %v1621
    %v1784 = vunpack.c.h.b16 %v1621
    %v1785 = vunpack.c.l.b16 %v1622
    %v1786 = vunpack.c.h.b16 %v1622
    %v1787 = vunpack.c.l.b16 %v1623
    %v1788 = vunpack.c.h.b16 %v1623
    %v1789 = vunpack.c.l.b16 %v1624
    %v1790 = vunpack.c.h.b16 %v1624
    %v1791 = vunpack.c.l.b16 %v1625
    %v1792 = vunpack.c.h.b16 %v1625
    %v1793 = vunpack.c.l.b16 %v1626
    %v1794 = vunpack.c.h.b16 %v1626
    %v1795 = vunpack.c.l.b16 %v1627
    %v1796 = vunpack.c.h.b16 %v1627
    %v1797 = vunpack.c.l.b16 %v1628
    %v1798 = vunpack.c.h.b16 %v1628
    %v1799 = vunpack.c.l.b16 %v1629
    %v1800 = vunpack.c.h.b16 %v1629
    %v1801 = vunpack.c.l.b16 %v1630
    %v1802 = vunpack.c.h.b16 %v1630
    %v1803 = vunpack.c.l.b16 %v1631
    %v1804 = vunpack.c.h.b16 %v1631
    %v1805 = vunpack.c.l.b16 %v1632
    %v1806 = vunpack.c.h.b16 %v1632
    %v1807 = vunpack.c.l.b16 %v1633
    %v1808 = vunpack.c.h.b16 %v1633
    %v1809 = vunpack.c.l.b16 %v1634
    %v1810 = vunpack.c.h.b16 %v1634
    %v1811 = vunpack.c.l.b16 %v1635
    %v1812 = vunpack.c.h.b16 %v1635
    %v1813 = vunpack.c.l.b16 %v1636
    %v1814 = vunpack.c.h.b16 %v1636
    %v1815 = vunpack.c.l.b16 %v1637
    %v1816 = vunpack.c.h.b16 %v1637
    %v1817 = vunpack.c.l.b16 %v1638
    %v1818 = vunpack.c.h.b16 %v1638
    %v1819 = vunpack.c.l.b16 %v1639
    %v1820 = vunpack.c.h.b16 %v1639
    %v1821 = vunpack.c.l.b16 %v1640
    %v1822 = vunpack.c.h.b16 %v1640
    %v1823 = vunpack.c.l.b16 %v1641
    %v1824 = vunpack.c.h.b16 %v1641
    %v1825 = vunpack.c.l.b16 %v1642
    %v1826 = vunpack.c.h.b16 %v1642
    %v1827 = vunpack.c.l.b16 %v1643
    %v1828 = vunpack.c.h.b16 %v1643
    %v1829 = vunpack.c.l.b16 %v1644
    %v1830 = vunpack.c.h.b16 %v1644
    %v1831 = vunpack.c.l.b16 %v1645
    %v1832 = vunpack.c.h.b16 %v1645
    %v1833 = vunpack.c.l.b16 %v1646
    %v1834 = vunpack.c.h.b16 %v1646
    %v1835 = vunpack.c.l.b16 %v1647
    %v1836 = vunpack.c.h.b16 %v1647
    %v1837 = vunpack.c.l.b16 %v1648
    %v1838 = vunpack.c.h.b16 %v1648
    %v1839 = vunpack.c.l.b16 %v1649
    %v1840 = vunpack.c.h.b16 %v1649
    %v1841 = vunpack.c.l.b16 %v1650
    %v1842 = vunpack.c.h.b16 %v1650
    %v1843 = vunpack.c.l.b16 %v1651
    %v1844 = vunpack.c.h.b16 %v1651
    %v1845 = vunpack.c.l.b16 %v1652
    %v1846 = vunpack.c.h.b16 %v1652
    %v1847 = vunpack.c.l.b16 %v1653
    %v1848 = vunpack.c.h.b16 %v1653
    %v1849 = vunpack.c.l.b16 %v1654
    %v1850 = vunpack.c.h.b16 %v1654
    %v1851 = vunpack.c.l.b16 %v1655
    %v1852 = vunpack.c.h.b16 %v1655
    %v1853 = vunpack.c.l.b16 %v1656
    %v1854 = vunpack.c.h.b16 %v1656
    %v1855 = vunpack.c.l.b16 %v1657
    %v1856 = vunpack.c.h.b16 %v1657
    %v1857 = vunpack.c.l.b16 %v1658
    %v1858 = vunpack.c.h.b16 %v1658
    %v1859 = vunpack.c.l.b16 %v1659
    %v1860 = vunpack.c.h.b16 %v1659
    %v1861 = vunpack.c.l.b16 %v1660
    %v1862 = vunpack.c.h.b16 %v1660
    %v1863 = vunpack.c.l.b16 %v1661
    %v1864 = vunpack.c.h.b16 %v1661
    %v1865 = vunpack.c.l.b16 %v1662
    %v1866 = vunpack.c.h.b16 %v1662
    %v1867 = vunpack.c.l.b16 %v1663
    %v1868 = vunpack.c.h.b16 %v1663
    %v1869 = vunpack.c.l.b16 %v1664
    %v1870 = vunpack.c.h.b16 %v1664
    %v1871 = vunpack.c.l.b16 %v1665
    %v1872 = vunpack.c.h.b16 %v1665
    %v1873 = vunpack.c.l.b16 %v1666
    %v1874 = vunpack.c.h.b16 %v1666
    %v1875 = vpack.c.b16 %v1751, %v1747
    %v1876 = vpack.c.b16 %v1752, %v1748
    %v1877 = vpack.c.b16 %v1753, %v1749
    %v1878 = vpack.c.b16 %v1754, %v1750
    %v1879 = vpack.c.b16 %v1759, %v1755
    %v1880 = vpack.c.b16 %v1760, %v1756
    %v1881 = vpack.c.b16 %v1761, %v1757
    %v1882 = vpack.c.b16 %v1762, %v1758
    %v1883 = vpack.c.b16 %v1767, %v1763
    %v1884 = vpack.c.b16 %v1768, %v1764
    %v1885 = vpack.c.b16 %v1769, %v1765
    %v1886 = vpack.c.b16 %v1770, %v1766
    %v1887 = vpack.c.b16 %v1775, %v1771
    %v1888 = vpack.c.b16 %v1776, %v1772
    %v1889 = vpack.c.b16 %v1777, %v1773
    %v1890 = vpack.c.b16 %v1778, %v1774
    %v1891 = vpack.c.b16 %v1783, %v1779
    %v1892 = vpack.c.b16 %v1784, %v1780
    %v1893 = vpack.c.b16 %v1785, %v1781
    %v1894 = vpack.c.b16 %v1786, %v1782
    %v1895 = vpack.c.b16 %v1791, %v1787
    %v1896 = vpack.c.b16 %v1792, %v1788
    %v1897 = vpack.c.b16 %v1793, %v1789
    %v1898 = vpack.c.b16 %v1794, %v1790
    %v1899 = vpack.c.b16 %v1799, %v1795
    %v1900 = vpack.c.b16 %v1800, %v1796
    %v1901 = vpack.c.b16 %v1801, %v1797
    %v1902 = vpack.c.b16 %v1802, %v1798
    %v1903 = vpack.c.b16 %v1807, %v1803
    %v1904 = vpack.c.b16 %v1808, %v1804
    %v1905 = vpack.c.b16 %v1809, %v1805
    %v1906 = vpack.c.b16 %v1810, %v1806
    %v1907 = vpack.c.b16 %v1815, %v1811
    %v1908 = vpack.c.b16 %v1816, %v1812
    %v1909 = vpack.c.b16 %v1817, %v1813
    %v1910 = vpack.c.b16 %v1818, %v1814
    %v1911 = vpack.c.b16 %v1823, %v1819
    %v1912 = vpack.c.b16 %v1824, %v1820
    %v1913 = vpack.c.b16 %v1825, %v1821
    %v1914 = vpack.c.b16 %v1826, %v1822
    %v1915 = vpack.c.b16 %v1831, %v1827
    %v1916 = vpack.c.b16 %v1832, %v1828
    %v1917 = vpack.c.b16 %v1833, %v1829
    %v1918 = vpack.c.b16 %v1834, %v1830
    %v1919 = vpack.c.b16 %v1839, %v1835
    %v1920 = vpack.c.b16 %v1840, %v1836
    %v1921 = vpack.c.b16 %v1841, %v1837
    %v1922 = vpack.c.b16 %v1842, %v1838
    %v1923 = vpack.c.b16 %v1847, %v1843
    %v1924 = vpack.c.b16 %v1848, %v1844
    %v1925 = vpack.c.b16 %v1849, %v1845
    %v1926 = vpack.c.b16 %v1850, %v1846
    %v1927 = vpack.c.b16 %v1855, %v1851
    %v1928 = vpack.c.b16 %v1856, %v1852
    %v1929 = vpack.c.b16 %v1857, %v1853
    %v1930 = vpack.c.b16 %v1858, %v1854
    %v1931 = vpack.c.b16 %v1863, %v1859
    %v1932 = vpack.c.b16 %v1864, %v1860
    %v1933 = vpack.c.b16 %v1865, %v1861
    %v1934 = vpack.c.b16 %v1866, %v1862
    %v1935 = vpack.c.b16 %v1871, %v1867
    %v1936 = vpack.c.b16 %v1872, %v1868
    %v1937 = vpack.c.b16 %v1873, %v1869
    %v1938 = vpack.c.b16 %v1874, %v1870
    %2003 = vmatprep.subr.bf16.mxu0 %v1876
    %2004 = vmatpush1.bf16.msra.mxu0 %v1875
    %2005 = vmatprep.subr.bf16.mxu0 %v1880
    %2006 = vmatpush1.bf16.msra.mxu0 %v1879
    %2007 = vmatprep.subr.bf16.mxu0 %v1884
    %2008 = vmatpush1.bf16.msra.mxu0 %v1883
    %2009 = vmatprep.subr.bf16.mxu0 %v1888
    %2010 = vmatpush1.bf16.msra.mxu0 %v1887
    %2011 = vmatprep.subr.bf16.mxu0 %v1892
    %2012 = vmatpush1.bf16.msra.mxu0 %v1891
    %2013 = vmatprep.subr.bf16.mxu0 %v1896
    %2014 = vmatpush1.bf16.msra.mxu0 %v1895
    %2015 = vmatprep.subr.bf16.mxu0 %v1900
    %2016 = vmatpush1.bf16.msra.mxu0 %v1899
    %2017 = vmatprep.subr.bf16.mxu0 %v1904
    %2018 = vmatpush1.bf16.msra.mxu0 %v1903
    %2019 = vmatprep.subr.bf16.mxu0 %v1908
    %2020 = vmatpush1.bf16.msra.mxu0 %v1907
    %2021 = vmatprep.subr.bf16.mxu0 %v1912
    %2022 = vmatpush1.bf16.msra.mxu0 %v1911
    %2023 = vmatprep.subr.bf16.mxu0 %v1916
    %2024 = vmatpush1.bf16.msra.mxu0 %v1915
    %2025 = vmatprep.subr.bf16.mxu0 %v1920
    %2026 = vmatpush1.bf16.msra.mxu0 %v1919
    %2027 = vmatprep.subr.bf16.mxu0 %v1924
    %2028 = vmatpush1.bf16.msra.mxu0 %v1923
    %2029 = vmatprep.subr.bf16.mxu0 %v1928
    %2030 = vmatpush1.bf16.msra.mxu0 %v1927
    %2031 = vmatprep.subr.bf16.mxu0 %v1932
    %2032 = vmatpush1.bf16.msra.mxu0 %v1931
    %2033 = vmatprep.subr.bf16.mxu0 %v1936
    %2034 = vmatpush1.bf16.msra.mxu0 %v1935
    %2035 = vmatprep.mubr.bf16.mxu0 0
    %2036 = vmatmul.mubr.bf16.gmra.mrb[0].mxu0 0
    %v2037 = vpop.f32.mrb[0].mxu0
    %v2038 = vadd.f32 0.0, %v2037
    %v2039 = vpop.f32.mrb[0].mxu0
    %v2040 = vadd.f32 0.0, %v2039
    %v2041 = vpop.f32.mrb[0].mxu0
    %v2042 = vpop.f32.mrb[0].mxu0
    %2043 = vdwg.mxu0
    %2044 = vmatprep.subr.bf16.mxu0 %v1878
    %2045 = vmatpush1.bf16.msra.mxu0 %v1877
    %2046 = vmatprep.subr.bf16.mxu0 %v1882
    %2047 = vmatpush1.bf16.msra.mxu0 %v1881
    %2048 = vmatprep.subr.bf16.mxu0 %v1886
    %2049 = vmatpush1.bf16.msra.mxu0 %v1885
    %2050 = vmatprep.subr.bf16.mxu0 %v1890
    %2051 = vmatpush1.bf16.msra.mxu0 %v1889
    %2052 = vmatprep.subr.bf16.mxu0 %v1894
    %2053 = vmatpush1.bf16.msra.mxu0 %v1893
    %2054 = vmatprep.subr.bf16.mxu0 %v1898
    %2055 = vmatpush1.bf16.msra.mxu0 %v1897
    %2056 = vmatprep.subr.bf16.mxu0 %v1902
    %2057 = vmatpush1.bf16.msra.mxu0 %v1901
    %2058 = vmatprep.subr.bf16.mxu0 %v1906
    %2059 = vmatpush1.bf16.msra.mxu0 %v1905
    %2060 = vmatprep.subr.bf16.mxu0 %v1910
    %2061 = vmatpush1.bf16.msra.mxu0 %v1909
    %2062 = vmatprep.subr.bf16.mxu0 %v1914
    %2063 = vmatpush1.bf16.msra.mxu0 %v1913
    %2064 = vmatprep.subr.bf16.mxu0 %v1918
    %2065 = vmatpush1.bf16.msra.mxu0 %v1917
    %2066 = vmatprep.subr.bf16.mxu0 %v1922
    %2067 = vmatpush1.bf16.msra.mxu0 %v1921
    %2068 = vmatprep.subr.bf16.mxu0 %v1926
    %2069 = vmatpush1.bf16.msra.mxu0 %v1925
    %2070 = vmatprep.subr.bf16.mxu0 %v1930
    %2071 = vmatpush1.bf16.msra.mxu0 %v1929
    %2072 = vmatprep.subr.bf16.mxu0 %v1934
    %2073 = vmatpush1.bf16.msra.mxu0 %v1933
    %2074 = vmatprep.subr.bf16.mxu0 %v1938
    %2075 = vmatpush1.bf16.msra.mxu0 %v1937
    %2076 = vmatprep.mubr.bf16.mxu0 0
    %2077 = vmatmul.mubr.bf16.gmra.mrb[0].mxu0 0
    %v2078 = vpop.f32.mrb[0].mxu0
    %v2079 = vadd.f32 0.0, %v2078
    %v2080 = vpop.f32.mrb[0].mxu0
    %v2081 = vadd.f32 0.0, %v2080
    %v2082 = vpop.f32.mrb[0].mxu0
    %v2083 = vpop.f32.mrb[0].mxu0
    %2084 = vdwg.mxu0
    %v2085 = vld [vmem:[#allocation2] sm:$0xf]
    %v2086 = vld [vmem:[#allocation2 + $0x8] sm:$0xf]
    %v2087 = vld [vmem:[#allocation2 + $0x10] sm:$0xf]
    %v2088 = vld [vmem:[#allocation2 + $0x18] sm:$0xf]
    %v2089 = vadd.f32 %v2085, %v2038
    %v2090 = vadd.f32 %v2086, %v2040
    %v2091 = vadd.f32 %v2087, %v2079
    %v2092 = vadd.f32 %v2088, %v2081
    %v2093 = vxor.u32 %v2089, 2147483648
    %v2094 = vmul.f32 %v2093, 1.442695
    %v2095 = vpow.pop %v2094
    %v2096 = vadd.f32 %v2095, 1.0
    %v2097 = vrcp.pop %v2096
    %v2098 = vmul.f32 1.0, %v2097
    %v2099 = vxor.u32 %v2090, 2147483648
    %v2100 = vmul.f32 %v2099, 1.442695
    %v2101 = vpow.pop %v2100
    %v2102 = vadd.f32 %v2101, 1.0
    %v2103 = vrcp.pop %v2102
    %v2104 = vmul.f32 1.0, %v2103
    %v2105 = vtanh.pop %v2091
    %v2106 = vxor.u32 %v2092, 2147483648
    %v2107 = vmul.f32 %v2106, 1.442695
    %v2108 = vpow.pop %v2107
    %v2109 = vadd.f32 %v2108, 1.0
    %v2110 = vrcp.pop %v2109
    %v2111 = vmul.f32 1.0, %v2110
    %v2112 = vmul.f32 %v2104, 0.0
    %v2113 = vmul.f32 %v2098, %v2105
    %v2114 = vadd.f32 %v2112, %v2113
    %v2115 = vtanh.pop %v2114
    %v2116 = vmul.f32 %v2111, %v2115
    %2117 = vst [vmem:[#allocation3] sm:$0x3] %v2116
    %2118 = vst [vmem:[#allocation4 + $0xc] sm:$0xc] %v2116
    %v2119 = vmul.f32 %v2116, %v1681
    %v2120 = vmul.f32 %v2116, %v1682
    %v2121 = vpack.c.bf16 %v2119, %v2119
    %v2122 = vpack.c.bf16 %v2120, %v2120
    %2123 = vmatprep.subr.bf16.mxu0 %v1876
    %2124 = vmatpush1.bf16.msra.mxu0 %v1875
    %2125 = vmatprep.subr.bf16.mxu0 %v1880
    %2126 = vmatpush1.bf16.msra.mxu0 %v1879
    %2127 = vmatprep.subr.bf16.mxu0 %v1884
    %2128 = vmatpush1.bf16.msra.mxu0 %v1883
    %2129 = vmatprep.subr.bf16.mxu0 %v1888
    %2130 = vmatpush1.bf16.msra.mxu0 %v1887
    %2131 = vmatprep.subr.bf16.mxu0 %v1892
    %2132 = vmatpush1.bf16.msra.mxu0 %v1891
    %2133 = vmatprep.subr.bf16.mxu0 %v1896
    %2134 = vmatpush1.bf16.msra.mxu0 %v1895
    %2135 = vmatprep.subr.bf16.mxu0 %v1900
    %2136 = vmatpush1.bf16.msra.mxu0 %v1899
    %2137 = vmatprep.subr.bf16.mxu0 %v1904
    %2138 = vmatpush1.bf16.msra.mxu0 %v1903
    %2139 = vmatprep.subr.bf16.mxu0 %v1908
    %2140 = vmatpush1.bf16.msra.mxu0 %v1907
    %2141 = vmatprep.subr.bf16.mxu0 %v1912
    %2142 = vmatpush1.bf16.msra.mxu0 %v1911
    %2143 = vmatprep.subr.bf16.mxu0 %v1916
    %2144 = vmatpush1.bf16.msra.mxu0 %v1915
    %2145 = vmatprep.subr.bf16.mxu0 %v1920
    %2146 = vmatpush1.bf16.msra.mxu0 %v1919
    %2147 = vmatprep.subr.bf16.mxu0 %v1924
    %2148 = vmatpush1.bf16.msra.mxu0 %v1923
    %2149 = vmatprep.subr.bf16.mxu0 %v1928
    %2150 = vmatpush1.bf16.msra.mxu0 %v1927
    %2151 = vmatprep.subr.bf16.mxu0 %v1932
    %2152 = vmatpush1.bf16.msra.mxu0 %v1931
    %2153 = vmatprep.subr.bf16.mxu0 %v1936
    %2154 = vmatpush1.bf16.msra.mxu0 %v1935
    %2155 = vmatprep.mubr.bf16.mxu0 %v2122
    %2156 = vmatmul.mubr.bf16.gmra.mrb[0].mxu0 %v2121
    %v2157 = vpop.f32.mrb[0].mxu0
    %v2158 = vadd.f32 0.0, %v2157
    %v2159 = vpop.f32.mrb[0].mxu0
    %v2160 = vadd.f32 0.0, %v2159
    %v2161 = vpop.f32.mrb[0].mxu0
    %v2162 = vpop.f32.mrb[0].mxu0
    %2163 = vdwg.mxu0
    %2164 = vmatprep.subr.bf16.mxu0 %v1878
    %2165 = vmatpush1.bf16.msra.mxu0 %v1877
    %2166 = vmatprep.subr.bf16.mxu0 %v1882
    %2167 = vmatpush1.bf16.msra.mxu0 %v1881
    %2168 = vmatprep.subr.bf16.mxu0 %v1886
    %2169 = vmatpush1.bf16.msra.mxu0 %v1885
    %2170 = vmatprep.subr.bf16.mxu0 %v1890
    %2171 = vmatpush1.bf16.msra.mxu0 %v1889
    %2172 = vmatprep.subr.bf16.mxu0 %v1894
    %2173 = vmatpush1.bf16.msra.mxu0 %v1893
    %2174 = vmatprep.subr.bf16.mxu0 %v1898
    %2175 = vmatpush1.bf16.msra.mxu0 %v1897
    %2176 = vmatprep.subr.bf16.mxu0 %v1902
    %2177 = vmatpush1.bf16.msra.mxu0 %v1901
    %2178 = vmatprep.subr.bf16.mxu0 %v1906
    %2179 = vmatpush1.bf16.msra.mxu0 %v1905
    %2180 = vmatprep.subr.bf16.mxu0 %v1910
    %2181 = vmatpush1.bf16.msra.mxu0 %v1909
    %2182 = vmatprep.subr.bf16.mxu0 %v1914
    %2183 = vmatpush1.bf16.msra.mxu0 %v1913
    %2184 = vmatprep.subr.bf16.mxu0 %v1918
    %2185 = vmatpush1.bf16.msra.mxu0 %v1917
    %2186 = vmatprep.subr.bf16.mxu0 %v1922
    %2187 = vmatpush1.bf16.msra.mxu0 %v1921
    %2188 = vmatprep.subr.bf16.mxu0 %v1926
    %2189 = vmatpush1.bf16.msra.mxu0 %v1925
    %2190 = vmatprep.subr.bf16.mxu0 %v1930
    %2191 = vmatpush1.bf16.msra.mxu0 %v1929
    %2192 = vmatprep.subr.bf16.mxu0 %v1934
    %2193 = vmatpush1.bf16.msra.mxu0 %v1933
    %2194 = vmatprep.subr.bf16.mxu0 %v1938
    %2195 = vmatpush1.bf16.msra.mxu0 %v1937
    %2196 = vmatprep.mubr.bf16.mxu0 %v2122
    %2197 = vmatmul.mubr.bf16.gmra.mrb[0].mxu0 %v2121
    %v2198 = vpop.f32.mrb[0].mxu0
    %v2199 = vadd.f32 0.0, %v2198
    %v2200 = vpop.f32.mrb[0].mxu0
    %v2201 = vadd.f32 0.0, %v2200
    %v2202 = vpop.f32.mrb[0].mxu0
    %v2203 = vpop.f32.mrb[0].mxu0
    %2204 = vdwg.mxu0
    %v2205 = vld [vmem:[#allocation2] sm:$0xf0]
    %v2206 = vld [vmem:[#allocation2 + $0x8] sm:$0xf0]
    %v2207 = vld [vmem:[#allocation2 + $0x10] sm:$0xf0]
    %v2208 = vld [vmem:[#allocation2 + $0x18] sm:$0xf0]
    %v2213 = vrot.slane %v2158, 4
    %v2214 = vrot.slane %v2160, 4
    %v2215 = vrot.slane %v2199, 4
    %v2216 = vrot.slane %v2201, 4
    %v2221 = vadd.f32 %v2205, %v2213
    %v2222 = vadd.f32 %v2206, %v2214
    %v2223 = vadd.f32 %v2207, %v2215
    %v2224 = vadd.f32 %v2208, %v2216
    %v2225 = vxor.u32 %v2221, 2147483648
    %v2226 = vmul.f32 %v2225, 1.442695
    %v2227 = vpow.pop %v2226
    %v2228 = vadd.f32 %v2227, 1.0
    %v2229 = vrcp.pop %v2228
    %v2230 = vmul.f32 1.0, %v2229
    %v2231 = vxor.u32 %v2222, 2147483648
    %v2232 = vmul.f32 %v2231, 1.442695
    %v2233 = vpow.pop %v2232
    %v2234 = vadd.f32 %v2233, 1.0
    %v2235 = vrcp.pop %v2234
    %v2236 = vmul.f32 1.0, %v2235
    %v2237 = vtanh.pop %v2223
    %v2238 = vxor.u32 %v2224, 2147483648
    %v2239 = vmul.f32 %v2238, 1.442695
    %v2240 = vpow.pop %v2239
    %v2241 = vadd.f32 %v2240, 1.0
    %v2242 = vrcp.pop %v2241
    %v2243 = vmul.f32 1.0, %v2242
    %v2245 = vrot.slane %v2114, 4
    %v2247 = vmul.f32 %v2236, %v2245
    %v2248 = vmul.f32 %v2230, %v2237
    %v2249 = vadd.f32 %v2247, %v2248
    %v2250 = vtanh.pop %v2249
    %v2251 = vmul.f32 %v2243, %v2250
    %2252 = vst [vmem:[#allocation3 - $0x2] sm:$0x30] %v2251
    %2253 = vst [vmem:[#allocation4 + $0x6] sm:$0xc0] %v2251
    %v2256 = vrot.slane %v1681, 4
    %v2257 = vrot.slane %v1682, 4
    %v2260 = vmul.f32 %v2251, %v2256
    %v2261 = vmul.f32 %v2251, %v2257
    %v2262 = vpack.c.bf16 %v2260, %v2260
    %v2263 = vpack.c.bf16 %v2261, %v2261
    %v2266 = vrot.slane %v2262, 2
    %v2267 = vrot.slane %v2263, 2
    %2270 = vmatprep.subr.bf16.mxu0 %v1876
    %2271 = vmatpush1.bf16.msra.mxu0 %v1875
    %2272 = vmatprep.subr.bf16.mxu0 %v1880
    %2273 = vmatpush1.bf16.msra.mxu0 %v1879
    %2274 = vmatprep.subr.bf16.mxu0 %v1884
    %2275 = vmatpush1.bf16.msra.mxu0 %v1883
    %2276 = vmatprep.subr.bf16.mxu0 %v1888
    %2277 = vmatpush1.bf16.msra.mxu0 %v1887
    %2278 = vmatprep.subr.bf16.mxu0 %v1892
    %2279 = vmatpush1.bf16.msra.mxu0 %v1891
    %2280 = vmatprep.subr.bf16.mxu0 %v1896
    %2281 = vmatpush1.bf16.msra.mxu0 %v1895
    %2282 = vmatprep.subr.bf16.mxu0 %v1900
    %2283 = vmatpush1.bf16.msra.mxu0 %v1899
    %2284 = vmatprep.subr.bf16.mxu0 %v1904
    %2285 = vmatpush1.bf16.msra.mxu0 %v1903
    %2286 = vmatprep.subr.bf16.mxu0 %v1908
    %2287 = vmatpush1.bf16.msra.mxu0 %v1907
    %2288 = vmatprep.subr.bf16.mxu0 %v1912
    %2289 = vmatpush1.bf16.msra.mxu0 %v1911
    %2290 = vmatprep.subr.bf16.mxu0 %v1916
    %2291 = vmatpush1.bf16.msra.mxu0 %v1915
    %2292 = vmatprep.subr.bf16.mxu0 %v1920
    %2293 = vmatpush1.bf16.msra.mxu0 %v1919
    %2294 = vmatprep.subr.bf16.mxu0 %v1924
    %2295 = vmatpush1.bf16.msra.mxu0 %v1923
    %2296 = vmatprep.subr.bf16.mxu0 %v1928
    %2297 = vmatpush1.bf16.msra.mxu0 %v1927
    %2298 = vmatprep.subr.bf16.mxu0 %v1932
    %2299 = vmatpush1.bf16.msra.mxu0 %v1931
    %2300 = vmatprep.subr.bf16.mxu0 %v1936
    %2301 = vmatpush1.bf16.msra.mxu0 %v1935
    %2302 = vmatprep.mubr.bf16.mxu0 %v2267
    %2303 = vmatmul.mubr.bf16.gmra.mrb[0].mxu0 %v2266
    %v2304 = vpop.f32.mrb[0].mxu0
    %v2305 = vadd.f32 0.0, %v2304
    %v2306 = vpop.f32.mrb[0].mxu0
    %v2307 = vadd.f32 0.0, %v2306
    %v2308 = vpop.f32.mrb[0].mxu0
    %v2309 = vpop.f32.mrb[0].mxu0
    %2310 = vdwg.mxu0
    %2311 = vmatprep.subr.bf16.mxu0 %v1878
    %2312 = vmatpush1.bf16.msra.mxu0 %v1877
    %2313 = vmatprep.subr.bf16.mxu0 %v1882
    %2314 = vmatpush1.bf16.msra.mxu0 %v1881
    %2315 = vmatprep.subr.bf16.mxu0 %v1886
    %2316 = vmatpush1.bf16.msra.mxu0 %v1885
    %2317 = vmatprep.subr.bf16.mxu0 %v1890
    %2318 = vmatpush1.bf16.msra.mxu0 %v1889
    %2319 = vmatprep.subr.bf16.mxu0 %v1894
    %2320 = vmatpush1.bf16.msra.mxu0 %v1893
    %2321 = vmatprep.subr.bf16.mxu0 %v1898
    %2322 = vmatpush1.bf16.msra.mxu0 %v1897
    %2323 = vmatprep.subr.bf16.mxu0 %v1902
    %2324 = vmatpush1.bf16.msra.mxu0 %v1901
    %2325 = vmatprep.subr.bf16.mxu0 %v1906
    %2326 = vmatpush1.bf16.msra.mxu0 %v1905
    %2327 = vmatprep.subr.bf16.mxu0 %v1910
    %2328 = vmatpush1.bf16.msra.mxu0 %v1909
    %2329 = vmatprep.subr.bf16.mxu0 %v1914
    %2330 = vmatpush1.bf16.msra.mxu0 %v1913
    %2331 = vmatprep.subr.bf16.mxu0 %v1918
    %2332 = vmatpush1.bf16.msra.mxu0 %v1917
    %2333 = vmatprep.subr.bf16.mxu0 %v1922
    %2334 = vmatpush1.bf16.msra.mxu0 %v1921
    %2335 = vmatprep.subr.bf16.mxu0 %v1926
    %2336 = vmatpush1.bf16.msra.mxu0 %v1925
    %2337 = vmatprep.subr.bf16.mxu0 %v1930
    %2338 = vmatpush1.bf16.msra.mxu0 %v1929
    %2339 = vmatprep.subr.bf16.mxu0 %v1934
    %2340 = vmatpush1.bf16.msra.mxu0 %v1933
    %2341 = vmatprep.subr.bf16.mxu0 %v1938
    %2342 = vmatpush1.bf16.msra.mxu0 %v1937
    %2343 = vmatprep.mubr.bf16.mxu0 %v2267
    %2344 = vmatmul.mubr.bf16.gmra.mrb[0].mxu0 %v2266
    %v2345 = vpop.f32.mrb[0].mxu0
    %v2346 = vadd.f32 0.0, %v2345
    %v2347 = vpop.f32.mrb[0].mxu0
    %v2348 = vadd.f32 0.0, %v2347
    %v2349 = vpop.f32.mrb[0].mxu0
    %v2350 = vpop.f32.mrb[0].mxu0
    %2351 = vdwg.mxu0
    %v2352 = vld [vmem:[#allocation2 + $0x20] sm:$0xf]
    %v2353 = vld [vmem:[#allocation2 + $0x28] sm:$0xf]
    %v2354 = vld [vmem:[#allocation2 + $0x30] sm:$0xf]
    %v2355 = vld [vmem:[#allocation2 + $0x38] sm:$0xf]
    %v2356 = vadd.f32 %v2352, %v2305
    %v2357 = vadd.f32 %v2353, %v2307
    %v2358 = vadd.f32 %v2354, %v2346
    %v2359 = vadd.f32 %v2355, %v2348
    %v2360 = vxor.u32 %v2356, 2147483648
    %v2361 = vmul.f32 %v2360, 1.442695
    %v2362 = vpow.pop %v2361
    %v2363 = vadd.f32 %v2362, 1.0
    %v2364 = vrcp.pop %v2363
    %v2365 = vmul.f32 1.0, %v2364
    %v2366 = vxor.u32 %v2357, 2147483648
    %v2367 = vmul.f32 %v2366, 1.442695
    %v2368 = vpow.pop %v2367
    %v2369 = vadd.f32 %v2368, 1.0
    %v2370 = vrcp.pop %v2369
    %v2371 = vmul.f32 1.0, %v2370
    %v2372 = vtanh.pop %v2358
    %v2373 = vxor.u32 %v2359, 2147483648
    %v2374 = vmul.f32 %v2373, 1.442695
    %v2375 = vpow.pop %v2374
    %v2376 = vadd.f32 %v2375, 1.0
    %v2377 = vrcp.pop %v2376
    %v2378 = vmul.f32 1.0, %v2377
    %v2380 = vrot.slane %v2249, 4
    %v2382 = vmul.f32 %v2371, %v2380
    %v2383 = vmul.f32 %v2365, %v2372
    %v2384 = vadd.f32 %v2382, %v2383
    %v2385 = vtanh.pop %v2384
    %v2386 = vmul.f32 %v2378, %v2385
    %2387 = vst [vmem:[#allocation3 + $0x4] sm:$0x3] %v2386
    %2388 = vst [vmem:[#allocation4 + $0x8] sm:$0xc] %v2386
    %v2389 = vmul.f32 %v2386, %v1681
    %v2390 = vmul.f32 %v2386, %v1682
    %v2391 = vpack.c.bf16 %v2389, %v2389
    %v2392 = vpack.c.bf16 %v2390, %v2390
    %2393 = vmatprep.subr.bf16.mxu0 %v1876
    %2394 = vmatpush1.bf16.msra.mxu0 %v1875
    %2395 = vmatprep.subr.bf16.mxu0 %v1880
    %2396 = vmatpush1.bf16.msra.mxu0 %v1879
    %2397 = vmatprep.subr.bf16.mxu0 %v1884
    %2398 = vmatpush1.bf16.msra.mxu0 %v1883
    %2399 = vmatprep.subr.bf16.mxu0 %v1888
    %2400 = vmatpush1.bf16.msra.mxu0 %v1887
    %2401 = vmatprep.subr.bf16.mxu0 %v1892
    %2402 = vmatpush1.bf16.msra.mxu0 %v1891
    %2403 = vmatprep.subr.bf16.mxu0 %v1896
    %2404 = vmatpush1.bf16.msra.mxu0 %v1895
    %2405 = vmatprep.subr.bf16.mxu0 %v1900
    %2406 = vmatpush1.bf16.msra.mxu0 %v1899
    %2407 = vmatprep.subr.bf16.mxu0 %v1904
    %2408 = vmatpush1.bf16.msra.mxu0 %v1903
    %2409 = vmatprep.subr.bf16.mxu0 %v1908
    %2410 = vmatpush1.bf16.msra.mxu0 %v1907
    %2411 = vmatprep.subr.bf16.mxu0 %v1912
    %2412 = vmatpush1.bf16.msra.mxu0 %v1911
    %2413 = vmatprep.subr.bf16.mxu0 %v1916
    %2414 = vmatpush1.bf16.msra.mxu0 %v1915
    %2415 = vmatprep.subr.bf16.mxu0 %v1920
    %2416 = vmatpush1.bf16.msra.mxu0 %v1919
    %2417 = vmatprep.subr.bf16.mxu0 %v1924
    %2418 = vmatpush1.bf16.msra.mxu0 %v1923
    %2419 = vmatprep.subr.bf16.mxu0 %v1928
    %2420 = vmatpush1.bf16.msra.mxu0 %v1927
    %2421 = vmatprep.subr.bf16.mxu0 %v1932
    %2422 = vmatpush1.bf16.msra.mxu0 %v1931
    %2423 = vmatprep.subr.bf16.mxu0 %v1936
    %2424 = vmatpush1.bf16.msra.mxu0 %v1935
    %2425 = vmatprep.mubr.bf16.mxu0 %v2392
    %2426 = vmatmul.mubr.bf16.gmra.mrb[0].mxu0 %v2391
    %v2427 = vpop.f32.mrb[0].mxu0
    %v2428 = vadd.f32 0.0, %v2427
    %v2429 = vpop.f32.mrb[0].mxu0
    %v2430 = vadd.f32 0.0, %v2429
    %v2431 = vpop.f32.mrb[0].mxu0
    %v2432 = vpop.f32.mrb[0].mxu0
    %2433 = vdwg.mxu0
    %2434 = vmatprep.subr.bf16.mxu0 %v1878
    %2435 = vmatpush1.bf16.msra.mxu0 %v1877
    %2436 = vmatprep.subr.bf16.mxu0 %v1882
    %2437 = vmatpush1.bf16.msra.mxu0 %v1881
    %2438 = vmatprep.subr.bf16.mxu0 %v1886
    %2439 = vmatpush1.bf16.msra.mxu0 %v1885
    %2440 = vmatprep.subr.bf16.mxu0 %v1890
    %2441 = vmatpush1.bf16.msra.mxu0 %v1889
    %2442 = vmatprep.subr.bf16.mxu0 %v1894
    %2443 = vmatpush1.bf16.msra.mxu0 %v1893
    %2444 = vmatprep.subr.bf16.mxu0 %v1898
    %2445 = vmatpush1.bf16.msra.mxu0 %v1897
    %2446 = vmatprep.subr.bf16.mxu0 %v1902
    %2447 = vmatpush1.bf16.msra.mxu0 %v1901
    %2448 = vmatprep.subr.bf16.mxu0 %v1906
    %2449 = vmatpush1.bf16.msra.mxu0 %v1905
    %2450 = vmatprep.subr.bf16.mxu0 %v1910
    %2451 = vmatpush1.bf16.msra.mxu0 %v1909
    %2452 = vmatprep.subr.bf16.mxu0 %v1914
    %2453 = vmatpush1.bf16.msra.mxu0 %v1913
    %2454 = vmatprep.subr.bf16.mxu0 %v1918
    %2455 = vmatpush1.bf16.msra.mxu0 %v1917
    %2456 = vmatprep.subr.bf16.mxu0 %v1922
    %2457 = vmatpush1.bf16.msra.mxu0 %v1921
    %2458 = vmatprep.subr.bf16.mxu0 %v1926
    %2459 = vmatpush1.bf16.msra.mxu0 %v1925
    %2460 = vmatprep.subr.bf16.mxu0 %v1930
    %2461 = vmatpush1.bf16.msra.mxu0 %v1929
    %2462 = vmatprep.subr.bf16.mxu0 %v1934
    %2463 = vmatpush1.bf16.msra.mxu0 %v1933
    %2464 = vmatprep.subr.bf16.mxu0 %v1938
    %2465 = vmatpush1.bf16.msra.mxu0 %v1937
    %2466 = vmatprep.mubr.bf16.mxu0 %v2392
    %2467 = vmatmul.mubr.bf16.gmra.mrb[0].mxu0 %v2391
    %v2468 = vpop.f32.mrb[0].mxu0
    %v2469 = vadd.f32 0.0, %v2468
    %v2470 = vpop.f32.mrb[0].mxu0
    %v2471 = vadd.f32 0.0, %v2470
    %v2472 = vpop.f32.mrb[0].mxu0
    %v2473 = vpop.f32.mrb[0].mxu0
    %2474 = vdwg.mxu0
    %v2475 = vld [vmem:[#allocation2 + $0x20] sm:$0xf0]
    %v2476 = vld [vmem:[#allocation2 + $0x28] sm:$0xf0]
    %v2477 = vld [vmem:[#allocation2 + $0x30] sm:$0xf0]
    %v2478 = vld [vmem:[#allocation2 + $0x38] sm:$0xf0]
    %v2483 = vrot.slane %v2428, 4
    %v2484 = vrot.slane %v2430, 4
    %v2485 = vrot.slane %v2469, 4
    %v2486 = vrot.slane %v2471, 4
    %v2491 = vadd.f32 %v2475, %v2483
    %v2492 = vadd.f32 %v2476, %v2484
    %v2493 = vadd.f32 %v2477, %v2485
    %v2494 = vadd.f32 %v2478, %v2486
    %v2495 = vxor.u32 %v2491, 2147483648
    %v2496 = vmul.f32 %v2495, 1.442695
    %v2497 = vpow.pop %v2496
    %v2498 = vadd.f32 %v2497, 1.0
    %v2499 = vrcp.pop %v2498
    %v2500 = vmul.f32 1.0, %v2499
    %v2501 = vxor.u32 %v2492, 2147483648
    %v2502 = vmul.f32 %v2501, 1.442695
    %v2503 = vpow.pop %v2502
    %v2504 = vadd.f32 %v2503, 1.0
    %v2505 = vrcp.pop %v2504
    %v2506 = vmul.f32 1.0, %v2505
    %v2507 = vtanh.pop %v2493
    %v2508 = vxor.u32 %v2494, 2147483648
    %v2509 = vmul.f32 %v2508, 1.442695
    %v2510 = vpow.pop %v2509
    %v2511 = vadd.f32 %v2510, 1.0
    %v2512 = vrcp.pop %v2511
    %v2513 = vmul.f32 1.0, %v2512
    %v2515 = vrot.slane %v2384, 4
    %v2517 = vmul.f32 %v2506, %v2515
    %v2518 = vmul.f32 %v2500, %v2507
    %v2519 = vadd.f32 %v2517, %v2518
    %v2520 = vtanh.pop %v2519
    %v2521 = vmul.f32 %v2513, %v2520
    %2522 = vst [vmem:[#allocation3 + $0x2] sm:$0x30] %v2521
    %2523 = vst [vmem:[#allocation4 + $0x2] sm:$0xc0] %v2521
    %v2524 = vmul.f32 %v2521, %v2256
    %v2525 = vmul.f32 %v2521, %v2257
    %v2526 = vpack.c.bf16 %v2524, %v2524
    %v2527 = vpack.c.bf16 %v2525, %v2525
    %v2530 = vrot.slane %v2526, 2
    %v2531 = vrot.slane %v2527, 2
    %2534 = vmatprep.subr.bf16.mxu0 %v1876
    %2535 = vmatpush1.bf16.msra.mxu0 %v1875
    %2536 = vmatprep.subr.bf16.mxu0 %v1880
    %2537 = vmatpush1.bf16.msra.mxu0 %v1879
    %2538 = vmatprep.subr.bf16.mxu0 %v1884
    %2539 = vmatpush1.bf16.msra.mxu0 %v1883
    %2540 = vmatprep.subr.bf16.mxu0 %v1888
    %2541 = vmatpush1.bf16.msra.mxu0 %v1887
    %2542 = vmatprep.subr.bf16.mxu0 %v1892
    %2543 = vmatpush1.bf16.msra.mxu0 %v1891
    %2544 = vmatprep.subr.bf16.mxu0 %v1896
    %2545 = vmatpush1.bf16.msra.mxu0 %v1895
    %2546 = vmatprep.subr.bf16.mxu0 %v1900
    %2547 = vmatpush1.bf16.msra.mxu0 %v1899
    %2548 = vmatprep.subr.bf16.mxu0 %v1904
    %2549 = vmatpush1.bf16.msra.mxu0 %v1903
    %2550 = vmatprep.subr.bf16.mxu0 %v1908
    %2551 = vmatpush1.bf16.msra.mxu0 %v1907
    %2552 = vmatprep.subr.bf16.mxu0 %v1912
    %2553 = vmatpush1.bf16.msra.mxu0 %v1911
    %2554 = vmatprep.subr.bf16.mxu0 %v1916
    %2555 = vmatpush1.bf16.msra.mxu0 %v1915
    %2556 = vmatprep.subr.bf16.mxu0 %v1920
    %2557 = vmatpush1.bf16.msra.mxu0 %v1919
    %2558 = vmatprep.subr.bf16.mxu0 %v1924
    %2559 = vmatpush1.bf16.msra.mxu0 %v1923
    %2560 = vmatprep.subr.bf16.mxu0 %v1928
    %2561 = vmatpush1.bf16.msra.mxu0 %v1927
    %2562 = vmatprep.subr.bf16.mxu0 %v1932
    %2563 = vmatpush1.bf16.msra.mxu0 %v1931
    %2564 = vmatprep.subr.bf16.mxu0 %v1936
    %2565 = vmatpush1.bf16.msra.mxu0 %v1935
    %2566 = vmatprep.mubr.bf16.mxu0 %v2531
    %2567 = vmatmul.mubr.bf16.gmra.mrb[0].mxu0 %v2530
    %v2568 = vpop.f32.mrb[0].mxu0
    %v2569 = vadd.f32 0.0, %v2568
    %v2570 = vpop.f32.mrb[0].mxu0
    %v2571 = vadd.f32 0.0, %v2570
    %v2572 = vpop.f32.mrb[0].mxu0
    %v2573 = vpop.f32.mrb[0].mxu0
    %2574 = vdwg.mxu0
    %2575 = vmatprep.subr.bf16.mxu0 %v1878
    %2576 = vmatpush1.bf16.msra.mxu0 %v1877
    %2577 = vmatprep.subr.bf16.mxu0 %v1882
    %2578 = vmatpush1.bf16.msra.mxu0 %v1881
    %2579 = vmatprep.subr.bf16.mxu0 %v1886
    %2580 = vmatpush1.bf16.msra.mxu0 %v1885
    %2581 = vmatprep.subr.bf16.mxu0 %v1890
    %2582 = vmatpush1.bf16.msra.mxu0 %v1889
    %2583 = vmatprep.subr.bf16.mxu0 %v1894
    %2584 = vmatpush1.bf16.msra.mxu0 %v1893
    %2585 = vmatprep.subr.bf16.mxu0 %v1898
    %2586 = vmatpush1.bf16.msra.mxu0 %v1897
    %2587 = vmatprep.subr.bf16.mxu0 %v1902
    %2588 = vmatpush1.bf16.msra.mxu0 %v1901
    %2589 = vmatprep.subr.bf16.mxu0 %v1906
    %2590 = vmatpush1.bf16.msra.mxu0 %v1905
    %2591 = vmatprep.subr.bf16.mxu0 %v1910
    %2592 = vmatpush1.bf16.msra.mxu0 %v1909
    %2593 = vmatprep.subr.bf16.mxu0 %v1914
    %2594 = vmatpush1.bf16.msra.mxu0 %v1913
    %2595 = vmatprep.subr.bf16.mxu0 %v1918
    %2596 = vmatpush1.bf16.msra.mxu0 %v1917
    %2597 = vmatprep.subr.bf16.mxu0 %v1922
    %2598 = vmatpush1.bf16.msra.mxu0 %v1921
    %2599 = vmatprep.subr.bf16.mxu0 %v1926
    %2600 = vmatpush1.bf16.msra.mxu0 %v1925
    %2601 = vmatprep.subr.bf16.mxu0 %v1930
    %2602 = vmatpush1.bf16.msra.mxu0 %v1929
    %2603 = vmatprep.subr.bf16.mxu0 %v1934
    %2604 = vmatpush1.bf16.msra.mxu0 %v1933
    %2605 = vmatprep.subr.bf16.mxu0 %v1938
    %2606 = vmatpush1.bf16.msra.mxu0 %v1937
    %2607 = vmatprep.mubr.bf16.mxu0 %v2531
    %2608 = vmatmul.mubr.bf16.gmra.mrb[0].mxu0 %v2530
    %v2609 = vpop.f32.mrb[0].mxu0
    %v2610 = vadd.f32 0.0, %v2609
    %v2611 = vpop.f32.mrb[0].mxu0
    %v2612 = vadd.f32 0.0, %v2611
    %v2613 = vpop.f32.mrb[0].mxu0
    %v2614 = vpop.f32.mrb[0].mxu0
    %2615 = vdwg.mxu0
    %v2616 = vld [vmem:[#allocation2 + $0x40] sm:$0xf]
    %v2617 = vld [vmem:[#allocation2 + $0x48] sm:$0xf]
    %v2618 = vld [vmem:[#allocation2 + $0x50] sm:$0xf]
    %v2619 = vld [vmem:[#allocation2 + $0x58] sm:$0xf]
    %v2620 = vadd.f32 %v2616, %v2569
    %v2621 = vadd.f32 %v2617, %v2571
    %v2622 = vadd.f32 %v2618, %v2610
    %v2623 = vadd.f32 %v2619, %v2612
    %v2624 = vxor.u32 %v2620, 2147483648
    %v2625 = vmul.f32 %v2624, 1.442695
    %v2626 = vpow.pop %v2625
    %v2627 = vadd.f32 %v2626, 1.0
    %v2628 = vrcp.pop %v2627
    %v2629 = vmul.f32 1.0, %v2628
    %v2630 = vxor.u32 %v2621, 2147483648
    %v2631 = vmul.f32 %v2630, 1.442695
    %v2632 = vpow.pop %v2631
    %v2633 = vadd.f32 %v2632, 1.0
    %v2634 = vrcp.pop %v2633
    %v2635 = vmul.f32 1.0, %v2634
    %v2636 = vtanh.pop %v2622
    %v2637 = vxor.u32 %v2623, 2147483648
    %v2638 = vmul.f32 %v2637, 1.442695
    %v2639 = vpow.pop %v2638
    %v2640 = vadd.f32 %v2639, 1.0
    %v2641 = vrcp.pop %v2640
    %v2642 = vmul.f32 1.0, %v2641
    %v2644 = vrot.slane %v2519, 4
    %v2646 = vmul.f32 %v2635, %v2644
    %v2647 = vmul.f32 %v2629, %v2636
    %v2648 = vadd.f32 %v2646, %v2647
    %v2649 = vtanh.pop %v2648
    %v2650 = vmul.f32 %v2642, %v2649
    %2651 = vst [vmem:[#allocation3 + $0x8] sm:$0x3] %v2650
    %2652 = vst [vmem:[#allocation4 + $0x4] sm:$0xc] %v2650
    %v2653 = vmul.f32 %v2650, %v1681
    %v2654 = vmul.f32 %v2650, %v1682
    %v2655 = vpack.c.bf16 %v2653, %v2653
    %v2656 = vpack.c.bf16 %v2654, %v2654
    %2657 = vmatprep.subr.bf16.mxu0 %v1876
    %2658 = vmatpush1.bf16.msra.mxu0 %v1875
    %2659 = vmatprep.subr.bf16.mxu0 %v1880
    %2660 = vmatpush1.bf16.msra.mxu0 %v1879
    %2661 = vmatprep.subr.bf16.mxu0 %v1884
    %2662 = vmatpush1.bf16.msra.mxu0 %v1883
    %2663 = vmatprep.subr.bf16.mxu0 %v1888
    %2664 = vmatpush1.bf16.msra.mxu0 %v1887
    %2665 = vmatprep.subr.bf16.mxu0 %v1892
    %2666 = vmatpush1.bf16.msra.mxu0 %v1891
    %2667 = vmatprep.subr.bf16.mxu0 %v1896
    %2668 = vmatpush1.bf16.msra.mxu0 %v1895
    %2669 = vmatprep.subr.bf16.mxu0 %v1900
    %2670 = vmatpush1.bf16.msra.mxu0 %v1899
    %2671 = vmatprep.subr.bf16.mxu0 %v1904
    %2672 = vmatpush1.bf16.msra.mxu0 %v1903
    %2673 = vmatprep.subr.bf16.mxu0 %v1908
    %2674 = vmatpush1.bf16.msra.mxu0 %v1907
    %2675 = vmatprep.subr.bf16.mxu0 %v1912
    %2676 = vmatpush1.bf16.msra.mxu0 %v1911
    %2677 = vmatprep.subr.bf16.mxu0 %v1916
    %2678 = vmatpush1.bf16.msra.mxu0 %v1915
    %2679 = vmatprep.subr.bf16.mxu0 %v1920
    %2680 = vmatpush1.bf16.msra.mxu0 %v1919
    %2681 = vmatprep.subr.bf16.mxu0 %v1924
    %2682 = vmatpush1.bf16.msra.mxu0 %v1923
    %2683 = vmatprep.subr.bf16.mxu0 %v1928
    %2684 = vmatpush1.bf16.msra.mxu0 %v1927
    %2685 = vmatprep.subr.bf16.mxu0 %v1932
    %2686 = vmatpush1.bf16.msra.mxu0 %v1931
    %2687 = vmatprep.subr.bf16.mxu0 %v1936
    %2688 = vmatpush1.bf16.msra.mxu0 %v1935
    %2689 = vmatprep.mubr.bf16.mxu0 %v2656
    %2690 = vmatmul.mubr.bf16.gmra.mrb[0].mxu0 %v2655
    %v2691 = vpop.f32.mrb[0].mxu0
    %v2692 = vadd.f32 0.0, %v2691
    %v2693 = vpop.f32.mrb[0].mxu0
    %v2694 = vadd.f32 0.0, %v2693
    %v2695 = vpop.f32.mrb[0].mxu0
    %v2696 = vpop.f32.mrb[0].mxu0
    %2697 = vdwg.mxu0
    %2698 = vmatprep.subr.bf16.mxu0 %v1878
    %2699 = vmatpush1.bf16.msra.mxu0 %v1877
    %2700 = vmatprep.subr.bf16.mxu0 %v1882
    %2701 = vmatpush1.bf16.msra.mxu0 %v1881
    %2702 = vmatprep.subr.bf16.mxu0 %v1886
    %2703 = vmatpush1.bf16.msra.mxu0 %v1885
    %2704 = vmatprep.subr.bf16.mxu0 %v1890
    %2705 = vmatpush1.bf16.msra.mxu0 %v1889
    %2706 = vmatprep.subr.bf16.mxu0 %v1894
    %2707 = vmatpush1.bf16.msra.mxu0 %v1893
    %2708 = vmatprep.subr.bf16.mxu0 %v1898
    %2709 = vmatpush1.bf16.msra.mxu0 %v1897
    %2710 = vmatprep.subr.bf16.mxu0 %v1902
    %2711 = vmatpush1.bf16.msra.mxu0 %v1901
    %2712 = vmatprep.subr.bf16.mxu0 %v1906
    %2713 = vmatpush1.bf16.msra.mxu0 %v1905
    %2714 = vmatprep.subr.bf16.mxu0 %v1910
    %2715 = vmatpush1.bf16.msra.mxu0 %v1909
    %2716 = vmatprep.subr.bf16.mxu0 %v1914
    %2717 = vmatpush1.bf16.msra.mxu0 %v1913
    %2718 = vmatprep.subr.bf16.mxu0 %v1918
    %2719 = vmatpush1.bf16.msra.mxu0 %v1917
    %2720 = vmatprep.subr.bf16.mxu0 %v1922
    %2721 = vmatpush1.bf16.msra.mxu0 %v1921
    %2722 = vmatprep.subr.bf16.mxu0 %v1926
    %2723 = vmatpush1.bf16.msra.mxu0 %v1925
    %2724 = vmatprep.subr.bf16.mxu0 %v1930
    %2725 = vmatpush1.bf16.msra.mxu0 %v1929
    %2726 = vmatprep.subr.bf16.mxu0 %v1934
    %2727 = vmatpush1.bf16.msra.mxu0 %v1933
    %2728 = vmatprep.subr.bf16.mxu0 %v1938
    %2729 = vmatpush1.bf16.msra.mxu0 %v1937
    %2730 = vmatprep.mubr.bf16.mxu0 %v2656
    %2731 = vmatmul.mubr.bf16.gmra.mrb[0].mxu0 %v2655
    %v2732 = vpop.f32.mrb[0].mxu0
    %v2733 = vadd.f32 0.0, %v2732
    %v2734 = vpop.f32.mrb[0].mxu0
    %v2735 = vadd.f32 0.0, %v2734
    %v2736 = vpop.f32.mrb[0].mxu0
    %v2737 = vpop.f32.mrb[0].mxu0
    %2738 = vdwg.mxu0
    %v2739 = vld [vmem:[#allocation2 + $0x40] sm:$0xf0]
    %v2740 = vld [vmem:[#allocation2 + $0x48] sm:$0xf0]
    %v2741 = vld [vmem:[#allocation2 + $0x50] sm:$0xf0]
    %v2742 = vld [vmem:[#allocation2 + $0x58] sm:$0xf0]
    %v2747 = vrot.slane %v2692, 4
    %v2748 = vrot.slane %v2694, 4
    %v2749 = vrot.slane %v2733, 4
    %v2750 = vrot.slane %v2735, 4
    %v2755 = vadd.f32 %v2739, %v2747
    %v2756 = vadd.f32 %v2740, %v2748
    %v2757 = vadd.f32 %v2741, %v2749
    %v2758 = vadd.f32 %v2742, %v2750
    %v2759 = vxor.u32 %v2755, 2147483648
    %v2760 = vmul.f32 %v2759, 1.442695
    %v2761 = vpow.pop %v2760
    %v2762 = vadd.f32 %v2761, 1.0
    %v2763 = vrcp.pop %v2762
    %v2764 = vmul.f32 1.0, %v2763
    %v2765 = vxor.u32 %v2756, 2147483648
    %v2766 = vmul.f32 %v2765, 1.442695
    %v2767 = vpow.pop %v2766
    %v2768 = vadd.f32 %v2767, 1.0
    %v2769 = vrcp.pop %v2768
    %v2770 = vmul.f32 1.0, %v2769
    %v2771 = vtanh.pop %v2757
    %v2772 = vxor.u32 %v2758, 2147483648
    %v2773 = vmul.f32 %v2772, 1.442695
    %v2774 = vpow.pop %v2773
    %v2775 = vadd.f32 %v2774, 1.0
    %v2776 = vrcp.pop %v2775
    %v2777 = vmul.f32 1.0, %v2776
    %v2779 = vrot.slane %v2648, 4
    %v2781 = vmul.f32 %v2770, %v2779
    %v2782 = vmul.f32 %v2764, %v2771
    %v2783 = vadd.f32 %v2781, %v2782
    %v2784 = vtanh.pop %v2783
    %v2785 = vmul.f32 %v2777, %v2784
    %2786 = vst [vmem:[#allocation3 + $0x6] sm:$0x30] %v2785
    %2787 = vst [vmem:[#allocation4 - $0x2] sm:$0xc0] %v2785
    %v2788 = vmul.f32 %v2785, %v2256
    %v2789 = vmul.f32 %v2785, %v2257
    %v2790 = vpack.c.bf16 %v2788, %v2788
    %v2791 = vpack.c.bf16 %v2789, %v2789
    %v2794 = vrot.slane %v2790, 2
    %v2795 = vrot.slane %v2791, 2
    %2798 = vmatprep.subr.bf16.mxu0 %v1876
    %2799 = vmatpush1.bf16.msra.mxu0 %v1875
    %2800 = vmatprep.subr.bf16.mxu0 %v1880
    %2801 = vmatpush1.bf16.msra.mxu0 %v1879
    %2802 = vmatprep.subr.bf16.mxu0 %v1884
    %2803 = vmatpush1.bf16.msra.mxu0 %v1883
    %2804 = vmatprep.subr.bf16.mxu0 %v1888
    %2805 = vmatpush1.bf16.msra.mxu0 %v1887
    %2806 = vmatprep.subr.bf16.mxu0 %v1892
    %2807 = vmatpush1.bf16.msra.mxu0 %v1891
    %2808 = vmatprep.subr.bf16.mxu0 %v1896
    %2809 = vmatpush1.bf16.msra.mxu0 %v1895
    %2810 = vmatprep.subr.bf16.mxu0 %v1900
    %2811 = vmatpush1.bf16.msra.mxu0 %v1899
    %2812 = vmatprep.subr.bf16.mxu0 %v1904
    %2813 = vmatpush1.bf16.msra.mxu0 %v1903
    %2814 = vmatprep.subr.bf16.mxu0 %v1908
    %2815 = vmatpush1.bf16.msra.mxu0 %v1907
    %2816 = vmatprep.subr.bf16.mxu0 %v1912
    %2817 = vmatpush1.bf16.msra.mxu0 %v1911
    %2818 = vmatprep.subr.bf16.mxu0 %v1916
    %2819 = vmatpush1.bf16.msra.mxu0 %v1915
    %2820 = vmatprep.subr.bf16.mxu0 %v1920
    %2821 = vmatpush1.bf16.msra.mxu0 %v1919
    %2822 = vmatprep.subr.bf16.mxu0 %v1924
    %2823 = vmatpush1.bf16.msra.mxu0 %v1923
    %2824 = vmatprep.subr.bf16.mxu0 %v1928
    %2825 = vmatpush1.bf16.msra.mxu0 %v1927
    %2826 = vmatprep.subr.bf16.mxu0 %v1932
    %2827 = vmatpush1.bf16.msra.mxu0 %v1931
    %2828 = vmatprep.subr.bf16.mxu0 %v1936
    %2829 = vmatpush1.bf16.msra.mxu0 %v1935
    %2830 = vmatprep.mubr.bf16.mxu0 %v2795
    %2831 = vmatmul.mubr.bf16.gmra.mrb[0].mxu0 %v2794
    %v2832 = vpop.f32.mrb[0].mxu0
    %v2833 = vadd.f32 0.0, %v2832
    %v2834 = vpop.f32.mrb[0].mxu0
    %v2835 = vadd.f32 0.0, %v2834
    %v2836 = vpop.f32.mrb[0].mxu0
    %v2837 = vpop.f32.mrb[0].mxu0
    %2838 = vdwg.mxu0
    %2839 = vmatprep.subr.bf16.mxu0 %v1878
    %2840 = vmatpush1.bf16.msra.mxu0 %v1877
    %2841 = vmatprep.subr.bf16.mxu0 %v1882
    %2842 = vmatpush1.bf16.msra.mxu0 %v1881
    %2843 = vmatprep.subr.bf16.mxu0 %v1886
    %2844 = vmatpush1.bf16.msra.mxu0 %v1885
    %2845 = vmatprep.subr.bf16.mxu0 %v1890
    %2846 = vmatpush1.bf16.msra.mxu0 %v1889
    %2847 = vmatprep.subr.bf16.mxu0 %v1894
    %2848 = vmatpush1.bf16.msra.mxu0 %v1893
    %2849 = vmatprep.subr.bf16.mxu0 %v1898
    %2850 = vmatpush1.bf16.msra.mxu0 %v1897
    %2851 = vmatprep.subr.bf16.mxu0 %v1902
    %2852 = vmatpush1.bf16.msra.mxu0 %v1901
    %2853 = vmatprep.subr.bf16.mxu0 %v1906
    %2854 = vmatpush1.bf16.msra.mxu0 %v1905
    %2855 = vmatprep.subr.bf16.mxu0 %v1910
    %2856 = vmatpush1.bf16.msra.mxu0 %v1909
    %2857 = vmatprep.subr.bf16.mxu0 %v1914
    %2858 = vmatpush1.bf16.msra.mxu0 %v1913
    %2859 = vmatprep.subr.bf16.mxu0 %v1918
    %2860 = vmatpush1.bf16.msra.mxu0 %v1917
    %2861 = vmatprep.subr.bf16.mxu0 %v1922
    %2862 = vmatpush1.bf16.msra.mxu0 %v1921
    %2863 = vmatprep.subr.bf16.mxu0 %v1926
    %2864 = vmatpush1.bf16.msra.mxu0 %v1925
    %2865 = vmatprep.subr.bf16.mxu0 %v1930
    %2866 = vmatpush1.bf16.msra.mxu0 %v1929
    %2867 = vmatprep.subr.bf16.mxu0 %v1934
    %2868 = vmatpush1.bf16.msra.mxu0 %v1933
    %2869 = vmatprep.subr.bf16.mxu0 %v1938
    %2870 = vmatpush1.bf16.msra.mxu0 %v1937
    %2871 = vmatprep.mubr.bf16.mxu0 %v2795
    %2872 = vmatmul.mubr.bf16.gmra.mrb[0].mxu0 %v2794
    %v2873 = vpop.f32.mrb[0].mxu0
    %v2874 = vadd.f32 0.0, %v2873
    %v2875 = vpop.f32.mrb[0].mxu0
    %v2876 = vadd.f32 0.0, %v2875
    %v2877 = vpop.f32.mrb[0].mxu0
    %v2878 = vpop.f32.mrb[0].mxu0
    %2879 = vdwg.mxu0
    %v2880 = vld [vmem:[#allocation2 + $0x60] sm:$0xf]
    %v2881 = vld [vmem:[#allocation2 + $0x68] sm:$0xf]
    %v2882 = vld [vmem:[#allocation2 + $0x70] sm:$0xf]
    %v2883 = vld [vmem:[#allocation2 + $0x78] sm:$0xf]
    %v2884 = vadd.f32 %v2880, %v2833
    %v2885 = vadd.f32 %v2881, %v2835
    %v2886 = vadd.f32 %v2882, %v2874
    %v2887 = vadd.f32 %v2883, %v2876
    %v2888 = vxor.u32 %v2884, 2147483648
    %v2889 = vmul.f32 %v2888, 1.442695
    %v2890 = vpow.pop %v2889
    %v2891 = vadd.f32 %v2890, 1.0
    %v2892 = vrcp.pop %v2891
    %v2893 = vmul.f32 1.0, %v2892
    %v2894 = vxor.u32 %v2885, 2147483648
    %v2895 = vmul.f32 %v2894, 1.442695
    %v2896 = vpow.pop %v2895
    %v2897 = vadd.f32 %v2896, 1.0
    %v2898 = vrcp.pop %v2897
    %v2899 = vmul.f32 1.0, %v2898
    %v2900 = vtanh.pop %v2886
    %v2901 = vxor.u32 %v2887, 2147483648
    %v2902 = vmul.f32 %v2901, 1.442695
    %v2903 = vpow.pop %v2902
    %v2904 = vadd.f32 %v2903, 1.0
    %v2905 = vrcp.pop %v2904
    %v2906 = vmul.f32 1.0, %v2905
    %v2908 = vrot.slane %v2783, 4
    %v2910 = vmul.f32 %v2899, %v2908
    %v2911 = vmul.f32 %v2893, %v2900
    %v2912 = vadd.f32 %v2910, %v2911
    %v2913 = vtanh.pop %v2912
    %v2914 = vmul.f32 %v2906, %v2913
    %2915 = vst [vmem:[#allocation3 + $0xc] sm:$0x3] %v2914
    %2916 = vst [vmem:[#allocation4] sm:$0xc] %v2914
    %v2917 = vmul.f32 %v2914, %v1681
    %v2918 = vmul.f32 %v2914, %v1682
    %v2919 = vpack.c.bf16 %v2917, %v2917
    %v2920 = vpack.c.bf16 %v2918, %v2918
    %2921 = vmatprep.subr.bf16.mxu0 %v1876
    %2922 = vmatpush1.bf16.msra.mxu0 %v1875
    %2923 = vmatprep.subr.bf16.mxu0 %v1880
    %2924 = vmatpush1.bf16.msra.mxu0 %v1879
    %2925 = vmatprep.subr.bf16.mxu0 %v1884
    %2926 = vmatpush1.bf16.msra.mxu0 %v1883
    %2927 = vmatprep.subr.bf16.mxu0 %v1888
    %2928 = vmatpush1.bf16.msra.mxu0 %v1887
    %2929 = vmatprep.subr.bf16.mxu0 %v1892
    %2930 = vmatpush1.bf16.msra.mxu0 %v1891
    %2931 = vmatprep.subr.bf16.mxu0 %v1896
    %2932 = vmatpush1.bf16.msra.mxu0 %v1895
    %2933 = vmatprep.subr.bf16.mxu0 %v1900
    %2934 = vmatpush1.bf16.msra.mxu0 %v1899
    %2935 = vmatprep.subr.bf16.mxu0 %v1904
    %2936 = vmatpush1.bf16.msra.mxu0 %v1903
    %2937 = vmatprep.subr.bf16.mxu0 %v1908
    %2938 = vmatpush1.bf16.msra.mxu0 %v1907
    %2939 = vmatprep.subr.bf16.mxu0 %v1912
    %2940 = vmatpush1.bf16.msra.mxu0 %v1911
    %2941 = vmatprep.subr.bf16.mxu0 %v1916
    %2942 = vmatpush1.bf16.msra.mxu0 %v1915
    %2943 = vmatprep.subr.bf16.mxu0 %v1920
    %2944 = vmatpush1.bf16.msra.mxu0 %v1919
    %2945 = vmatprep.subr.bf16.mxu0 %v1924
    %2946 = vmatpush1.bf16.msra.mxu0 %v1923
    %2947 = vmatprep.subr.bf16.mxu0 %v1928
    %2948 = vmatpush1.bf16.msra.mxu0 %v1927
    %2949 = vmatprep.subr.bf16.mxu0 %v1932
    %2950 = vmatpush1.bf16.msra.mxu0 %v1931
    %2951 = vmatprep.subr.bf16.mxu0 %v1936
    %2952 = vmatpush1.bf16.msra.mxu0 %v1935
    %2953 = vmatprep.mubr.bf16.mxu0 %v2920
    %2954 = vmatmul.mubr.bf16.gmra.mrb[0].mxu0 %v2919
    %v2955 = vpop.f32.mrb[0].mxu0
    %v2956 = vadd.f32 0.0, %v2955
    %v2957 = vpop.f32.mrb[0].mxu0
    %v2958 = vadd.f32 0.0, %v2957
    %v2959 = vpop.f32.mrb[0].mxu0
    %v2960 = vpop.f32.mrb[0].mxu0
    %2961 = vdwg.mxu0
    %2962 = vmatprep.subr.bf16.mxu0 %v1878
    %2963 = vmatpush1.bf16.msra.mxu0 %v1877
    %2964 = vmatprep.subr.bf16.mxu0 %v1882
    %2965 = vmatpush1.bf16.msra.mxu0 %v1881
    %2966 = vmatprep.subr.bf16.mxu0 %v1886
    %2967 = vmatpush1.bf16.msra.mxu0 %v1885
    %2968 = vmatprep.subr.bf16.mxu0 %v1890
    %2969 = vmatpush1.bf16.msra.mxu0 %v1889
    %2970 = vmatprep.subr.bf16.mxu0 %v1894
    %2971 = vmatpush1.bf16.msra.mxu0 %v1893
    %2972 = vmatprep.subr.bf16.mxu0 %v1898
    %2973 = vmatpush1.bf16.msra.mxu0 %v1897
    %2974 = vmatprep.subr.bf16.mxu0 %v1902
    %2975 = vmatpush1.bf16.msra.mxu0 %v1901
    %2976 = vmatprep.subr.bf16.mxu0 %v1906
    %2977 = vmatpush1.bf16.msra.mxu0 %v1905
    %2978 = vmatprep.subr.bf16.mxu0 %v1910
    %2979 = vmatpush1.bf16.msra.mxu0 %v1909
    %2980 = vmatprep.subr.bf16.mxu0 %v1914
    %2981 = vmatpush1.bf16.msra.mxu0 %v1913
    %2982 = vmatprep.subr.bf16.mxu0 %v1918
    %2983 = vmatpush1.bf16.msra.mxu0 %v1917
    %2984 = vmatprep.subr.bf16.mxu0 %v1922
    %2985 = vmatpush1.bf16.msra.mxu0 %v1921
    %2986 = vmatprep.subr.bf16.mxu0 %v1926
    %2987 = vmatpush1.bf16.msra.mxu0 %v1925
    %2988 = vmatprep.subr.bf16.mxu0 %v1930
    %2989 = vmatpush1.bf16.msra.mxu0 %v1929
    %2990 = vmatprep.subr.bf16.mxu0 %v1934
    %2991 = vmatpush1.bf16.msra.mxu0 %v1933
    %2992 = vmatprep.subr.bf16.mxu0 %v1938
    %2993 = vmatpush1.bf16.msra.mxu0 %v1937
    %2994 = vmatprep.mubr.bf16.mxu0 %v2920
    %2995 = vmatmul.mubr.bf16.gmra.mrb[0].mxu0 %v2919
    %v2996 = vpop.f32.mrb[0].mxu0
    %v2997 = vadd.f32 0.0, %v2996
    %v2998 = vpop.f32.mrb[0].mxu0
    %v2999 = vadd.f32 0.0, %v2998
    %v3000 = vpop.f32.mrb[0].mxu0
    %v3001 = vpop.f32.mrb[0].mxu0
    %3002 = vdwg.mxu0
    %v3003 = vld [vmem:[#allocation2 + $0x60] sm:$0xf0]
    %v3004 = vld [vmem:[#allocation2 + $0x68] sm:$0xf0]
    %v3005 = vld [vmem:[#allocation2 + $0x70] sm:$0xf0]
    %v3006 = vld [vmem:[#allocation2 + $0x78] sm:$0xf0]
    %v3011 = vrot.slane %v2956, 4
    %v3012 = vrot.slane %v2958, 4
    %v3013 = vrot.slane %v2997, 4
    %v3014 = vrot.slane %v2999, 4
    %v3019 = vadd.f32 %v3003, %v3011
    %v3020 = vadd.f32 %v3004, %v3012
    %v3021 = vadd.f32 %v3005, %v3013
    %v3022 = vadd.f32 %v3006, %v3014
    %v3023 = vxor.u32 %v3019, 2147483648
    %v3024 = vmul.f32 %v3023, 1.442695
    %v3025 = vpow.pop %v3024
    %v3026 = vadd.f32 %v3025, 1.0
    %v3027 = vrcp.pop %v3026
    %v3028 = vmul.f32 1.0, %v3027
    %v3029 = vxor.u32 %v3020, 2147483648
    %v3030 = vmul.f32 %v3029, 1.442695
    %v3031 = vpow.pop %v3030
    %v3032 = vadd.f32 %v3031, 1.0
    %v3033 = vrcp.pop %v3032
    %v3034 = vmul.f32 1.0, %v3033
    %v3035 = vtanh.pop %v3021
    %v3036 = vxor.u32 %v3022, 2147483648
    %v3037 = vmul.f32 %v3036, 1.442695
    %v3038 = vpow.pop %v3037
    %v3039 = vadd.f32 %v3038, 1.0
    %v3040 = vrcp.pop %v3039
    %v3041 = vmul.f32 1.0, %v3040
    %v3043 = vrot.slane %v2912, 4
    %v3045 = vmul.f32 %v3034, %v3043
    %v3046 = vmul.f32 %v3028, %v3035
    %v3047 = vadd.f32 %v3045, %v3046
    %v3048 = vtanh.pop %v3047
    %v3049 = vmul.f32 %v3041, %v3048
    %3050 = vst [vmem:[#allocation3 + $0xa] sm:$0x30] %v3049
    %3051 = vst [vmem:[#allocation4 - $0x6] sm:$0xc0] %v3049
    %v3052 = vmul.f32 %v3049, %v2256
    %v3053 = vmul.f32 %v3049, %v2257
    %v3054 = vadd.f32 %v3052, %v3053
    %3055 = vst [vmem:[#allocation5 - $0x4] sm:$0xf0] %v3054
    %3056 = vst [vmem:[#allocation7 - $0x4] sm:$0xf0] %v3047
    %v3057 = vld [vmem:[#allocation3] sm:$0xff]
    %v3058 = vld [vmem:[#allocation3 + $0x8] sm:$0xff]
    %v3059 = vpack.c.bf16 %v3058, %v3057
    %v3060 = vld [vmem:[#allocation4] sm:$0xff]
    %v3061 = vld [vmem:[#allocation4 + $0x8] sm:$0xff]
    %v3062 = vpack.c.bf16 %v3061, %v3060
    %v3063 = vld [vmem:[%s4] sm:$0xf]
    %v3064 = vld [vmem:[%s4 + $0x4] sm:$0xf]
    %v3065 = vld [vmem:[%s4 + $0x8] sm:$0xf]
    %v3066 = vld [vmem:[%s4 + $0xc] sm:$0xf]
    %v3067 = vld [vmem:[%s4 + $0x10] sm:$0xf]
    %v3068 = vld [vmem:[%s4 + $0x14] sm:$0xf]
    %v3069 = vld [vmem:[%s4 + $0x18] sm:$0xf]
    %v3070 = vld [vmem:[%s4 + $0x1c] sm:$0xf]
    %v3071 = vld [vmem:[%s4 + $0x20] sm:$0xf]
    %v3072 = vld [vmem:[%s4 + $0x24] sm:$0xf]
    %v3073 = vld [vmem:[%s4 + $0x28] sm:$0xf]
    %v3074 = vld [vmem:[%s4 + $0x2c] sm:$0xf]
    %v3075 = vld [vmem:[%s4 + $0x30] sm:$0xf]
    %v3076 = vld [vmem:[%s4 + $0x34] sm:$0xf]
    %v3077 = vld [vmem:[%s4 + $0x38] sm:$0xf]
    %v3078 = vld [vmem:[%s4 + $0x3c] sm:$0xf]
    %v3079 = vld [vmem:[%s4 + $0x40] sm:$0xf]
    %v3080 = vld [vmem:[%s4 + $0x44] sm:$0xf]
    %v3081 = vld [vmem:[%s4 + $0x48] sm:$0xf]
    %v3082 = vld [vmem:[%s4 + $0x4c] sm:$0xf]
    %v3083 = vld [vmem:[%s4 + $0x50] sm:$0xf]
    %v3084 = vld [vmem:[%s4 + $0x54] sm:$0xf]
    %v3085 = vld [vmem:[%s4 + $0x58] sm:$0xf]
    %v3086 = vld [vmem:[%s4 + $0x5c] sm:$0xf]
    %v3087 = vld [vmem:[%s4 + $0x60] sm:$0xf]
    %v3088 = vld [vmem:[%s4 + $0x64] sm:$0xf]
    %v3089 = vld [vmem:[%s4 + $0x68] sm:$0xf]
    %v3090 = vld [vmem:[%s4 + $0x6c] sm:$0xf]
    %v3091 = vld [vmem:[%s4 + $0x70] sm:$0xf]
    %v3092 = vld [vmem:[%s4 + $0x74] sm:$0xf]
    %v3093 = vld [vmem:[%s4 + $0x78] sm:$0xf]
    %v3094 = vld [vmem:[%s4 + $0x7c] sm:$0xf]
    %v3111 = vunpack.c.l.b16 %v3079
    %v3112 = vunpack.c.l.b16 %v3080
    %v3113 = vunpack.c.l.b16 %v3081
    %v3114 = vunpack.c.l.b16 %v3082
    %v3115 = vunpack.c.l.b16 %v3083
    %v3116 = vunpack.c.l.b16 %v3084
    %v3117 = vunpack.c.l.b16 %v3085
    %v3118 = vunpack.c.l.b16 %v3086
    %v3119 = vunpack.c.l.b16 %v3087
    %v3120 = vunpack.c.l.b16 %v3088
    %v3121 = vunpack.c.l.b16 %v3089
    %v3122 = vunpack.c.l.b16 %v3090
    %v3123 = vunpack.c.l.b16 %v3091
    %v3124 = vunpack.c.l.b16 %v3092
    %v3125 = vunpack.c.l.b16 %v3093
    %v3126 = vunpack.c.l.b16 %v3094
    %v3127 = vpack.c.b16 %v3112, %v3111
    %v3128 = vpack.c.b16 %v3114, %v3113
    %v3129 = vpack.c.b16 %v3116, %v3115
    %v3130 = vpack.c.b16 %v3118, %v3117
    %v3131 = vpack.c.b16 %v3120, %v3119
    %v3132 = vpack.c.b16 %v3122, %v3121
    %v3133 = vpack.c.b16 %v3124, %v3123
    %v3134 = vpack.c.b16 %v3126, %v3125
    %3143 = vmatprep.subr.bf16.mxu0 0
    %3144 = vmatpush1.bf16.msra.mxu0 %v3127
    %3145 = vmatprep.subr.bf16.mxu0 0
    %3146 = vmatpush1.bf16.msra.mxu0 %v3128
    %3147 = vmatprep.subr.bf16.mxu0 0
    %3148 = vmatpush1.bf16.msra.mxu0 %v3129
    %3149 = vmatprep.subr.bf16.mxu0 0
    %3150 = vmatpush1.bf16.msra.mxu0 %v3130
    %3151 = vmatprep.subr.bf16.mxu0 0
    %3152 = vmatpush1.bf16.msra.mxu0 %v3131
    %3153 = vmatprep.subr.bf16.mxu0 0
    %3154 = vmatpush1.bf16.msra.mxu0 %v3132
    %3155 = vmatprep.subr.bf16.mxu0 0
    %3156 = vmatpush1.bf16.msra.mxu0 %v3133
    %3157 = vmatprep.subr.bf16.mxu0 0
    %3158 = vmatpush1.bf16.msra.mxu0 %v3134
    %3159 = vmatprep.subr.bf16.mxu0 0
    %3160 = vmatpush1.bf16.msra.mxu0 0
    %3161 = vmatprep.subr.bf16.mxu0 0
    %3162 = vmatpush1.bf16.msra.mxu0 0
    %3163 = vmatprep.subr.bf16.mxu0 0
    %3164 = vmatpush1.bf16.msra.mxu0 0
    %3165 = vmatprep.subr.bf16.mxu0 0
    %3166 = vmatpush1.bf16.msra.mxu0 0
    %3167 = vmatprep.subr.bf16.mxu0 0
    %3168 = vmatpush1.bf16.msra.mxu0 0
    %3169 = vmatprep.subr.bf16.mxu0 0
    %3170 = vmatpush1.bf16.msra.mxu0 0
    %3171 = vmatprep.subr.bf16.mxu0 0
    %3172 = vmatpush1.bf16.msra.mxu0 0
    %3173 = vmatprep.subr.bf16.mxu0 0
    %3174 = vmatpush1.bf16.msra.mxu0 0
    %3175 = vmatprep.mubr.bf16.mxu0 0
    %3176 = vmatmul.mubr.bf16.gmra.mrb[0].mxu0 %v3062
    %v3177 = vpop.f32.mrb[0].mxu0
    %v3178 = vadd.f32 0.0, %v3177
    %v3179 = vpop.f32.mrb[0].mxu0
    %v3180 = vpop.f32.mrb[0].mxu0
    %v3181 = vadd.f32 0.0, %v3180
    %v3182 = vpop.f32.mrb[0].mxu0
    %3183 = vdwg.mxu0
    %v3200 = vunpack.c.l.b16 %v3063
    %v3201 = vunpack.c.l.b16 %v3064
    %v3202 = vunpack.c.l.b16 %v3065
    %v3203 = vunpack.c.l.b16 %v3066
    %v3204 = vunpack.c.l.b16 %v3067
    %v3205 = vunpack.c.l.b16 %v3068
    %v3206 = vunpack.c.l.b16 %v3069
    %v3207 = vunpack.c.l.b16 %v3070
    %v3208 = vunpack.c.l.b16 %v3071
    %v3209 = vunpack.c.l.b16 %v3072
    %v3210 = vunpack.c.l.b16 %v3073
    %v3211 = vunpack.c.l.b16 %v3074
    %v3212 = vunpack.c.l.b16 %v3075
    %v3213 = vunpack.c.l.b16 %v3076
    %v3214 = vunpack.c.l.b16 %v3077
    %v3215 = vunpack.c.l.b16 %v3078
    %v3216 = vpack.c.b16 %v3201, %v3200
    %v3217 = vpack.c.b16 %v3203, %v3202
    %v3218 = vpack.c.b16 %v3205, %v3204
    %v3219 = vpack.c.b16 %v3207, %v3206
    %v3220 = vpack.c.b16 %v3209, %v3208
    %v3221 = vpack.c.b16 %v3211, %v3210
    %v3222 = vpack.c.b16 %v3213, %v3212
    %v3223 = vpack.c.b16 %v3215, %v3214
    %3232 = vmatprep.subr.bf16.mxu0 0
    %3233 = vmatpush1.bf16.msra.mxu0 %v3216
    %3234 = vmatprep.subr.bf16.mxu0 0
    %3235 = vmatpush1.bf16.msra.mxu0 %v3217
    %3236 = vmatprep.subr.bf16.mxu0 0
    %3237 = vmatpush1.bf16.msra.mxu0 %v3218
    %3238 = vmatprep.subr.bf16.mxu0 0
    %3239 = vmatpush1.bf16.msra.mxu0 %v3219
    %3240 = vmatprep.subr.bf16.mxu0 0
    %3241 = vmatpush1.bf16.msra.mxu0 %v3220
    %3242 = vmatprep.subr.bf16.mxu0 0
    %3243 = vmatpush1.bf16.msra.mxu0 %v3221
    %3244 = vmatprep.subr.bf16.mxu0 0
    %3245 = vmatpush1.bf16.msra.mxu0 %v3222
    %3246 = vmatprep.subr.bf16.mxu0 0
    %3247 = vmatpush1.bf16.msra.mxu0 %v3223
    %3248 = vmatprep.subr.bf16.mxu0 0
    %3249 = vmatpush1.bf16.msra.mxu0 0
    %3250 = vmatprep.subr.bf16.mxu0 0
    %3251 = vmatpush1.bf16.msra.mxu0 0
    %3252 = vmatprep.subr.bf16.mxu0 0
    %3253 = vmatpush1.bf16.msra.mxu0 0
    %3254 = vmatprep.subr.bf16.mxu0 0
    %3255 = vmatpush1.bf16.msra.mxu0 0
    %3256 = vmatprep.subr.bf16.mxu0 0
    %3257 = vmatpush1.bf16.msra.mxu0 0
    %3258 = vmatprep.subr.bf16.mxu0 0
    %3259 = vmatpush1.bf16.msra.mxu0 0
    %3260 = vmatprep.subr.bf16.mxu0 0
    %3261 = vmatpush1.bf16.msra.mxu0 0
    %3262 = vmatprep.subr.bf16.mxu0 0
    %3263 = vmatpush1.bf16.msra.mxu0 0
    %3264 = vmatprep.mubr.bf16.mxu0 0
    %3265 = vmatmul.mubr.bf16.gmra.mrb[0].mxu0 %v3059
    %v3266 = vpop.f32.mrb[0].mxu0
    %v3267 = vadd.f32 %v3178, %v3266
    %v3268 = vpop.f32.mrb[0].mxu0
    %v3269 = vpop.f32.mrb[0].mxu0
    %v3270 = vadd.f32 %v3181, %v3269
    %v3271 = vpop.f32.mrb[0].mxu0
    %3272 = vdwg.mxu0
    %v3273 = vld [vmem:[%s5] sm:$0x1]
    %v3275 = vlaneseq
    %v3276 = vshrl.u32 %v3275, 7
    %v3277 = vsub.s32 0, %v3276
    %v3278 = vrot.slane %v3273, %v3277
    %v3280 = vadd.f32 %v3267, %v3278
    %v3281 = vadd.f32 %v3270, %v3278
    %vm3282 = vcmask 64512
    %v3283 = vsel %vm3282, %v3280, -inf
    %3284 = vmax.xlane.f32.xlu0 %v3283
    %v3285 = vpop.xlane.xlu0 %3284
    %v3286 = vsel %vm3282, %v3281, -inf
    %3287 = vmax.xlane.f32.xlu0 %v3286
    %v3288 = vpop.xlane.xlu0 %3287
    %v3289 = vsub.f32 %v3280, %v3285
    %v3290 = vsub.f32 %v3281, %v3288
    %v3291 = vmul.f32 %v3289, 1.442695
    %v3292 = vpow.pop %v3291
    %v3293 = vmul.f32 %v3290, 1.442695
    %v3294 = vpow.pop %v3293
    %v3295 = vsel %vm3282, %v3292, 0.0
    %3296 = vadd.xlane.f32.xlu0 %v3295
    %v3297 = vpop.xlane.xlu0 %3296
    %v3298 = vsel %vm3282, %v3294, 0.0
    %3299 = vadd.xlane.f32.xlu0 %v3298
    %v3300 = vpop.xlane.xlu0 %3299
    %v3301 = vrcp.pop %v3297
    %v3302 = vmul.f32 %v3292, %v3301
    %v3303 = vrcp.pop %v3300
    %v3304 = vmul.f32 %v3294, %v3303
    %3305 = vst.msk [vmem:[%s6] sm:$0xff] %vm3282, %v3302
    %3306 = vst.msk [vmem:[%s6 + $0x8] sm:$0xff] %vm3282, %v3304
    // Predicated region
    $region26: #{rnn_forward.1} parent=1 // pred_check
      _
    $region27: #{rnn_forward.1} parent=1 // pred_check_branch
      %3308 = sbr.rel (0) target = $region29
    $region28: #{rnn_forward.1} parent=1 // pred_region
      _
    $region29: #{rnn_forward.1} parent=1 // pred_fallthru
      _
    // Predicated region
    $region30: #{rnn_forward.1} parent=1 // pred_check
      _
    $region31: #{rnn_forward.1} parent=1 // pred_check_branch
      %3310 = sbr.rel (0) target = $region33
    $region32: #{rnn_forward.1} parent=1 // pred_region
      %s3312 = ssub.s32 64, 64
      %3313 = vsyncadd [#allocation6], %s3312
      %s3315 = sshll.u32 [#allocation5], 4
      %s3316 = int_to_ptr.vmem [resolvable:$true] %s3315
      %3318 = dma.vmem_to_hbm [thread:$0]  %s3316, 64, %s7, [#allocation6]
    $region33: #{rnn_forward.1} parent=1 // pred_fallthru
      _
    // Predicated region
    $region34: #{rnn_forward.1} parent=1 // pred_check
      _
    $region35: #{rnn_forward.1} parent=1 // pred_check_branch
      %3320 = sbr.rel (0) target = $region37
    $region36: #{rnn_forward.1} parent=1 // pred_region
      %s3322 = ssub.s32 64, 64
      %3323 = vsyncadd [#allocation8], %s3322
      %s3325 = sshll.u32 [#allocation7], 4
      %s3326 = int_to_ptr.vmem [resolvable:$true] %s3325
      %3328 = dma.vmem_to_hbm [thread:$0]  %s3326, 64, %s8, [#allocation8]
    $region37: #{rnn_forward.1} parent=1 // pred_fallthru
      _
    // Predicated region
    $region38: #{rnn_forward.1} parent=1 // pred_check
      _
    $region39: #{rnn_forward.1} parent=1 // pred_check_branch
      %3330 = sbr.rel (0) target = $region41
    $region40: #{rnn_forward.1} parent=1 // pred_region
      _
    $region41: #{rnn_forward.1} parent=1 // pred_fallthru
      _
    // Predicated region
    $region42: #{rnn_forward.1} parent=1 // pred_check
      _
    $region43: #{rnn_forward.1} parent=1 // pred_check_branch
      %3332 = sbr.rel (0) target = $region45
    $region44: #{rnn_forward.1} parent=1 // pred_region
      %3333 = dma.done [#allocation6], 64
    $region45: #{rnn_forward.1} parent=1 // pred_fallthru
      _
    // Predicated region
    $region46: #{rnn_forward.1} parent=1 // pred_check
      _
    $region47: #{rnn_forward.1} parent=1 // pred_check_branch
      %3335 = sbr.rel (0) target = $region49
    $region48: #{rnn_forward.1} parent=1 // pred_region
      %3336 = dma.done [#allocation8], 64
    $region49: #{rnn_forward.1} parent=1 // pred_fallthru
      _
    %3337 = vsyncpa [#allocation6], 1
    %3338 = vsyncpa [#allocation8], 1

</llo_original>
